<compile_context>
chip_gen: v6e
topology: v6e:2x2x1
jax: 0.10.0
libtpu: 0.0.40
codegen_flags: <defaults>
</compile_context>

<pallas_src>
import jax
import jax.numpy as jnp
from jax.experimental import pallas as pl
from jax.experimental.pallas import tpu as pltpu  # noqa: F401  (kept for TPU-specific extensions)

# ---------------- hyper-params (small but consistent with the module) ----------------
B = 2
C_IN = 4
L_IN = 40
C_OUT = 32                     # ch_out == d_model == d_word_vec
KSIZE = 5
STRIDE = 5
PAD = 2
L_OUT = (L_IN + 2 * PAD - KSIZE) // STRIDE + 1   # = 8
N_HEAD = 8
D_K = 128
D_V = 128
D_INNER = 512
BN_EPS = 1e-5
LN_EPS = 1e-3                  # LayerNormalization eps in the 2017 transformer code
TEMPER = float(C_OUT) ** 0.5   # ScaledDotProductAttention temperature = sqrt(d_model)
INV_TEMPER = 1.0 / TEMPER
M_ROWS = B * L_OUT             # batch flattened into the matmul M dimension

# gather-free im2col relies on non-overlapping conv windows
assert STRIDE == KSIZE

# rows of the packed per-channel-vector buffer
_ROW_BIAS1, _ROW_PROJB, _ROW_LN1A, _ROW_LN1B = 0, 1, 2, 3
_ROW_FFNB1, _ROW_FFNB2, _ROW_LN2A, _ROW_LN2B = 4, 5, 6, 7
_N_VEC_ROWS = 8


# ---------------- in-kernel helpers (traced inside the Pallas body) ----------------
def _layer_norm(z, a2, b2):
    # old LayerNormalization: (z - mu) / (std_unbiased + eps) * a2 + b2
    mu = jnp.mean(z, axis=-1, keepdims=True)
    var = jnp.sum((z - mu) ** 2, axis=-1, keepdims=True) * (1.0 / (z.shape[-1] - 1))
    sigma = jnp.sqrt(var)
    inv = pl.reciprocal(sigma + LN_EPS, approx=True)          # divide -> EUP slot
    return (z - mu) * inv * a2 + b2


def _softmax_last(s):
    s = s - jnp.max(s, axis=-1, keepdims=True)
    e = jnp.exp(s)
    inv = pl.reciprocal(jnp.sum(e, axis=-1, keepdims=True), approx=True)
    return e * inv


# ---------------- the fused kernel ----------------
def fused_transformer_kernel(
    patches_ref,            # (B*L, C_in*K)            f32
    conv_w_ref,             # (C_in*K, C_out)          f32  (BN1 folded in)
    wqkv_ref,               # (C_out, 3*H*d_k)         bf16
    proj_w_ref,             # (H*d_v, C_out)           bf16
    ffn_w1_ref,             # (C_out, d_inner)         bf16
    ffn_w2_ref,             # (d_inner, C_out)         bf16
    vecs_ref,               # (8, d_inner)             f32  packed per-channel vectors
    o_ref,                  # (B*L, C_out)             f32
):
    # single DMA'd buffer of all per-channel vectors; static slices afterwards
    vecs = vecs_ref[...]
    bias1  = vecs[_ROW_BIAS1:_ROW_BIAS1 + 1, :C_OUT]          # conv bias (BN1 folded)
    proj_b = vecs[_ROW_PROJB:_ROW_PROJB + 1, :C_OUT]
    ln1_a  = vecs[_ROW_LN1A:_ROW_LN1A + 1, :C_OUT]
    ln1_b  = vecs[_ROW_LN1B:_ROW_LN1B + 1, :C_OUT]
    ffn_b1 = vecs[_ROW_FFNB1:_ROW_FFNB1 + 1, :]                # full 512 wide
    ffn_b2 = vecs[_ROW_FFNB2:_ROW_FFNB2 + 1, :C_OUT]
    ln2_a  = vecs[_ROW_LN2A:_ROW_LN2A + 1, :C_OUT]             # BN2 folded in
    ln2_b  = vecs[_ROW_LN2B:_ROW_LN2B + 1, :C_OUT]             # BN2 folded in

    # ---- Conv1d (im2col matmul, batch flattened into M) + folded BN1 + ReLU ----
    y = jnp.dot(patches_ref[...], conv_w_ref[...],
                preferred_element_type=jnp.float32)            # (B*L, C_out)
    conv_out = jnp.maximum(y + bias1, 0.0)                     # f32

    # ---- one wide QKV projection for all heads at once (bf16 x bf16 -> f32) ----
    qkv = jnp.dot(conv_out.astype(jnp.bfloat16), wqkv_ref[...],
                  preferred_element_type=jnp.float32)          # (B*L, 3*H*d_k)
    qkv_b = qkv.reshape(B, L_OUT, 3 * N_HEAD * D_K)            # tile-aligned split, no relayout

    # ---- per-head scaled-dot-product attention; projection accumulated per head
    #      (no heads VMEM scratch, no separate concat tensor) ----
    proj_w = proj_w_ref[...]                                   # (H*d_v, C_out) bf16
    acc = jnp.zeros((M_ROWS, C_OUT), jnp.float32)
    for h in range(N_HEAD):
        q = qkv_b[:, :, h * D_K:(h + 1) * D_K]                                 # (B, L, d_k)
        k = qkv_b[:, :, (N_HEAD + h) * D_K:(N_HEAD + h + 1) * D_K]
        v = qkv_b[:, :, (2 * N_HEAD + h) * D_V:(2 * N_HEAD + h + 1) * D_V]
        s = jnp.einsum('blk,bmk->blm', q, k,
                       preferred_element_type=jnp.float32) * INV_TEMPER        # (B, L, L)
        attn = _softmax_last(s)
        head = jnp.einsum('blm,bmv->blv', attn, v,
                          preferred_element_type=jnp.float32)                  # (B, L, d_v)
        # head h multiplies rows [h*d_v, (h+1)*d_v) of the projection weight —
        # identical to concatenating all heads and doing one big projection.
        acc = acc + jnp.dot(head.reshape(M_ROWS, D_V).astype(jnp.bfloat16),
                            proj_w[h * D_V:(h + 1) * D_V, :],
                            preferred_element_type=jnp.float32)

    # ---- output projection bias + residual + LayerNorm ----
    attn_out = _layer_norm(acc + proj_b + conv_out, ln1_a, ln1_b)

    # ---- position-wise FFN (linear+bias, ReLU, linear+bias) + residual + LayerNorm ----
    hdn = jnp.maximum(
        jnp.dot(attn_out.astype(jnp.bfloat16), ffn_w1_ref[...],
                preferred_element_type=jnp.float32) + ffn_b1, 0.0)             # (B*L, d_inner)
    ffn = jnp.dot(hdn.astype(jnp.bfloat16), ffn_w2_ref[...],
                  preferred_element_type=jnp.float32) + ffn_b2
    ffn_out = _layer_norm(ffn + attn_out, ln2_a, ln2_b)        # LN2 affine already carries BN2

    # ---- final ReLU (BN2 was folded into LN2's affine in the wrapper) ----
    o_ref[...] = jnp.maximum(ffn_out, 0.0)


# ---------------- wrapper (thin glue in JAX, whole forward in one Pallas call) ----------------
@jax.jit
def transformer_layer_forward(x, p):
    # gather-free im2col: stride == kernel_size -> non-overlapping windows.
    x_pad = jnp.pad(x, ((0, 0), (0, 0), (PAD, PAD)))[:, :, :L_OUT * STRIDE]   # (B, C_in, L*K)
    patches = (x_pad.reshape(B, C_IN, L_OUT, KSIZE)
               .transpose(0, 2, 1, 3)
               .reshape(M_ROWS, C_IN * KSIZE))                                 # (B*L, C_in*K)

    # fold BN1 (eval) into the conv weight and a bias
    s1 = p['bn1_g'] * jax.lax.rsqrt(p['bn1_v'] + BN_EPS)                       # (C_out,)
    conv_w = p['conv_w'].reshape(C_OUT, C_IN * KSIZE).T * s1[None, :]          # (C_in*K, C_out)
    bias1 = p['bn1_b'] - p['bn1_m'] * s1

    # fold BN2 (eval) into LN2's per-channel affine
    s2 = p['bn2_g'] * jax.lax.rsqrt(p['bn2_v'] + BN_EPS)
    ln2_a = p['ln2_a'] * s2
    ln2_b = p['ln2_b'] * s2 + (p['bn2_b'] - p['bn2_m'] * s2)

    # batched QKV weight: columns = [q head0..7 | k head0..7 | v head0..7], 128 wide each.
    wq = p['w_qs'].transpose(1, 0, 2).reshape(C_OUT, N_HEAD * D_K)
    wk = p['w_ks'].transpose(1, 0, 2).reshape(C_OUT, N_HEAD * D_K)
    wv = p['w_vs'].transpose(1, 0, 2).reshape(C_OUT, N_HEAD * D_V)
    wqkv = jnp.concatenate([wq, wk, wv], axis=-1).astype(jnp.bfloat16)         # (C_out, 3*H*d_k)

    proj_w = p['proj_w'].astype(jnp.bfloat16)
    ffn_w1 = p['ffn_w1'].astype(jnp.bfloat16)
    ffn_w2 = p['ffn_w2'].astype(jnp.bfloat16)

    # pack all per-channel vectors into ONE buffer -> single prologue DMA
    def pad512(v):
        return jnp.pad(v, (0, D_INNER - v.shape[0]))
    vecs = jnp.stack([
        pad512(bias1),          # _ROW_BIAS1
        pad512(p['proj_b']),    # _ROW_PROJB
        pad512(p['ln1_a']),     # _ROW_LN1A
        pad512(p['ln1_b']),     # _ROW_LN1B
        p['ffn_b1'],            # _ROW_FFNB1 (already 512 wide)
        pad512(p['ffn_b2']),    # _ROW_FFNB2
        pad512(ln2_a),          # _ROW_LN2A
        pad512(ln2_b),          # _ROW_LN2B
    ]).astype(jnp.float32)                                                     # (8, 512)

    out2d = pl.pallas_call(
        fused_transformer_kernel,
        out_shape=jax.ShapeDtypeStruct((M_ROWS, C_OUT), jnp.float32),
    )(patches, conv_w, wqkv, proj_w, ffn_w1, ffn_w2, vecs)

    # back to PyTorch NCW: (B, C_out, L_out)
    return out2d.reshape(B, L_OUT, C_OUT).transpose(0, 2, 1)


# ---------------- deterministic parameter init ----------------
def init_params(key):
    ks = jax.random.split(key, 24)
    n = lambda k, shape, s=0.05: s * jax.random.normal(k, shape, jnp.float32)
    p = {
        'conv_w': n(ks[0], (C_OUT, C_IN, KSIZE), 0.2),
        'bn1_g': 1.0 + n(ks[1], (C_OUT,), 0.1),
        'bn1_b': n(ks[2], (C_OUT,), 0.1),
        'bn1_m': n(ks[3], (C_OUT,), 0.1),
        'bn1_v': 1.0 + jnp.abs(n(ks[4], (C_OUT,), 0.1)),
        'w_qs': n(ks[5], (N_HEAD, C_OUT, D_K)),
        'w_ks': n(ks[6], (N_HEAD, C_OUT, D_K)),
        'w_vs': n(ks[7], (N_HEAD, C_OUT, D_V)),
        'proj_w': n(ks[8], (N_HEAD * D_V, C_OUT)),
        'proj_b': n(ks[9], (C_OUT,), 0.1),
        'ln1_a': 1.0 + n(ks[10], (C_OUT,), 0.1),
        'ln1_b': n(ks[11], (C_OUT,), 0.1),
        'ffn_w1': n(ks[12], (C_OUT, D_INNER)),
        'ffn_b1': n(ks[13], (D_INNER,), 0.1),
        'ffn_w2': n(ks[14], (D_INNER, C_OUT)),
        'ffn_b2': n(ks[15], (C_OUT,), 0.1),
        'ln2_a': 1.0 + n(ks[16], (C_OUT,), 0.1),
        'ln2_b': n(ks[17], (C_OUT,), 0.1),
        'bn2_g': 1.0 + n(ks[18], (C_OUT,), 0.1),
        'bn2_b': n(ks[19], (C_OUT,), 0.1),
        'bn2_m': n(ks[20], (C_OUT,), 0.1),
        'bn2_v': 1.0 + jnp.abs(n(ks[21], (C_OUT,), 0.1)),
    }
    return p, ks[22]


if __name__ == "__main__":
    params, xkey = init_params(jax.random.PRNGKey(0))
    x = jax.random.normal(xkey, (B, C_IN, L_IN), jnp.float32)   # PyTorch NCW input
    out = transformer_layer_forward(x, params)
    out = jax.block_until_ready(out)
    assert out.shape == (B, C_OUT, L_OUT), out.shape
    assert bool(jnp.all(jnp.isfinite(out)))
    print("KERNEL_OK")
</pallas_src>

<mosaic_0001>
module attributes {stable_mosaic.version = 11 : i64} {
  func.func @fused_transformer_kernel(%arg0: memref<16x20xf32, #tpu.memory_space<vmem>>, %arg1: memref<20x32xf32, #tpu.memory_space<vmem>>, %arg2: memref<32x3072xbf16, #tpu.memory_space<vmem>>, %arg3: memref<1024x32xbf16, #tpu.memory_space<vmem>>, %arg4: memref<32x512xbf16, #tpu.memory_space<vmem>>, %arg5: memref<512x32xbf16, #tpu.memory_space<vmem>>, %arg6: memref<8x512xf32, #tpu.memory_space<vmem>>, %arg7: memref<16x32xf32, #tpu.memory_space<vmem>>) attributes {dimension_semantics = [], scalar_prefetch = 0 : i64, scratch_operands = 0 : i64, tpu.core_type = #tpu.core_type<tc>} {
    %c0 = arith.constant 0 : index
    %c0_0 = arith.constant 0 : index
    %0 = vector.load %arg6[%c0, %c0_0] : memref<8x512xf32, #tpu.memory_space<vmem>>, vector<8x512xf32>
    %1 = vector.extract_strided_slice %0 {offsets = [0, 0], sizes = [1, 32], strides = [1, 1]} : vector<8x512xf32> to vector<1x32xf32>
    %2 = vector.extract_strided_slice %0 {offsets = [1, 0], sizes = [1, 32], strides = [1, 1]} : vector<8x512xf32> to vector<1x32xf32>
    %3 = vector.extract_strided_slice %0 {offsets = [2, 0], sizes = [1, 32], strides = [1, 1]} : vector<8x512xf32> to vector<1x32xf32>
    %4 = vector.extract_strided_slice %0 {offsets = [3, 0], sizes = [1, 32], strides = [1, 1]} : vector<8x512xf32> to vector<1x32xf32>
    %5 = vector.extract_strided_slice %0 {offsets = [4, 0], sizes = [1, 512], strides = [1, 1]} : vector<8x512xf32> to vector<1x512xf32>
    %6 = vector.extract_strided_slice %0 {offsets = [5, 0], sizes = [1, 32], strides = [1, 1]} : vector<8x512xf32> to vector<1x32xf32>
    %7 = vector.extract_strided_slice %0 {offsets = [6, 0], sizes = [1, 32], strides = [1, 1]} : vector<8x512xf32> to vector<1x32xf32>
    %8 = vector.extract_strided_slice %0 {offsets = [7, 0], sizes = [1, 32], strides = [1, 1]} : vector<8x512xf32> to vector<1x32xf32>
    %c0_1 = arith.constant 0 : index
    %c0_2 = arith.constant 0 : index
    %9 = vector.load %arg0[%c0_1, %c0_2] : memref<16x20xf32, #tpu.memory_space<vmem>>, vector<16x20xf32>
    %c0_3 = arith.constant 0 : index
    %c0_4 = arith.constant 0 : index
    %10 = vector.load %arg1[%c0_3, %c0_4] : memref<20x32xf32, #tpu.memory_space<vmem>>, vector<20x32xf32>
    %cst = arith.constant dense<0.000000e+00> : vector<16x32xf32>
    %11 = tpu.matmul %9, %10, %cst {dimension_numbers = #tpu.dot_dimension_numbers<[1], [0], [0], [1], [0, 0, 1, 1], [], []>} : vector<16x20xf32>, vector<20x32xf32>, vector<16x32xf32> -> vector<16x32xf32>
    %12 = vector.broadcast %1 : vector<1x32xf32> to vector<16x32xf32>
    %13 = arith.addf %11, %12 : vector<16x32xf32>
    %cst_5 = arith.constant 0.000000e+00 : f32
    %14 = vector.broadcast %cst_5 : f32 to vector<16x32xf32>
    %15 = arith.maximumf %13, %14 : vector<16x32xf32>
    %16 = arith.truncf %15 : vector<16x32xf32> to vector<16x32xbf16>
    %c0_6 = arith.constant 0 : index
    %c0_7 = arith.constant 0 : index
    %17 = vector.load %arg2[%c0_6, %c0_7] : memref<32x3072xbf16, #tpu.memory_space<vmem>>, vector<32x3072xbf16>
    %cst_8 = arith.constant dense<0.000000e+00> : vector<16x3072xf32>
    %18 = tpu.matmul %16, %17, %cst_8 {dimension_numbers = #tpu.dot_dimension_numbers<[1], [0], [0], [1], [0, 0, 1, 1], [], []>} : vector<16x32xbf16>, vector<32x3072xbf16>, vector<16x3072xf32> -> vector<16x3072xf32>
    %19 = vector.shape_cast %18 : vector<16x3072xf32> to vector<2x8x3072xf32>
    %c0_9 = arith.constant 0 : index
    %c0_10 = arith.constant 0 : index
    %20 = vector.load %arg3[%c0_9, %c0_10] : memref<1024x32xbf16, #tpu.memory_space<vmem>>, vector<1024x32xbf16>
    %cst_11 = arith.constant 0.000000e+00 : f32
    %21 = vector.broadcast %cst_11 : f32 to vector<16x32xf32>
    %22 = vector.extract_strided_slice %19 {offsets = [0, 0, 0], sizes = [2, 8, 128], strides = [1, 1, 1]} : vector<2x8x3072xf32> to vector<2x8x128xf32>
    %23 = vector.extract_strided_slice %19 {offsets = [0, 0, 1024], sizes = [2, 8, 128], strides = [1, 1, 1]} : vector<2x8x3072xf32> to vector<2x8x128xf32>
    %24 = vector.extract_strided_slice %19 {offsets = [0, 0, 2048], sizes = [2, 8, 128], strides = [1, 1, 1]} : vector<2x8x3072xf32> to vector<2x8x128xf32>
    "tpu.trace_start"() <{level = 10 : i32, message = "blk,bmk->blm"}> : () -> ()
    %cst_12 = arith.constant dense<0.000000e+00> : vector<2x8x8xf32>
    %25 = tpu.matmul %22, %23, %cst_12 {dimension_numbers = #tpu.dot_dimension_numbers<[2], [2], [1], [1], [0, 0, 0, 1, 1, 1], [0], [0]>} : vector<2x8x128xf32>, vector<2x8x128xf32>, vector<2x8x8xf32> -> vector<2x8x8xf32>
    "tpu.trace_stop"() : () -> ()
    %cst_13 = arith.constant 0.176776692 : f32
    %26 = vector.broadcast %cst_13 : f32 to vector<2x8x8xf32>
    %27 = arith.mulf %25, %26 : vector<2x8x8xf32>
    %cst_14 = arith.constant dense<0xFF800000> : vector<2x8xf32>
    %28 = vector.multi_reduction <maximumf>, %27, %cst_14 [2] : vector<2x8x8xf32> to vector<2x8xf32>
    %29 = vector.shape_cast %28 : vector<2x8xf32> to vector<2x8x1xf32>
    %30 = vector.broadcast %29 : vector<2x8x1xf32> to vector<2x8x8xf32>
    %31 = arith.subf %27, %30 : vector<2x8x8xf32>
    %32 = math.exp %31 : vector<2x8x8xf32>
    %cst_15 = arith.constant dense<0.000000e+00> : vector<2x8xf32>
    %33 = vector.multi_reduction <add>, %32, %cst_15 [2] : vector<2x8x8xf32> to vector<2x8xf32>
    %34 = vector.shape_cast %33 : vector<2x8xf32> to vector<2x8x1xf32>
    %35 = tpu.reciprocal %34 {approx = true} : vector<2x8x1xf32> -> vector<2x8x1xf32>
    %36 = vector.broadcast %35 : vector<2x8x1xf32> to vector<2x8x8xf32>
    %37 = arith.mulf %32, %36 : vector<2x8x8xf32>
    "tpu.trace_start"() <{level = 10 : i32, message = "blm,bmv->blv"}> : () -> ()
    %cst_16 = arith.constant dense<0.000000e+00> : vector<2x8x128xf32>
    %38 = tpu.matmul %37, %24, %cst_16 {dimension_numbers = #tpu.dot_dimension_numbers<[2], [1], [1], [2], [0, 0, 0, 1, 1, 2], [0], [0]>} : vector<2x8x8xf32>, vector<2x8x128xf32>, vector<2x8x128xf32> -> vector<2x8x128xf32>
    "tpu.trace_stop"() : () -> ()
    %39 = vector.shape_cast %38 : vector<2x8x128xf32> to vector<16x128xf32>
    %40 = arith.truncf %39 : vector<16x128xf32> to vector<16x128xbf16>
    %41 = vector.extract_strided_slice %20 {offsets = [0, 0], sizes = [128, 32], strides = [1, 1]} : vector<1024x32xbf16> to vector<128x32xbf16>
    %cst_17 = arith.constant dense<0.000000e+00> : vector<16x32xf32>
    %42 = tpu.matmul %40, %41, %cst_17 {dimension_numbers = #tpu.dot_dimension_numbers<[1], [0], [0], [1], [0, 0, 1, 1], [], []>} : vector<16x128xbf16>, vector<128x32xbf16>, vector<16x32xf32> -> vector<16x32xf32>
    %43 = arith.addf %21, %42 : vector<16x32xf32>
    %44 = vector.extract_strided_slice %19 {offsets = [0, 0, 128], sizes = [2, 8, 128], strides = [1, 1, 1]} : vector<2x8x3072xf32> to vector<2x8x128xf32>
    %45 = vector.extract_strided_slice %19 {offsets = [0, 0, 1152], sizes = [2, 8, 128], strides = [1, 1, 1]} : vector<2x8x3072xf32> to vector<2x8x128xf32>
    %46 = vector.extract_strided_slice %19 {offsets = [0, 0, 2176], sizes = [2, 8, 128], strides = [1, 1, 1]} : vector<2x8x3072xf32> to vector<2x8x128xf32>
    "tpu.trace_start"() <{level = 10 : i32, message = "blk,bmk->blm"}> : () -> ()
    %cst_18 = arith.constant dense<0.000000e+00> : vector<2x8x8xf32>
    %47 = tpu.matmul %44, %45, %cst_18 {dimension_numbers = #tpu.dot_dimension_numbers<[2], [2], [1], [1], [0, 0, 0, 1, 1, 1], [0], [0]>} : vector<2x8x128xf32>, vector<2x8x128xf32>, vector<2x8x8xf32> -> vector<2x8x8xf32>
    "tpu.trace_stop"() : () -> ()
    %cst_19 = arith.constant 0.176776692 : f32
    %48 = vector.broadcast %cst_19 : f32 to vector<2x8x8xf32>
    %49 = arith.mulf %47, %48 : vector<2x8x8xf32>
    %cst_20 = arith.constant dense<0xFF800000> : vector<2x8xf32>
    %50 = vector.multi_reduction <maximumf>, %49, %cst_20 [2] : vector<2x8x8xf32> to vector<2x8xf32>
    %51 = vector.shape_cast %50 : vector<2x8xf32> to vector<2x8x1xf32>
    %52 = vector.broadcast %51 : vector<2x8x1xf32> to vector<2x8x8xf32>
    %53 = arith.subf %49, %52 : vector<2x8x8xf32>
    %54 = math.exp %53 : vector<2x8x8xf32>
    %cst_21 = arith.constant dense<0.000000e+00> : vector<2x8xf32>
    %55 = vector.multi_reduction <add>, %54, %cst_21 [2] : vector<2x8x8xf32> to vector<2x8xf32>
    %56 = vector.shape_cast %55 : vector<2x8xf32> to vector<2x8x1xf32>
    %57 = tpu.reciprocal %56 {approx = true} : vector<2x8x1xf32> -> vector<2x8x1xf32>
    %58 = vector.broadcast %57 : vector<2x8x1xf32> to vector<2x8x8xf32>
    %59 = arith.mulf %54, %58 : vector<2x8x8xf32>
    "tpu.trace_start"() <{level = 10 : i32, message = "blm,bmv->blv"}> : () -> ()
    %cst_22 = arith.constant dense<0.000000e+00> : vector<2x8x128xf32>
    %60 = tpu.matmul %59, %46, %cst_22 {dimension_numbers = #tpu.dot_dimension_numbers<[2], [1], [1], [2], [0, 0, 0, 1, 1, 2], [0], [0]>} : vector<2x8x8xf32>, vector<2x8x128xf32>, vector<2x8x128xf32> -> vector<2x8x128xf32>
    "tpu.trace_stop"() : () -> ()
    %61 = vector.shape_cast %60 : vector<2x8x128xf32> to vector<16x128xf32>
    %62 = arith.truncf %61 : vector<16x128xf32> to vector<16x128xbf16>
    %63 = vector.extract_strided_slice %20 {offsets = [128, 0], sizes = [128, 32], strides = [1, 1]} : vector<1024x32xbf16> to vector<128x32xbf16>
    %cst_23 = arith.constant dense<0.000000e+00> : vector<16x32xf32>
    %64 = tpu.matmul %62, %63, %cst_23 {dimension_numbers = #tpu.dot_dimension_numbers<[1], [0], [0], [1], [0, 0, 1, 1], [], []>} : vector<16x128xbf16>, vector<128x32xbf16>, vector<16x32xf32> -> vector<16x32xf32>
    %65 = arith.addf %43, %64 : vector<16x32xf32>
    %66 = vector.extract_strided_slice %19 {offsets = [0, 0, 256], sizes = [2, 8, 128], strides = [1, 1, 1]} : vector<2x8x3072xf32> to vector<2x8x128xf32>
    %67 = vector.extract_strided_slice %19 {offsets = [0, 0, 1280], sizes = [2, 8, 128], strides = [1, 1, 1]} : vector<2x8x3072xf32> to vector<2x8x128xf32>
    %68 = vector.extract_strided_slice %19 {offsets = [0, 0, 2304], sizes = [2, 8, 128], strides = [1, 1, 1]} : vector<2x8x3072xf32> to vector<2x8x128xf32>
    "tpu.trace_start"() <{level = 10 : i32, message = "blk,bmk->blm"}> : () -> ()
    %cst_24 = arith.constant dense<0.000000e+00> : vector<2x8x8xf32>
    %69 = tpu.matmul %66, %67, %cst_24 {dimension_numbers = #tpu.dot_dimension_numbers<[2], [2], [1], [1], [0, 0, 0, 1, 1, 1], [0], [0]>} : vector<2x8x128xf32>, vector<2x8x128xf32>, vector<2x8x8xf32> -> vector<2x8x8xf32>
    "tpu.trace_stop"() : () -> ()
    %cst_25 = arith.constant 0.176776692 : f32
    %70 = vector.broadcast %cst_25 : f32 to vector<2x8x8xf32>
    %71 = arith.mulf %69, %70 : vector<2x8x8xf32>
    %cst_26 = arith.constant dense<0xFF800000> : vector<2x8xf32>
    %72 = vector.multi_reduction <maximumf>, %71, %cst_26 [2] : vector<2x8x8xf32> to vector<2x8xf32>
    %73 = vector.shape_cast %72 : vector<2x8xf32> to vector<2x8x1xf32>
    %74 = vector.broadcast %73 : vector<2x8x1xf32> to vector<2x8x8xf32>
    %75 = arith.subf %71, %74 : vector<2x8x8xf32>
    %76 = math.exp %75 : vector<2x8x8xf32>
    %cst_27 = arith.constant dense<0.000000e+00> : vector<2x8xf32>
    %77 = vector.multi_reduction <add>, %76, %cst_27 [2] : vector<2x8x8xf32> to vector<2x8xf32>
    %78 = vector.shape_cast %77 : vector<2x8xf32> to vector<2x8x1xf32>
    %79 = tpu.reciprocal %78 {approx = true} : vector<2x8x1xf32> -> vector<2x8x1xf32>
    %80 = vector.broadcast %79 : vector<2x8x1xf32> to vector<2x8x8xf32>
    %81 = arith.mulf %76, %80 : vector<2x8x8xf32>
    "tpu.trace_start"() <{level = 10 : i32, message = "blm,bmv->blv"}> : () -> ()
    %cst_28 = arith.constant dense<0.000000e+00> : vector<2x8x128xf32>
    %82 = tpu.matmul %81, %68, %cst_28 {dimension_numbers = #tpu.dot_dimension_numbers<[2], [1], [1], [2], [0, 0, 0, 1, 1, 2], [0], [0]>} : vector<2x8x8xf32>, vector<2x8x128xf32>, vector<2x8x128xf32> -> vector<2x8x128xf32>
    "tpu.trace_stop"() : () -> ()
    %83 = vector.shape_cast %82 : vector<2x8x128xf32> to vector<16x128xf32>
    %84 = arith.truncf %83 : vector<16x128xf32> to vector<16x128xbf16>
    %85 = vector.extract_strided_slice %20 {offsets = [256, 0], sizes = [128, 32], strides = [1, 1]} : vector<1024x32xbf16> to vector<128x32xbf16>
    %cst_29 = arith.constant dense<0.000000e+00> : vector<16x32xf32>
    %86 = tpu.matmul %84, %85, %cst_29 {dimension_numbers = #tpu.dot_dimension_numbers<[1], [0], [0], [1], [0, 0, 1, 1], [], []>} : vector<16x128xbf16>, vector<128x32xbf16>, vector<16x32xf32> -> vector<16x32xf32>
    %87 = arith.addf %65, %86 : vector<16x32xf32>
    %88 = vector.extract_strided_slice %19 {offsets = [0, 0, 384], sizes = [2, 8, 128], strides = [1, 1, 1]} : vector<2x8x3072xf32> to vector<2x8x128xf32>
    %89 = vector.extract_strided_slice %19 {offsets = [0, 0, 1408], sizes = [2, 8, 128], strides = [1, 1, 1]} : vector<2x8x3072xf32> to vector<2x8x128xf32>
    %90 = vector.extract_strided_slice %19 {offsets = [0, 0, 2432], sizes = [2, 8, 128], strides = [1, 1, 1]} : vector<2x8x3072xf32> to vector<2x8x128xf32>
    "tpu.trace_start"() <{level = 10 : i32, message = "blk,bmk->blm"}> : () -> ()
    %cst_30 = arith.constant dense<0.000000e+00> : vector<2x8x8xf32>
    %91 = tpu.matmul %88, %89, %cst_30 {dimension_numbers = #tpu.dot_dimension_numbers<[2], [2], [1], [1], [0, 0, 0, 1, 1, 1], [0], [0]>} : vector<2x8x128xf32>, vector<2x8x128xf32>, vector<2x8x8xf32> -> vector<2x8x8xf32>
    "tpu.trace_stop"() : () -> ()
    %cst_31 = arith.constant 0.176776692 : f32
    %92 = vector.broadcast %cst_31 : f32 to vector<2x8x8xf32>
    %93 = arith.mulf %91, %92 : vector<2x8x8xf32>
    %cst_32 = arith.constant dense<0xFF800000> : vector<2x8xf32>
    %94 = vector.multi_reduction <maximumf>, %93, %cst_32 [2] : vector<2x8x8xf32> to vector<2x8xf32>
    %95 = vector.shape_cast %94 : vector<2x8xf32> to vector<2x8x1xf32>
    %96 = vector.broadcast %95 : vector<2x8x1xf32> to vector<2x8x8xf32>
    %97 = arith.subf %93, %96 : vector<2x8x8xf32>
    %98 = math.exp %97 : vector<2x8x8xf32>
    %cst_33 = arith.constant dense<0.000000e+00> : vector<2x8xf32>
    %99 = vector.multi_reduction <add>, %98, %cst_33 [2] : vector<2x8x8xf32> to vector<2x8xf32>
    %100 = vector.shape_cast %99 : vector<2x8xf32> to vector<2x8x1xf32>
    %101 = tpu.reciprocal %100 {approx = true} : vector<2x8x1xf32> -> vector<2x8x1xf32>
    %102 = vector.broadcast %101 : vector<2x8x1xf32> to vector<2x8x8xf32>
    %103 = arith.mulf %98, %102 : vector<2x8x8xf32>
    "tpu.trace_start"() <{level = 10 : i32, message = "blm,bmv->blv"}> : () -> ()
    %cst_34 = arith.constant dense<0.000000e+00> : vector<2x8x128xf32>
    %104 = tpu.matmul %103, %90, %cst_34 {dimension_numbers = #tpu.dot_dimension_numbers<[2], [1], [1], [2], [0, 0, 0, 1, 1, 2], [0], [0]>} : vector<2x8x8xf32>, vector<2x8x128xf32>, vector<2x8x128xf32> -> vector<2x8x128xf32>
    "tpu.trace_stop"() : () -> ()
    %105 = vector.shape_cast %104 : vector<2x8x128xf32> to vector<16x128xf32>
    %106 = arith.truncf %105 : vector<16x128xf32> to vector<16x128xbf16>
    %107 = vector.extract_strided_slice %20 {offsets = [384, 0], sizes = [128, 32], strides = [1, 1]} : vector<1024x32xbf16> to vector<128x32xbf16>
    %cst_35 = arith.constant dense<0.000000e+00> : vector<16x32xf32>
    %108 = tpu.matmul %106, %107, %cst_35 {dimension_numbers = #tpu.dot_dimension_numbers<[1], [0], [0], [1], [0, 0, 1, 1], [], []>} : vector<16x128xbf16>, vector<128x32xbf16>, vector<16x32xf32> -> vector<16x32xf32>
    %109 = arith.addf %87, %108 : vector<16x32xf32>
    %110 = vector.extract_strided_slice %19 {offsets = [0, 0, 512], sizes = [2, 8, 128], strides = [1, 1, 1]} : vector<2x8x3072xf32> to vector<2x8x128xf32>
    %111 = vector.extract_strided_slice %19 {offsets = [0, 0, 1536], sizes = [2, 8, 128], strides = [1, 1, 1]} : vector<2x8x3072xf32> to vector<2x8x128xf32>
    %112 = vector.extract_strided_slice %19 {offsets = [0, 0, 2560], sizes = [2, 8, 128], strides = [1, 1, 1]} : vector<2x8x3072xf32> to vector<2x8x128xf32>
    "tpu.trace_start"() <{level = 10 : i32, message = "blk,bmk->blm"}> : () -> ()
    %cst_36 = arith.constant dense<0.000000e+00> : vector<2x8x8xf32>
    %113 = tpu.matmul %110, %111, %cst_36 {dimension_numbers = #tpu.dot_dimension_numbers<[2], [2], [1], [1], [0, 0, 0, 1, 1, 1], [0], [0]>} : vector<2x8x128xf32>, vector<2x8x128xf32>, vector<2x8x8xf32> -> vector<2x8x8xf32>
    "tpu.trace_stop"() : () -> ()
    %cst_37 = arith.constant 0.176776692 : f32
    %114 = vector.broadcast %cst_37 : f32 to vector<2x8x8xf32>
    %115 = arith.mulf %113, %114 : vector<2x8x8xf32>
    %cst_38 = arith.constant dense<0xFF800000> : vector<2x8xf32>
    %116 = vector.multi_reduction <maximumf>, %115, %cst_38 [2] : vector<2x8x8xf32> to vector<2x8xf32>
    %117 = vector.shape_cast %116 : vector<2x8xf32> to vector<2x8x1xf32>
    %118 = vector.broadcast %117 : vector<2x8x1xf32> to vector<2x8x8xf32>
    %119 = arith.subf %115, %118 : vector<2x8x8xf32>
    %120 = math.exp %119 : vector<2x8x8xf32>
    %cst_39 = arith.constant dense<0.000000e+00> : vector<2x8xf32>
    %121 = vector.multi_reduction <add>, %120, %cst_39 [2] : vector<2x8x8xf32> to vector<2x8xf32>
    %122 = vector.shape_cast %121 : vector<2x8xf32> to vector<2x8x1xf32>
    %123 = tpu.reciprocal %122 {approx = true} : vector<2x8x1xf32> -> vector<2x8x1xf32>
    %124 = vector.broadcast %123 : vector<2x8x1xf32> to vector<2x8x8xf32>
    %125 = arith.mulf %120, %124 : vector<2x8x8xf32>
    "tpu.trace_start"() <{level = 10 : i32, message = "blm,bmv->blv"}> : () -> ()
    %cst_40 = arith.constant dense<0.000000e+00> : vector<2x8x128xf32>
    %126 = tpu.matmul %125, %112, %cst_40 {dimension_numbers = #tpu.dot_dimension_numbers<[2], [1], [1], [2], [0, 0, 0, 1, 1, 2], [0], [0]>} : vector<2x8x8xf32>, vector<2x8x128xf32>, vector<2x8x128xf32> -> vector<2x8x128xf32>
    "tpu.trace_stop"() : () -> ()
    %127 = vector.shape_cast %126 : vector<2x8x128xf32> to vector<16x128xf32>
    %128 = arith.truncf %127 : vector<16x128xf32> to vector<16x128xbf16>
    %129 = vector.extract_strided_slice %20 {offsets = [512, 0], sizes = [128, 32], strides = [1, 1]} : vector<1024x32xbf16> to vector<128x32xbf16>
    %cst_41 = arith.constant dense<0.000000e+00> : vector<16x32xf32>
    %130 = tpu.matmul %128, %129, %cst_41 {dimension_numbers = #tpu.dot_dimension_numbers<[1], [0], [0], [1], [0, 0, 1, 1], [], []>} : vector<16x128xbf16>, vector<128x32xbf16>, vector<16x32xf32> -> vector<16x32xf32>
    %131 = arith.addf %109, %130 : vector<16x32xf32>
    %132 = vector.extract_strided_slice %19 {offsets = [0, 0, 640], sizes = [2, 8, 128], strides = [1, 1, 1]} : vector<2x8x3072xf32> to vector<2x8x128xf32>
    %133 = vector.extract_strided_slice %19 {offsets = [0, 0, 1664], sizes = [2, 8, 128], strides = [1, 1, 1]} : vector<2x8x3072xf32> to vector<2x8x128xf32>
    %134 = vector.extract_strided_slice %19 {offsets = [0, 0, 2688], sizes = [2, 8, 128], strides = [1, 1, 1]} : vector<2x8x3072xf32> to vector<2x8x128xf32>
    "tpu.trace_start"() <{level = 10 : i32, message = "blk,bmk->blm"}> : () -> ()
    %cst_42 = arith.constant dense<0.000000e+00> : vector<2x8x8xf32>
    %135 = tpu.matmul %132, %133, %cst_42 {dimension_numbers = #tpu.dot_dimension_numbers<[2], [2], [1], [1], [0, 0, 0, 1, 1, 1], [0], [0]>} : vector<2x8x128xf32>, vector<2x8x128xf32>, vector<2x8x8xf32> -> vector<2x8x8xf32>
    "tpu.trace_stop"() : () -> ()
    %cst_43 = arith.constant 0.176776692 : f32
    %136 = vector.broadcast %cst_43 : f32 to vector<2x8x8xf32>
    %137 = arith.mulf %135, %136 : vector<2x8x8xf32>
    %cst_44 = arith.constant dense<0xFF800000> : vector<2x8xf32>
    %138 = vector.multi_reduction <maximumf>, %137, %cst_44 [2] : vector<2x8x8xf32> to vector<2x8xf32>
    %139 = vector.shape_cast %138 : vector<2x8xf32> to vector<2x8x1xf32>
    %140 = vector.broadcast %139 : vector<2x8x1xf32> to vector<2x8x8xf32>
    %141 = arith.subf %137, %140 : vector<2x8x8xf32>
    %142 = math.exp %141 : vector<2x8x8xf32>
    %cst_45 = arith.constant dense<0.000000e+00> : vector<2x8xf32>
    %143 = vector.multi_reduction <add>, %142, %cst_45 [2] : vector<2x8x8xf32> to vector<2x8xf32>
    %144 = vector.shape_cast %143 : vector<2x8xf32> to vector<2x8x1xf32>
    %145 = tpu.reciprocal %144 {approx = true} : vector<2x8x1xf32> -> vector<2x8x1xf32>
    %146 = vector.broadcast %145 : vector<2x8x1xf32> to vector<2x8x8xf32>
    %147 = arith.mulf %142, %146 : vector<2x8x8xf32>
    "tpu.trace_start"() <{level = 10 : i32, message = "blm,bmv->blv"}> : () -> ()
    %cst_46 = arith.constant dense<0.000000e+00> : vector<2x8x128xf32>
    %148 = tpu.matmul %147, %134, %cst_46 {dimension_numbers = #tpu.dot_dimension_numbers<[2], [1], [1], [2], [0, 0, 0, 1, 1, 2], [0], [0]>} : vector<2x8x8xf32>, vector<2x8x128xf32>, vector<2x8x128xf32> -> vector<2x8x128xf32>
    "tpu.trace_stop"() : () -> ()
    %149 = vector.shape_cast %148 : vector<2x8x128xf32> to vector<16x128xf32>
    %150 = arith.truncf %149 : vector<16x128xf32> to vector<16x128xbf16>
    %151 = vector.extract_strided_slice %20 {offsets = [640, 0], sizes = [128, 32], strides = [1, 1]} : vector<1024x32xbf16> to vector<128x32xbf16>
    %cst_47 = arith.constant dense<0.000000e+00> : vector<16x32xf32>
    %152 = tpu.matmul %150, %151, %cst_47 {dimension_numbers = #tpu.dot_dimension_numbers<[1], [0], [0], [1], [0, 0, 1, 1], [], []>} : vector<16x128xbf16>, vector<128x32xbf16>, vector<16x32xf32> -> vector<16x32xf32>
    %153 = arith.addf %131, %152 : vector<16x32xf32>
    %154 = vector.extract_strided_slice %19 {offsets = [0, 0, 768], sizes = [2, 8, 128], strides = [1, 1, 1]} : vector<2x8x3072xf32> to vector<2x8x128xf32>
    %155 = vector.extract_strided_slice %19 {offsets = [0, 0, 1792], sizes = [2, 8, 128], strides = [1, 1, 1]} : vector<2x8x3072xf32> to vector<2x8x128xf32>
    %156 = vector.extract_strided_slice %19 {offsets = [0, 0, 2816], sizes = [2, 8, 128], strides = [1, 1, 1]} : vector<2x8x3072xf32> to vector<2x8x128xf32>
    "tpu.trace_start"() <{level = 10 : i32, message = "blk,bmk->blm"}> : () -> ()
    %cst_48 = arith.constant dense<0.000000e+00> : vector<2x8x8xf32>
    %157 = tpu.matmul %154, %155, %cst_48 {dimension_numbers = #tpu.dot_dimension_numbers<[2], [2], [1], [1], [0, 0, 0, 1, 1, 1], [0], [0]>} : vector<2x8x128xf32>, vector<2x8x128xf32>, vector<2x8x8xf32> -> vector<2x8x8xf32>
    "tpu.trace_stop"() : () -> ()
    %cst_49 = arith.constant 0.176776692 : f32
    %158 = vector.broadcast %cst_49 : f32 to vector<2x8x8xf32>
    %159 = arith.mulf %157, %158 : vector<2x8x8xf32>
    %cst_50 = arith.constant dense<0xFF800000> : vector<2x8xf32>
    %160 = vector.multi_reduction <maximumf>, %159, %cst_50 [2] : vector<2x8x8xf32> to vector<2x8xf32>
    %161 = vector.shape_cast %160 : vector<2x8xf32> to vector<2x8x1xf32>
    %162 = vector.broadcast %161 : vector<2x8x1xf32> to vector<2x8x8xf32>
    %163 = arith.subf %159, %162 : vector<2x8x8xf32>
    %164 = math.exp %163 : vector<2x8x8xf32>
    %cst_51 = arith.constant dense<0.000000e+00> : vector<2x8xf32>
    %165 = vector.multi_reduction <add>, %164, %cst_51 [2] : vector<2x8x8xf32> to vector<2x8xf32>
    %166 = vector.shape_cast %165 : vector<2x8xf32> to vector<2x8x1xf32>
    %167 = tpu.reciprocal %166 {approx = true} : vector<2x8x1xf32> -> vector<2x8x1xf32>
    %168 = vector.broadcast %167 : vector<2x8x1xf32> to vector<2x8x8xf32>
    %169 = arith.mulf %164, %168 : vector<2x8x8xf32>
    "tpu.trace_start"() <{level = 10 : i32, message = "blm,bmv->blv"}> : () -> ()
    %cst_52 = arith.constant dense<0.000000e+00> : vector<2x8x128xf32>
    %170 = tpu.matmul %169, %156, %cst_52 {dimension_numbers = #tpu.dot_dimension_numbers<[2], [1], [1], [2], [0, 0, 0, 1, 1, 2], [0], [0]>} : vector<2x8x8xf32>, vector<2x8x128xf32>, vector<2x8x128xf32> -> vector<2x8x128xf32>
    "tpu.trace_stop"() : () -> ()
    %171 = vector.shape_cast %170 : vector<2x8x128xf32> to vector<16x128xf32>
    %172 = arith.truncf %171 : vector<16x128xf32> to vector<16x128xbf16>
    %173 = vector.extract_strided_slice %20 {offsets = [768, 0], sizes = [128, 32], strides = [1, 1]} : vector<1024x32xbf16> to vector<128x32xbf16>
    %cst_53 = arith.constant dense<0.000000e+00> : vector<16x32xf32>
    %174 = tpu.matmul %172, %173, %cst_53 {dimension_numbers = #tpu.dot_dimension_numbers<[1], [0], [0], [1], [0, 0, 1, 1], [], []>} : vector<16x128xbf16>, vector<128x32xbf16>, vector<16x32xf32> -> vector<16x32xf32>
    %175 = arith.addf %153, %174 : vector<16x32xf32>
    %176 = vector.extract_strided_slice %19 {offsets = [0, 0, 896], sizes = [2, 8, 128], strides = [1, 1, 1]} : vector<2x8x3072xf32> to vector<2x8x128xf32>
    %177 = vector.extract_strided_slice %19 {offsets = [0, 0, 1920], sizes = [2, 8, 128], strides = [1, 1, 1]} : vector<2x8x3072xf32> to vector<2x8x128xf32>
    %178 = vector.extract_strided_slice %19 {offsets = [0, 0, 2944], sizes = [2, 8, 128], strides = [1, 1, 1]} : vector<2x8x3072xf32> to vector<2x8x128xf32>
    "tpu.trace_start"() <{level = 10 : i32, message = "blk,bmk->blm"}> : () -> ()
    %cst_54 = arith.constant dense<0.000000e+00> : vector<2x8x8xf32>
    %179 = tpu.matmul %176, %177, %cst_54 {dimension_numbers = #tpu.dot_dimension_numbers<[2], [2], [1], [1], [0, 0, 0, 1, 1, 1], [0], [0]>} : vector<2x8x128xf32>, vector<2x8x128xf32>, vector<2x8x8xf32> -> vector<2x8x8xf32>
    "tpu.trace_stop"() : () -> ()
    %cst_55 = arith.constant 0.176776692 : f32
    %180 = vector.broadcast %cst_55 : f32 to vector<2x8x8xf32>
    %181 = arith.mulf %179, %180 : vector<2x8x8xf32>
    %cst_56 = arith.constant dense<0xFF800000> : vector<2x8xf32>
    %182 = vector.multi_reduction <maximumf>, %181, %cst_56 [2] : vector<2x8x8xf32> to vector<2x8xf32>
    %183 = vector.shape_cast %182 : vector<2x8xf32> to vector<2x8x1xf32>
    %184 = vector.broadcast %183 : vector<2x8x1xf32> to vector<2x8x8xf32>
    %185 = arith.subf %181, %184 : vector<2x8x8xf32>
    %186 = math.exp %185 : vector<2x8x8xf32>
    %cst_57 = arith.constant dense<0.000000e+00> : vector<2x8xf32>
    %187 = vector.multi_reduction <add>, %186, %cst_57 [2] : vector<2x8x8xf32> to vector<2x8xf32>
    %188 = vector.shape_cast %187 : vector<2x8xf32> to vector<2x8x1xf32>
    %189 = tpu.reciprocal %188 {approx = true} : vector<2x8x1xf32> -> vector<2x8x1xf32>
    %190 = vector.broadcast %189 : vector<2x8x1xf32> to vector<2x8x8xf32>
    %191 = arith.mulf %186, %190 : vector<2x8x8xf32>
    "tpu.trace_start"() <{level = 10 : i32, message = "blm,bmv->blv"}> : () -> ()
    %cst_58 = arith.constant dense<0.000000e+00> : vector<2x8x128xf32>
    %192 = tpu.matmul %191, %178, %cst_58 {dimension_numbers = #tpu.dot_dimension_numbers<[2], [1], [1], [2], [0, 0, 0, 1, 1, 2], [0], [0]>} : vector<2x8x8xf32>, vector<2x8x128xf32>, vector<2x8x128xf32> -> vector<2x8x128xf32>
    "tpu.trace_stop"() : () -> ()
    %193 = vector.shape_cast %192 : vector<2x8x128xf32> to vector<16x128xf32>
    %194 = arith.truncf %193 : vector<16x128xf32> to vector<16x128xbf16>
    %195 = vector.extract_strided_slice %20 {offsets = [896, 0], sizes = [128, 32], strides = [1, 1]} : vector<1024x32xbf16> to vector<128x32xbf16>
    %cst_59 = arith.constant dense<0.000000e+00> : vector<16x32xf32>
    %196 = tpu.matmul %194, %195, %cst_59 {dimension_numbers = #tpu.dot_dimension_numbers<[1], [0], [0], [1], [0, 0, 1, 1], [], []>} : vector<16x128xbf16>, vector<128x32xbf16>, vector<16x32xf32> -> vector<16x32xf32>
    %197 = arith.addf %175, %196 : vector<16x32xf32>
    %198 = vector.broadcast %2 : vector<1x32xf32> to vector<16x32xf32>
    %199 = arith.addf %197, %198 : vector<16x32xf32>
    %200 = arith.addf %199, %15 : vector<16x32xf32>
    %cst_60 = arith.constant dense<0.000000e+00> : vector<16xf32>
    %201 = vector.multi_reduction <add>, %200, %cst_60 [1] : vector<16x32xf32> to vector<16xf32>
    %202 = vector.shape_cast %201 : vector<16xf32> to vector<16x1xf32>
    %cst_61 = arith.constant 3.200000e+01 : f32
    %203 = vector.broadcast %cst_61 : f32 to vector<16x1xf32>
    %204 = arith.divf %202, %203 : vector<16x1xf32>
    %205 = vector.broadcast %204 : vector<16x1xf32> to vector<16x32xf32>
    %206 = arith.subf %200, %205 : vector<16x32xf32>
    %207 = arith.mulf %206, %206 : vector<16x32xf32>
    %cst_62 = arith.constant dense<0.000000e+00> : vector<16xf32>
    %208 = vector.multi_reduction <add>, %207, %cst_62 [1] : vector<16x32xf32> to vector<16xf32>
    %209 = vector.shape_cast %208 : vector<16xf32> to vector<16x1xf32>
    %cst_63 = arith.constant 0.0322580636 : f32
    %210 = vector.broadcast %cst_63 : f32 to vector<16x1xf32>
    %211 = arith.mulf %209, %210 : vector<16x1xf32>
    %212 = math.sqrt %211 : vector<16x1xf32>
    %cst_64 = arith.constant 1.000000e-03 : f32
    %213 = vector.broadcast %cst_64 : f32 to vector<16x1xf32>
    %214 = arith.addf %212, %213 : vector<16x1xf32>
    %215 = tpu.reciprocal %214 {approx = true} : vector<16x1xf32> -> vector<16x1xf32>
    %216 = vector.broadcast %204 : vector<16x1xf32> to vector<16x32xf32>
    %217 = arith.subf %200, %216 : vector<16x32xf32>
    %218 = vector.broadcast %215 : vector<16x1xf32> to vector<16x32xf32>
    %219 = arith.mulf %217, %218 : vector<16x32xf32>
    %220 = vector.broadcast %3 : vector<1x32xf32> to vector<16x32xf32>
    %221 = arith.mulf %219, %220 : vector<16x32xf32>
    %222 = vector.broadcast %4 : vector<1x32xf32> to vector<16x32xf32>
    %223 = arith.addf %221, %222 : vector<16x32xf32>
    %224 = arith.truncf %223 : vector<16x32xf32> to vector<16x32xbf16>
    %c0_65 = arith.constant 0 : index
    %c0_66 = arith.constant 0 : index
    %225 = vector.load %arg4[%c0_65, %c0_66] : memref<32x512xbf16, #tpu.memory_space<vmem>>, vector<32x512xbf16>
    %cst_67 = arith.constant dense<0.000000e+00> : vector<16x512xf32>
    %226 = tpu.matmul %224, %225, %cst_67 {dimension_numbers = #tpu.dot_dimension_numbers<[1], [0], [0], [1], [0, 0, 1, 1], [], []>} : vector<16x32xbf16>, vector<32x512xbf16>, vector<16x512xf32> -> vector<16x512xf32>
    %227 = vector.broadcast %5 : vector<1x512xf32> to vector<16x512xf32>
    %228 = arith.addf %226, %227 : vector<16x512xf32>
    %cst_68 = arith.constant 0.000000e+00 : f32
    %229 = vector.broadcast %cst_68 : f32 to vector<16x512xf32>
    %230 = arith.maximumf %228, %229 : vector<16x512xf32>
    %231 = arith.truncf %230 : vector<16x512xf32> to vector<16x512xbf16>
    %c0_69 = arith.constant 0 : index
    %c0_70 = arith.constant 0 : index
    %232 = vector.load %arg5[%c0_69, %c0_70] : memref<512x32xbf16, #tpu.memory_space<vmem>>, vector<512x32xbf16>
    %cst_71 = arith.constant dense<0.000000e+00> : vector<16x32xf32>
    %233 = tpu.matmul %231, %232, %cst_71 {dimension_numbers = #tpu.dot_dimension_numbers<[1], [0], [0], [1], [0, 0, 1, 1], [], []>} : vector<16x512xbf16>, vector<512x32xbf16>, vector<16x32xf32> -> vector<16x32xf32>
    %234 = vector.broadcast %6 : vector<1x32xf32> to vector<16x32xf32>
    %235 = arith.addf %233, %234 : vector<16x32xf32>
    %236 = arith.addf %235, %223 : vector<16x32xf32>
    %cst_72 = arith.constant dense<0.000000e+00> : vector<16xf32>
    %237 = vector.multi_reduction <add>, %236, %cst_72 [1] : vector<16x32xf32> to vector<16xf32>
    %238 = vector.shape_cast %237 : vector<16xf32> to vector<16x1xf32>
    %cst_73 = arith.constant 3.200000e+01 : f32
    %239 = vector.broadcast %cst_73 : f32 to vector<16x1xf32>
    %240 = arith.divf %238, %239 : vector<16x1xf32>
    %241 = vector.broadcast %240 : vector<16x1xf32> to vector<16x32xf32>
    %242 = arith.subf %236, %241 : vector<16x32xf32>
    %243 = arith.mulf %242, %242 : vector<16x32xf32>
    %cst_74 = arith.constant dense<0.000000e+00> : vector<16xf32>
    %244 = vector.multi_reduction <add>, %243, %cst_74 [1] : vector<16x32xf32> to vector<16xf32>
    %245 = vector.shape_cast %244 : vector<16xf32> to vector<16x1xf32>
    %cst_75 = arith.constant 0.0322580636 : f32
    %246 = vector.broadcast %cst_75 : f32 to vector<16x1xf32>
    %247 = arith.mulf %245, %246 : vector<16x1xf32>
    %248 = math.sqrt %247 : vector<16x1xf32>
    %cst_76 = arith.constant 1.000000e-03 : f32
    %249 = vector.broadcast %cst_76 : f32 to vector<16x1xf32>
    %250 = arith.addf %248, %249 : vector<16x1xf32>
    %251 = tpu.reciprocal %250 {approx = true} : vector<16x1xf32> -> vector<16x1xf32>
    %252 = vector.broadcast %240 : vector<16x1xf32> to vector<16x32xf32>
    %253 = arith.subf %236, %252 : vector<16x32xf32>
    %254 = vector.broadcast %251 : vector<16x1xf32> to vector<16x32xf32>
    %255 = arith.mulf %253, %254 : vector<16x32xf32>
    %256 = vector.broadcast %7 : vector<1x32xf32> to vector<16x32xf32>
    %257 = arith.mulf %255, %256 : vector<16x32xf32>
    %258 = vector.broadcast %8 : vector<1x32xf32> to vector<16x32xf32>
    %259 = arith.addf %257, %258 : vector<16x32xf32>
    %cst_77 = arith.constant 0.000000e+00 : f32
    %260 = vector.broadcast %cst_77 : f32 to vector<16x32xf32>
    %261 = arith.maximumf %259, %260 : vector<16x32xf32>
    %c0_78 = arith.constant 0 : index
    %c0_79 = arith.constant 0 : index
    %262 = vector.load %arg7[%c0_78, %c0_79] : memref<16x32xf32, #tpu.memory_space<vmem>>, vector<16x32xf32>
    tpu.vector_store %arg7[%c0_78, %c0_79], %261 {strides = array<i32>} : memref<16x32xf32, #tpu.memory_space<vmem>>, vector<16x32xf32>,
    return
  }
}

</mosaic_0001>

<llo_original>
// kernel: transformer_layer_forward.1
$region0: #{transformer_layer_forward.1}
  #allocation0 [shape = 'u32[]', space=smem, size = 0x4, offset = 0x4, fixed_abs, tag = 'smem constant byte address 0x4 - core index']
  #allocation1 [shape = 'u32[144,128]{1,0:T(1,128)}', space=vmem, size = 0x12000, scoped, tag = 'internal scratch']
  %s0 = inlined_call_operand.vmem [shape: f32[16,20], index: 0, kind: input, shape index: {}]
  %s1 = inlined_call_operand.vmem [shape: f32[20,32], index: 1, kind: input, shape index: {}]
  %s2 = inlined_call_operand.vmem [shape: bf16[32,3072], index: 2, kind: input, shape index: {}]
  %s3 = inlined_call_operand.vmem [shape: bf16[1024,32], index: 3, kind: input, shape index: {}]
  %s4 = inlined_call_operand.vmem [shape: bf16[32,512], index: 4, kind: input, shape index: {}]
  %s5 = inlined_call_operand.vmem [shape: bf16[512,32], index: 5, kind: input, shape index: {}]
  %s6 = inlined_call_operand.vmem [shape: f32[8,512], index: 6, kind: input, shape index: {}]
  %s7 = inlined_call_operand.hbm [shape: f32[16,32], index: 7, kind: output, shape index: {}]
  %s8 = sld [smem:[#allocation0]]
  $region38: #{transformer_layer_forward.1} parent=0
    _
  %s10 = ssub.s32 1, %s8
  %s11 = scalar_select 0, %s10, %s8
  $region1: #{transformer_layer_forward.1} parent=0
    #allocation2 [shape = 'u8[8192]{0}', space=vmem, size = 0x2000, scoped, tag = 'output window, operand 0, single buffered']
    #allocation3 [shape = 's32[1]{0}', space=sflag, size = 0x4, scoped, tag = 'scoped memory for transformer_layer_forward.1']
    %12 = vsyncpa [#allocation3], 0
    // Predicated region
    $region2: #{transformer_layer_forward.1} parent=1 // pred_check
      _
    $region3: #{transformer_layer_forward.1} parent=1 // pred_check_branch
      %14 = sbr.rel (0) target = $region5
    $region4: #{transformer_layer_forward.1} parent=1 // pred_region
      _
    $region5: #{transformer_layer_forward.1} parent=1 // pred_fallthru
      _
    // Predicated region
    $region6: #{transformer_layer_forward.1} parent=1 // pred_check
      _
    $region7: #{transformer_layer_forward.1} parent=1 // pred_check_branch
      %16 = sbr.rel (0) target = $region9
    $region8: #{transformer_layer_forward.1} parent=1 // pred_region
      _
    $region9: #{transformer_layer_forward.1} parent=1 // pred_fallthru
      _
    // Predicated region
    $region10: #{transformer_layer_forward.1} parent=1 // pred_check
      _
    $region11: #{transformer_layer_forward.1} parent=1 // pred_check_branch
      %18 = sbr.rel (0) target = $region13
    $region12: #{transformer_layer_forward.1} parent=1 // pred_region
      _
    $region13: #{transformer_layer_forward.1} parent=1 // pred_fallthru
      _
    // Predicated region
    $region14: #{transformer_layer_forward.1} parent=1 // pred_check
      _
    $region15: #{transformer_layer_forward.1} parent=1 // pred_check_branch
      %20 = sbr.rel (0) target = $region17
    $region16: #{transformer_layer_forward.1} parent=1 // pred_region
      _
    $region17: #{transformer_layer_forward.1} parent=1 // pred_fallthru
      _
    // Predicated region
    $region18: #{transformer_layer_forward.1} parent=1 // pred_check
      _
    $region19: #{transformer_layer_forward.1} parent=1 // pred_check_branch
      %22 = sbr.rel (0) target = $region21
    $region20: #{transformer_layer_forward.1} parent=1 // pred_region
      _
    $region21: #{transformer_layer_forward.1} parent=1 // pred_fallthru
      _
    // Predicated region
    $region22: #{transformer_layer_forward.1} parent=1 // pred_check
      _
    $region23: #{transformer_layer_forward.1} parent=1 // pred_check_branch
      %24 = sbr.rel (0) target = $region25
    $region24: #{transformer_layer_forward.1} parent=1 // pred_region
      _
    $region25: #{transformer_layer_forward.1} parent=1 // pred_fallthru
      _
    // Predicated region
    $region26: #{transformer_layer_forward.1} parent=1 // pred_check
      _
    $region27: #{transformer_layer_forward.1} parent=1 // pred_check_branch
      %26 = sbr.rel (0) target = $region29
    $region28: #{transformer_layer_forward.1} parent=1 // pred_region
      _
    $region29: #{transformer_layer_forward.1} parent=1 // pred_fallthru
      _
    %v28 = vld [vmem:[%s6] sm:$0xff]
    %v29 = vld [vmem:[%s6 + $0x8] sm:$0xff]
    %v30 = vld [vmem:[%s6 + $0x10] sm:$0xff]
    %v31 = vld [vmem:[%s6 + $0x18] sm:$0xff]
    %v32 = vld [vmem:[%s0] sm:$0xff]
    %v33 = vld [vmem:[%s0 + $0x8] sm:$0xff]
    %v34 = vld [vmem:[%s1] sm:$0xff]
    %v35 = vld [vmem:[%s1 + $0x8] sm:$0xff]
    %v36 = vld [vmem:[%s1 + $0x10] sm:$0xf]
    %v37 = vlaneseq
    %v38 = vshrl.u32 %v37, 7
    %v39 = vsub.s32 0, %v38
    %v40 = vrot.slane %v28, %v39
    %vm41 = vcmask 162816
    %v43 = vsel %vm41, %v32, 0
    %v46 = vsel %vm41, %v33, 0
    %vm48 = vcmask 1043456
    %v50 = vsel %vm48, %v36, 0
    %52 = vmatprep.subr.mxu0 0.0
    %53 = vmatpush1.msra.mxu0 0.0
    %54 = vmatprep.subr.mxu0 0.0
    %55 = vmatpush1.msra.mxu0 0.0
    %56 = vmatprep.subr.mxu0 0.0
    %57 = vmatpush1.msra.mxu0 0.0
    %58 = vmatprep.subr.mxu0 0.0
    %59 = vmatpush1.msra.mxu0 0.0
    %60 = vmatprep.subr.mxu0 0.0
    %61 = vmatpush1.msra.mxu0 0.0
    %62 = vmatprep.subr.mxu0 0.0
    %63 = vmatpush1.msra.mxu0 0.0
    %64 = vmatprep.subr.mxu0 0.0
    %65 = vmatpush1.msra.mxu0 0.0
    %66 = vmatprep.subr.mxu0 0.0
    %67 = vmatpush1.msra.mxu0 0.0
    %68 = vmatprep.subr.mxu0 0.0
    %69 = vmatpush1.msra.mxu0 0.0
    %70 = vmatprep.subr.mxu0 0.0
    %71 = vmatpush1.msra.mxu0 0.0
    %72 = vmatprep.subr.mxu0 0.0
    %73 = vmatpush1.msra.mxu0 0.0
    %74 = vmatprep.subr.mxu0 0.0
    %75 = vmatpush1.msra.mxu0 0.0
    %76 = vmatprep.subr.mxu0 0.0
    %77 = vmatpush1.msra.mxu0 0.0
    %78 = vmatprep.subr.mxu0 0.0
    %79 = vmatpush1.msra.mxu0 %v50
    %80 = vmatprep.subr.mxu0 0.0
    %81 = vmatpush1.msra.mxu0 %v35
    %82 = vmatprep.subr.mxu0 0.0
    %83 = vmatpush1.msra.mxu0 %v34
    %84 = vmatprep.subr.mxu0 0.0
    %85 = vmatpush2.msra.mxu0 0.0
    %86 = vmatprep.subr.mxu0 0.0
    %87 = vmatpush2.msra.mxu0 0.0
    %88 = vmatprep.subr.mxu0 0.0
    %89 = vmatpush2.msra.mxu0 0.0
    %90 = vmatprep.subr.mxu0 0.0
    %91 = vmatpush2.msra.mxu0 0.0
    %92 = vmatprep.subr.mxu0 0.0
    %93 = vmatpush2.msra.mxu0 0.0
    %94 = vmatprep.subr.mxu0 0.0
    %95 = vmatpush2.msra.mxu0 0.0
    %96 = vmatprep.subr.mxu0 0.0
    %97 = vmatpush2.msra.mxu0 0.0
    %98 = vmatprep.subr.mxu0 0.0
    %99 = vmatpush2.msra.mxu0 0.0
    %100 = vmatprep.subr.mxu0 0.0
    %101 = vmatpush2.msra.mxu0 0.0
    %102 = vmatprep.subr.mxu0 0.0
    %103 = vmatpush2.msra.mxu0 0.0
    %104 = vmatprep.subr.mxu0 0.0
    %105 = vmatpush2.msra.mxu0 0.0
    %106 = vmatprep.subr.mxu0 0.0
    %107 = vmatpush2.msra.mxu0 0.0
    %108 = vmatprep.subr.mxu0 0.0
    %109 = vmatpush2.msra.mxu0 0.0
    %110 = vmatprep.subr.mxu0 0.0
    %111 = vmatpush2.msra.mxu0 0.0
    %112 = vmatprep.subr.mxu0 0.0
    %113 = vmatpush2.msra.mxu0 0.0
    %114 = vmatprep.subr.mxu0 0.0
    %115 = vmatpush2.msra.mxu0 0.0
    %116 = vmatprep.mubr.f32.mxu0 0.0
    %117 = vmatmul.mubr.f32.gmra.mxu0 %v43
    %v118 = vpop.f32.mrf.mxu0
    %v119 = vadd.f32 %v40, %v118
    %v120 = vpop.f32.mrf.mxu0
    %121 = vmatprep.mubr.f32.mxu0 0.0
    %122 = vmatmul.mubr.f32.gmra.mxu0 %v46
    %v123 = vpop.f32.mrf.mxu0
    %v124 = vadd.f32 %v40, %v123
    %v125 = vpop.f32.mrf.mxu0
    %126 = vdwg.mxu0
    %v127 = vmax.f32 %v119, 0.0
    %v128 = vmax.f32 %v124, 0.0
    %v129 = vpack.c.bf16 %v128, %v127
    %v130 = vld [vmem:[%s2] sm:$0xff]
    %v131 = vld [vmem:[%s2 + $0x8] sm:$0xff]
    %v132 = vld [vmem:[%s2 + $0x10] sm:$0xff]
    %v133 = vld [vmem:[%s2 + $0x18] sm:$0xff]
    %v134 = vld [vmem:[%s2 + $0x20] sm:$0xff]
    %v135 = vld [vmem:[%s2 + $0x28] sm:$0xff]
    %v136 = vld [vmem:[%s2 + $0x30] sm:$0xff]
    %v137 = vld [vmem:[%s2 + $0x38] sm:$0xff]
    %v138 = vld [vmem:[%s2 + $0x40] sm:$0xff]
    %v139 = vld [vmem:[%s2 + $0x48] sm:$0xff]
    %v140 = vld [vmem:[%s2 + $0x50] sm:$0xff]
    %v141 = vld [vmem:[%s2 + $0x58] sm:$0xff]
    %v142 = vld [vmem:[%s2 + $0x60] sm:$0xff]
    %v143 = vld [vmem:[%s2 + $0x68] sm:$0xff]
    %v144 = vld [vmem:[%s2 + $0x70] sm:$0xff]
    %v145 = vld [vmem:[%s2 + $0x78] sm:$0xff]
    %v146 = vld [vmem:[%s2 + $0x80] sm:$0xff]
    %v147 = vld [vmem:[%s2 + $0x88] sm:$0xff]
    %v148 = vld [vmem:[%s2 + $0x90] sm:$0xff]
    %v149 = vld [vmem:[%s2 + $0x98] sm:$0xff]
    %v150 = vld [vmem:[%s2 + $0xa0] sm:$0xff]
    %v151 = vld [vmem:[%s2 + $0xa8] sm:$0xff]
    %v152 = vld [vmem:[%s2 + $0xb0] sm:$0xff]
    %v153 = vld [vmem:[%s2 + $0xb8] sm:$0xff]
    %v154 = vld [vmem:[%s2 + $0xc0] sm:$0xff]
    %v155 = vld [vmem:[%s2 + $0xc8] sm:$0xff]
    %v156 = vld [vmem:[%s2 + $0xd0] sm:$0xff]
    %v157 = vld [vmem:[%s2 + $0xd8] sm:$0xff]
    %v158 = vld [vmem:[%s2 + $0xe0] sm:$0xff]
    %v159 = vld [vmem:[%s2 + $0xe8] sm:$0xff]
    %v160 = vld [vmem:[%s2 + $0xf0] sm:$0xff]
    %v161 = vld [vmem:[%s2 + $0xf8] sm:$0xff]
    %v162 = vld [vmem:[%s2 + $0x100] sm:$0xff]
    %v163 = vld [vmem:[%s2 + $0x108] sm:$0xff]
    %v164 = vld [vmem:[%s2 + $0x110] sm:$0xff]
    %v165 = vld [vmem:[%s2 + $0x118] sm:$0xff]
    %v166 = vld [vmem:[%s2 + $0x120] sm:$0xff]
    %v167 = vld [vmem:[%s2 + $0x128] sm:$0xff]
    %v168 = vld [vmem:[%s2 + $0x130] sm:$0xff]
    %v169 = vld [vmem:[%s2 + $0x138] sm:$0xff]
    %v170 = vld [vmem:[%s2 + $0x140] sm:$0xff]
    %v171 = vld [vmem:[%s2 + $0x148] sm:$0xff]
    %v172 = vld [vmem:[%s2 + $0x150] sm:$0xff]
    %v173 = vld [vmem:[%s2 + $0x158] sm:$0xff]
    %v174 = vld [vmem:[%s2 + $0x160] sm:$0xff]
    %v175 = vld [vmem:[%s2 + $0x168] sm:$0xff]
    %v176 = vld [vmem:[%s2 + $0x170] sm:$0xff]
    %v177 = vld [vmem:[%s2 + $0x178] sm:$0xff]
    %v226 = vunpack.c.l.b16 %v130
    %v227 = vunpack.c.h.b16 %v130
    %v228 = vunpack.c.l.b16 %v131
    %v229 = vunpack.c.h.b16 %v131
    %v230 = vunpack.c.l.b16 %v132
    %v231 = vunpack.c.h.b16 %v132
    %v232 = vunpack.c.l.b16 %v133
    %v233 = vunpack.c.h.b16 %v133
    %v234 = vunpack.c.l.b16 %v134
    %v235 = vunpack.c.h.b16 %v134
    %v236 = vunpack.c.l.b16 %v135
    %v237 = vunpack.c.h.b16 %v135
    %v238 = vunpack.c.l.b16 %v136
    %v239 = vunpack.c.h.b16 %v136
    %v240 = vunpack.c.l.b16 %v137
    %v241 = vunpack.c.h.b16 %v137
    %v242 = vunpack.c.l.b16 %v138
    %v243 = vunpack.c.h.b16 %v138
    %v244 = vunpack.c.l.b16 %v139
    %v245 = vunpack.c.h.b16 %v139
    %v246 = vunpack.c.l.b16 %v140
    %v247 = vunpack.c.h.b16 %v140
    %v248 = vunpack.c.l.b16 %v141
    %v249 = vunpack.c.h.b16 %v141
    %v250 = vunpack.c.l.b16 %v142
    %v251 = vunpack.c.h.b16 %v142
    %v252 = vunpack.c.l.b16 %v143
    %v253 = vunpack.c.h.b16 %v143
    %v254 = vunpack.c.l.b16 %v144
    %v255 = vunpack.c.h.b16 %v144
    %v256 = vunpack.c.l.b16 %v145
    %v257 = vunpack.c.h.b16 %v145
    %v258 = vunpack.c.l.b16 %v146
    %v259 = vunpack.c.h.b16 %v146
    %v260 = vunpack.c.l.b16 %v147
    %v261 = vunpack.c.h.b16 %v147
    %v262 = vunpack.c.l.b16 %v148
    %v263 = vunpack.c.h.b16 %v148
    %v264 = vunpack.c.l.b16 %v149
    %v265 = vunpack.c.h.b16 %v149
    %v266 = vunpack.c.l.b16 %v150
    %v267 = vunpack.c.h.b16 %v150
    %v268 = vunpack.c.l.b16 %v151
    %v269 = vunpack.c.h.b16 %v151
    %v270 = vunpack.c.l.b16 %v152
    %v271 = vunpack.c.h.b16 %v152
    %v272 = vunpack.c.l.b16 %v153
    %v273 = vunpack.c.h.b16 %v153
    %v274 = vunpack.c.l.b16 %v154
    %v275 = vunpack.c.h.b16 %v154
    %v276 = vunpack.c.l.b16 %v155
    %v277 = vunpack.c.h.b16 %v155
    %v278 = vunpack.c.l.b16 %v156
    %v279 = vunpack.c.h.b16 %v156
    %v280 = vunpack.c.l.b16 %v157
    %v281 = vunpack.c.h.b16 %v157
    %v282 = vunpack.c.l.b16 %v158
    %v283 = vunpack.c.h.b16 %v158
    %v284 = vunpack.c.l.b16 %v159
    %v285 = vunpack.c.h.b16 %v159
    %v286 = vunpack.c.l.b16 %v160
    %v287 = vunpack.c.h.b16 %v160
    %v288 = vunpack.c.l.b16 %v161
    %v289 = vunpack.c.h.b16 %v161
    %v290 = vunpack.c.l.b16 %v162
    %v291 = vunpack.c.h.b16 %v162
    %v292 = vunpack.c.l.b16 %v163
    %v293 = vunpack.c.h.b16 %v163
    %v294 = vunpack.c.l.b16 %v164
    %v295 = vunpack.c.h.b16 %v164
    %v296 = vunpack.c.l.b16 %v165
    %v297 = vunpack.c.h.b16 %v165
    %v298 = vunpack.c.l.b16 %v166
    %v299 = vunpack.c.h.b16 %v166
    %v300 = vunpack.c.l.b16 %v167
    %v301 = vunpack.c.h.b16 %v167
    %v302 = vunpack.c.l.b16 %v168
    %v303 = vunpack.c.h.b16 %v168
    %v304 = vunpack.c.l.b16 %v169
    %v305 = vunpack.c.h.b16 %v169
    %v306 = vunpack.c.l.b16 %v170
    %v307 = vunpack.c.h.b16 %v170
    %v308 = vunpack.c.l.b16 %v171
    %v309 = vunpack.c.h.b16 %v171
    %v310 = vunpack.c.l.b16 %v172
    %v311 = vunpack.c.h.b16 %v172
    %v312 = vunpack.c.l.b16 %v173
    %v313 = vunpack.c.h.b16 %v173
    %v314 = vunpack.c.l.b16 %v174
    %v315 = vunpack.c.h.b16 %v174
    %v316 = vunpack.c.l.b16 %v175
    %v317 = vunpack.c.h.b16 %v175
    %v318 = vunpack.c.l.b16 %v176
    %v319 = vunpack.c.h.b16 %v176
    %v320 = vunpack.c.l.b16 %v177
    %v321 = vunpack.c.h.b16 %v177
    %v322 = vpack.c.b16 %v250, %v226
    %v323 = vpack.c.b16 %v251, %v227
    %v324 = vpack.c.b16 %v252, %v228
    %v325 = vpack.c.b16 %v253, %v229
    %v326 = vpack.c.b16 %v254, %v230
    %v327 = vpack.c.b16 %v255, %v231
    %v328 = vpack.c.b16 %v256, %v232
    %v329 = vpack.c.b16 %v257, %v233
    %v330 = vpack.c.b16 %v258, %v234
    %v331 = vpack.c.b16 %v259, %v235
    %v332 = vpack.c.b16 %v260, %v236
    %v333 = vpack.c.b16 %v261, %v237
    %v334 = vpack.c.b16 %v262, %v238
    %v335 = vpack.c.b16 %v263, %v239
    %v336 = vpack.c.b16 %v264, %v240
    %v337 = vpack.c.b16 %v265, %v241
    %v338 = vpack.c.b16 %v266, %v242
    %v339 = vpack.c.b16 %v267, %v243
    %v340 = vpack.c.b16 %v268, %v244
    %v341 = vpack.c.b16 %v269, %v245
    %v342 = vpack.c.b16 %v270, %v246
    %v343 = vpack.c.b16 %v271, %v247
    %v344 = vpack.c.b16 %v272, %v248
    %v345 = vpack.c.b16 %v273, %v249
    %v346 = vpack.c.b16 %v298, %v274
    %v347 = vpack.c.b16 %v299, %v275
    %v348 = vpack.c.b16 %v300, %v276
    %v349 = vpack.c.b16 %v301, %v277
    %v350 = vpack.c.b16 %v302, %v278
    %v351 = vpack.c.b16 %v303, %v279
    %v352 = vpack.c.b16 %v304, %v280
    %v353 = vpack.c.b16 %v305, %v281
    %v354 = vpack.c.b16 %v306, %v282
    %v355 = vpack.c.b16 %v307, %v283
    %v356 = vpack.c.b16 %v308, %v284
    %v357 = vpack.c.b16 %v309, %v285
    %v358 = vpack.c.b16 %v310, %v286
    %v359 = vpack.c.b16 %v311, %v287
    %v360 = vpack.c.b16 %v312, %v288
    %v361 = vpack.c.b16 %v313, %v289
    %v362 = vpack.c.b16 %v314, %v290
    %v363 = vpack.c.b16 %v315, %v291
    %v364 = vpack.c.b16 %v316, %v292
    %v365 = vpack.c.b16 %v317, %v293
    %v366 = vpack.c.b16 %v318, %v294
    %v367 = vpack.c.b16 %v319, %v295
    %v368 = vpack.c.b16 %v320, %v296
    %v369 = vpack.c.b16 %v321, %v297
    %vm418 = vcmask 261120
    %v420 = vsel %vm418, %v129, 0
    %422 = vmatprep.subr.bf16.mxu0 0
    %423 = vmatpush1.bf16.msra.mxu0 0
    %424 = vmatprep.subr.bf16.mxu0 0
    %425 = vmatpush1.bf16.msra.mxu0 0
    %426 = vmatprep.subr.bf16.mxu0 0
    %427 = vmatpush1.bf16.msra.mxu0 0
    %428 = vmatprep.subr.bf16.mxu0 0
    %429 = vmatpush1.bf16.msra.mxu0 0
    %430 = vmatprep.subr.bf16.mxu0 0
    %431 = vmatpush1.bf16.msra.mxu0 0
    %432 = vmatprep.subr.bf16.mxu0 0
    %433 = vmatpush1.bf16.msra.mxu0 0
    %434 = vmatprep.subr.bf16.mxu0 %v347
    %435 = vmatpush1.bf16.msra.mxu0 %v346
    %436 = vmatprep.subr.bf16.mxu0 %v323
    %437 = vmatpush1.bf16.msra.mxu0 %v322
    %438 = vmatprep.subr.bf16.mxu0 0
    %439 = vmatpush2.bf16.msra.mxu0 0
    %440 = vmatprep.subr.bf16.mxu0 0
    %441 = vmatpush2.bf16.msra.mxu0 0
    %442 = vmatprep.subr.bf16.mxu0 0
    %443 = vmatpush2.bf16.msra.mxu0 0
    %444 = vmatprep.subr.bf16.mxu0 0
    %445 = vmatpush2.bf16.msra.mxu0 0
    %446 = vmatprep.subr.bf16.mxu0 0
    %447 = vmatpush2.bf16.msra.mxu0 0
    %448 = vmatprep.subr.bf16.mxu0 0
    %449 = vmatpush2.bf16.msra.mxu0 0
    %450 = vmatprep.subr.bf16.mxu0 0
    %451 = vmatpush2.bf16.msra.mxu0 0
    %452 = vmatprep.subr.bf16.mxu0 0
    %453 = vmatpush2.bf16.msra.mxu0 0
    %454 = vmatprep.mubr.bf16.mxu0 0
    %455 = vmatmul.mubr.bf16.gmra.mxu0 %v420
    %v456 = vpop.f32.mrf.mxu0
    %v457 = vadd.f32 0.0, %v456
    %v458 = vpop.f32.mrf.mxu0
    %v459 = vadd.f32 0.0, %v458
    %v460 = vpop.f32.mrf.mxu0
    %v461 = vadd.f32 0.0, %v460
    %v462 = vpop.f32.mrf.mxu0
    %v463 = vadd.f32 0.0, %v462
    %464 = vdwg.mxu0
    %465 = vmatprep.subr.bf16.mxu0 0
    %466 = vmatpush1.bf16.msra.mxu0 0
    %467 = vmatprep.subr.bf16.mxu0 0
    %468 = vmatpush1.bf16.msra.mxu0 0
    %469 = vmatprep.subr.bf16.mxu0 0
    %470 = vmatpush1.bf16.msra.mxu0 0
    %471 = vmatprep.subr.bf16.mxu0 0
    %472 = vmatpush1.bf16.msra.mxu0 0
    %473 = vmatprep.subr.bf16.mxu0 0
    %474 = vmatpush1.bf16.msra.mxu0 0
    %475 = vmatprep.subr.bf16.mxu0 0
    %476 = vmatpush1.bf16.msra.mxu0 0
    %477 = vmatprep.subr.bf16.mxu0 %v349
    %478 = vmatpush1.bf16.msra.mxu0 %v348
    %479 = vmatprep.subr.bf16.mxu0 %v325
    %480 = vmatpush1.bf16.msra.mxu0 %v324
    %481 = vmatprep.subr.bf16.mxu0 0
    %482 = vmatpush2.bf16.msra.mxu0 0
    %483 = vmatprep.subr.bf16.mxu0 0
    %484 = vmatpush2.bf16.msra.mxu0 0
    %485 = vmatprep.subr.bf16.mxu0 0
    %486 = vmatpush2.bf16.msra.mxu0 0
    %487 = vmatprep.subr.bf16.mxu0 0
    %488 = vmatpush2.bf16.msra.mxu0 0
    %489 = vmatprep.subr.bf16.mxu0 0
    %490 = vmatpush2.bf16.msra.mxu0 0
    %491 = vmatprep.subr.bf16.mxu0 0
    %492 = vmatpush2.bf16.msra.mxu0 0
    %493 = vmatprep.subr.bf16.mxu0 0
    %494 = vmatpush2.bf16.msra.mxu0 0
    %495 = vmatprep.subr.bf16.mxu0 0
    %496 = vmatpush2.bf16.msra.mxu0 0
    %497 = vmatprep.mubr.bf16.mxu0 0
    %498 = vmatmul.mubr.bf16.gmra.mxu0 %v420
    %v499 = vpop.f32.mrf.mxu0
    %v500 = vadd.f32 0.0, %v499
    %v501 = vpop.f32.mrf.mxu0
    %v502 = vadd.f32 0.0, %v501
    %v503 = vpop.f32.mrf.mxu0
    %v504 = vadd.f32 0.0, %v503
    %v505 = vpop.f32.mrf.mxu0
    %v506 = vadd.f32 0.0, %v505
    %507 = vdwg.mxu0
    %508 = vmatprep.subr.bf16.mxu0 0
    %509 = vmatpush1.bf16.msra.mxu0 0
    %510 = vmatprep.subr.bf16.mxu0 0
    %511 = vmatpush1.bf16.msra.mxu0 0
    %512 = vmatprep.subr.bf16.mxu0 0
    %513 = vmatpush1.bf16.msra.mxu0 0
    %514 = vmatprep.subr.bf16.mxu0 0
    %515 = vmatpush1.bf16.msra.mxu0 0
    %516 = vmatprep.subr.bf16.mxu0 0
    %517 = vmatpush1.bf16.msra.mxu0 0
    %518 = vmatprep.subr.bf16.mxu0 0
    %519 = vmatpush1.bf16.msra.mxu0 0
    %520 = vmatprep.subr.bf16.mxu0 %v351
    %521 = vmatpush1.bf16.msra.mxu0 %v350
    %522 = vmatprep.subr.bf16.mxu0 %v327
    %523 = vmatpush1.bf16.msra.mxu0 %v326
    %524 = vmatprep.subr.bf16.mxu0 0
    %525 = vmatpush2.bf16.msra.mxu0 0
    %526 = vmatprep.subr.bf16.mxu0 0
    %527 = vmatpush2.bf16.msra.mxu0 0
    %528 = vmatprep.subr.bf16.mxu0 0
    %529 = vmatpush2.bf16.msra.mxu0 0
    %530 = vmatprep.subr.bf16.mxu0 0
    %531 = vmatpush2.bf16.msra.mxu0 0
    %532 = vmatprep.subr.bf16.mxu0 0
    %533 = vmatpush2.bf16.msra.mxu0 0
    %534 = vmatprep.subr.bf16.mxu0 0
    %535 = vmatpush2.bf16.msra.mxu0 0
    %536 = vmatprep.subr.bf16.mxu0 0
    %537 = vmatpush2.bf16.msra.mxu0 0
    %538 = vmatprep.subr.bf16.mxu0 0
    %539 = vmatpush2.bf16.msra.mxu0 0
    %540 = vmatprep.mubr.bf16.mxu0 0
    %541 = vmatmul.mubr.bf16.gmra.mxu0 %v420
    %v542 = vpop.f32.mrf.mxu0
    %v543 = vadd.f32 0.0, %v542
    %v544 = vpop.f32.mrf.mxu0
    %v545 = vadd.f32 0.0, %v544
    %v546 = vpop.f32.mrf.mxu0
    %v547 = vadd.f32 0.0, %v546
    %v548 = vpop.f32.mrf.mxu0
    %v549 = vadd.f32 0.0, %v548
    %550 = vdwg.mxu0
    %551 = vmatprep.subr.bf16.mxu0 0
    %552 = vmatpush1.bf16.msra.mxu0 0
    %553 = vmatprep.subr.bf16.mxu0 0
    %554 = vmatpush1.bf16.msra.mxu0 0
    %555 = vmatprep.subr.bf16.mxu0 0
    %556 = vmatpush1.bf16.msra.mxu0 0
    %557 = vmatprep.subr.bf16.mxu0 0
    %558 = vmatpush1.bf16.msra.mxu0 0
    %559 = vmatprep.subr.bf16.mxu0 0
    %560 = vmatpush1.bf16.msra.mxu0 0
    %561 = vmatprep.subr.bf16.mxu0 0
    %562 = vmatpush1.bf16.msra.mxu0 0
    %563 = vmatprep.subr.bf16.mxu0 %v353
    %564 = vmatpush1.bf16.msra.mxu0 %v352
    %565 = vmatprep.subr.bf16.mxu0 %v329
    %566 = vmatpush1.bf16.msra.mxu0 %v328
    %567 = vmatprep.subr.bf16.mxu0 0
    %568 = vmatpush2.bf16.msra.mxu0 0
    %569 = vmatprep.subr.bf16.mxu0 0
    %570 = vmatpush2.bf16.msra.mxu0 0
    %571 = vmatprep.subr.bf16.mxu0 0
    %572 = vmatpush2.bf16.msra.mxu0 0
    %573 = vmatprep.subr.bf16.mxu0 0
    %574 = vmatpush2.bf16.msra.mxu0 0
    %575 = vmatprep.subr.bf16.mxu0 0
    %576 = vmatpush2.bf16.msra.mxu0 0
    %577 = vmatprep.subr.bf16.mxu0 0
    %578 = vmatpush2.bf16.msra.mxu0 0
    %579 = vmatprep.subr.bf16.mxu0 0
    %580 = vmatpush2.bf16.msra.mxu0 0
    %581 = vmatprep.subr.bf16.mxu0 0
    %582 = vmatpush2.bf16.msra.mxu0 0
    %583 = vmatprep.mubr.bf16.mxu0 0
    %584 = vmatmul.mubr.bf16.gmra.mxu0 %v420
    %v585 = vpop.f32.mrf.mxu0
    %v586 = vadd.f32 0.0, %v585
    %v587 = vpop.f32.mrf.mxu0
    %v588 = vadd.f32 0.0, %v587
    %v589 = vpop.f32.mrf.mxu0
    %v590 = vadd.f32 0.0, %v589
    %v591 = vpop.f32.mrf.mxu0
    %v592 = vadd.f32 0.0, %v591
    %593 = vdwg.mxu0
    %594 = vmatprep.subr.bf16.mxu0 0
    %595 = vmatpush1.bf16.msra.mxu0 0
    %596 = vmatprep.subr.bf16.mxu0 0
    %597 = vmatpush1.bf16.msra.mxu0 0
    %598 = vmatprep.subr.bf16.mxu0 0
    %599 = vmatpush1.bf16.msra.mxu0 0
    %600 = vmatprep.subr.bf16.mxu0 0
    %601 = vmatpush1.bf16.msra.mxu0 0
    %602 = vmatprep.subr.bf16.mxu0 0
    %603 = vmatpush1.bf16.msra.mxu0 0
    %604 = vmatprep.subr.bf16.mxu0 0
    %605 = vmatpush1.bf16.msra.mxu0 0
    %606 = vmatprep.subr.bf16.mxu0 %v355
    %607 = vmatpush1.bf16.msra.mxu0 %v354
    %608 = vmatprep.subr.bf16.mxu0 %v331
    %609 = vmatpush1.bf16.msra.mxu0 %v330
    %610 = vmatprep.subr.bf16.mxu0 0
    %611 = vmatpush2.bf16.msra.mxu0 0
    %612 = vmatprep.subr.bf16.mxu0 0
    %613 = vmatpush2.bf16.msra.mxu0 0
    %614 = vmatprep.subr.bf16.mxu0 0
    %615 = vmatpush2.bf16.msra.mxu0 0
    %616 = vmatprep.subr.bf16.mxu0 0
    %617 = vmatpush2.bf16.msra.mxu0 0
    %618 = vmatprep.subr.bf16.mxu0 0
    %619 = vmatpush2.bf16.msra.mxu0 0
    %620 = vmatprep.subr.bf16.mxu0 0
    %621 = vmatpush2.bf16.msra.mxu0 0
    %622 = vmatprep.subr.bf16.mxu0 0
    %623 = vmatpush2.bf16.msra.mxu0 0
    %624 = vmatprep.subr.bf16.mxu0 0
    %625 = vmatpush2.bf16.msra.mxu0 0
    %626 = vmatprep.mubr.bf16.mxu0 0
    %627 = vmatmul.mubr.bf16.gmra.mxu0 %v420
    %v628 = vpop.f32.mrf.mxu0
    %v629 = vadd.f32 0.0, %v628
    %v630 = vpop.f32.mrf.mxu0
    %v631 = vadd.f32 0.0, %v630
    %v632 = vpop.f32.mrf.mxu0
    %v633 = vadd.f32 0.0, %v632
    %v634 = vpop.f32.mrf.mxu0
    %v635 = vadd.f32 0.0, %v634
    %636 = vdwg.mxu0
    %637 = vmatprep.subr.bf16.mxu0 0
    %638 = vmatpush1.bf16.msra.mxu0 0
    %639 = vmatprep.subr.bf16.mxu0 0
    %640 = vmatpush1.bf16.msra.mxu0 0
    %641 = vmatprep.subr.bf16.mxu0 0
    %642 = vmatpush1.bf16.msra.mxu0 0
    %643 = vmatprep.subr.bf16.mxu0 0
    %644 = vmatpush1.bf16.msra.mxu0 0
    %645 = vmatprep.subr.bf16.mxu0 0
    %646 = vmatpush1.bf16.msra.mxu0 0
    %647 = vmatprep.subr.bf16.mxu0 0
    %648 = vmatpush1.bf16.msra.mxu0 0
    %649 = vmatprep.subr.bf16.mxu0 %v357
    %650 = vmatpush1.bf16.msra.mxu0 %v356
    %651 = vmatprep.subr.bf16.mxu0 %v333
    %652 = vmatpush1.bf16.msra.mxu0 %v332
    %653 = vmatprep.subr.bf16.mxu0 0
    %654 = vmatpush2.bf16.msra.mxu0 0
    %655 = vmatprep.subr.bf16.mxu0 0
    %656 = vmatpush2.bf16.msra.mxu0 0
    %657 = vmatprep.subr.bf16.mxu0 0
    %658 = vmatpush2.bf16.msra.mxu0 0
    %659 = vmatprep.subr.bf16.mxu0 0
    %660 = vmatpush2.bf16.msra.mxu0 0
    %661 = vmatprep.subr.bf16.mxu0 0
    %662 = vmatpush2.bf16.msra.mxu0 0
    %663 = vmatprep.subr.bf16.mxu0 0
    %664 = vmatpush2.bf16.msra.mxu0 0
    %665 = vmatprep.subr.bf16.mxu0 0
    %666 = vmatpush2.bf16.msra.mxu0 0
    %667 = vmatprep.subr.bf16.mxu0 0
    %668 = vmatpush2.bf16.msra.mxu0 0
    %669 = vmatprep.mubr.bf16.mxu0 0
    %670 = vmatmul.mubr.bf16.gmra.mxu0 %v420
    %v671 = vpop.f32.mrf.mxu0
    %v672 = vadd.f32 0.0, %v671
    %v673 = vpop.f32.mrf.mxu0
    %v674 = vadd.f32 0.0, %v673
    %v675 = vpop.f32.mrf.mxu0
    %v676 = vadd.f32 0.0, %v675
    %v677 = vpop.f32.mrf.mxu0
    %v678 = vadd.f32 0.0, %v677
    %679 = vdwg.mxu0
    %680 = vmatprep.subr.bf16.mxu0 0
    %681 = vmatpush1.bf16.msra.mxu0 0
    %682 = vmatprep.subr.bf16.mxu0 0
    %683 = vmatpush1.bf16.msra.mxu0 0
    %684 = vmatprep.subr.bf16.mxu0 0
    %685 = vmatpush1.bf16.msra.mxu0 0
    %686 = vmatprep.subr.bf16.mxu0 0
    %687 = vmatpush1.bf16.msra.mxu0 0
    %688 = vmatprep.subr.bf16.mxu0 0
    %689 = vmatpush1.bf16.msra.mxu0 0
    %690 = vmatprep.subr.bf16.mxu0 0
    %691 = vmatpush1.bf16.msra.mxu0 0
    %692 = vmatprep.subr.bf16.mxu0 %v359
    %693 = vmatpush1.bf16.msra.mxu0 %v358
    %694 = vmatprep.subr.bf16.mxu0 %v335
    %695 = vmatpush1.bf16.msra.mxu0 %v334
    %696 = vmatprep.subr.bf16.mxu0 0
    %697 = vmatpush2.bf16.msra.mxu0 0
    %698 = vmatprep.subr.bf16.mxu0 0
    %699 = vmatpush2.bf16.msra.mxu0 0
    %700 = vmatprep.subr.bf16.mxu0 0
    %701 = vmatpush2.bf16.msra.mxu0 0
    %702 = vmatprep.subr.bf16.mxu0 0
    %703 = vmatpush2.bf16.msra.mxu0 0
    %704 = vmatprep.subr.bf16.mxu0 0
    %705 = vmatpush2.bf16.msra.mxu0 0
    %706 = vmatprep.subr.bf16.mxu0 0
    %707 = vmatpush2.bf16.msra.mxu0 0
    %708 = vmatprep.subr.bf16.mxu0 0
    %709 = vmatpush2.bf16.msra.mxu0 0
    %710 = vmatprep.subr.bf16.mxu0 0
    %711 = vmatpush2.bf16.msra.mxu0 0
    %712 = vmatprep.mubr.bf16.mxu0 0
    %713 = vmatmul.mubr.bf16.gmra.mxu0 %v420
    %v714 = vpop.f32.mrf.mxu0
    %v715 = vadd.f32 0.0, %v714
    %v716 = vpop.f32.mrf.mxu0
    %v717 = vadd.f32 0.0, %v716
    %v718 = vpop.f32.mrf.mxu0
    %v719 = vadd.f32 0.0, %v718
    %v720 = vpop.f32.mrf.mxu0
    %v721 = vadd.f32 0.0, %v720
    %722 = vdwg.mxu0
    %723 = vmatprep.subr.bf16.mxu0 0
    %724 = vmatpush1.bf16.msra.mxu0 0
    %725 = vmatprep.subr.bf16.mxu0 0
    %726 = vmatpush1.bf16.msra.mxu0 0
    %727 = vmatprep.subr.bf16.mxu0 0
    %728 = vmatpush1.bf16.msra.mxu0 0
    %729 = vmatprep.subr.bf16.mxu0 0
    %730 = vmatpush1.bf16.msra.mxu0 0
    %731 = vmatprep.subr.bf16.mxu0 0
    %732 = vmatpush1.bf16.msra.mxu0 0
    %733 = vmatprep.subr.bf16.mxu0 0
    %734 = vmatpush1.bf16.msra.mxu0 0
    %735 = vmatprep.subr.bf16.mxu0 %v361
    %736 = vmatpush1.bf16.msra.mxu0 %v360
    %737 = vmatprep.subr.bf16.mxu0 %v337
    %738 = vmatpush1.bf16.msra.mxu0 %v336
    %739 = vmatprep.subr.bf16.mxu0 0
    %740 = vmatpush2.bf16.msra.mxu0 0
    %741 = vmatprep.subr.bf16.mxu0 0
    %742 = vmatpush2.bf16.msra.mxu0 0
    %743 = vmatprep.subr.bf16.mxu0 0
    %744 = vmatpush2.bf16.msra.mxu0 0
    %745 = vmatprep.subr.bf16.mxu0 0
    %746 = vmatpush2.bf16.msra.mxu0 0
    %747 = vmatprep.subr.bf16.mxu0 0
    %748 = vmatpush2.bf16.msra.mxu0 0
    %749 = vmatprep.subr.bf16.mxu0 0
    %750 = vmatpush2.bf16.msra.mxu0 0
    %751 = vmatprep.subr.bf16.mxu0 0
    %752 = vmatpush2.bf16.msra.mxu0 0
    %753 = vmatprep.subr.bf16.mxu0 0
    %754 = vmatpush2.bf16.msra.mxu0 0
    %755 = vmatprep.mubr.bf16.mxu0 0
    %756 = vmatmul.mubr.bf16.gmra.mxu0 %v420
    %v757 = vpop.f32.mrf.mxu0
    %v758 = vadd.f32 0.0, %v757
    %v759 = vpop.f32.mrf.mxu0
    %v760 = vadd.f32 0.0, %v759
    %v761 = vpop.f32.mrf.mxu0
    %v762 = vadd.f32 0.0, %v761
    %v763 = vpop.f32.mrf.mxu0
    %v764 = vadd.f32 0.0, %v763
    %765 = vdwg.mxu0
    %766 = vmatprep.subr.bf16.mxu0 0
    %767 = vmatpush1.bf16.msra.mxu0 0
    %768 = vmatprep.subr.bf16.mxu0 0
    %769 = vmatpush1.bf16.msra.mxu0 0
    %770 = vmatprep.subr.bf16.mxu0 0
    %771 = vmatpush1.bf16.msra.mxu0 0
    %772 = vmatprep.subr.bf16.mxu0 0
    %773 = vmatpush1.bf16.msra.mxu0 0
    %774 = vmatprep.subr.bf16.mxu0 0
    %775 = vmatpush1.bf16.msra.mxu0 0
    %776 = vmatprep.subr.bf16.mxu0 0
    %777 = vmatpush1.bf16.msra.mxu0 0
    %778 = vmatprep.subr.bf16.mxu0 %v363
    %779 = vmatpush1.bf16.msra.mxu0 %v362
    %780 = vmatprep.subr.bf16.mxu0 %v339
    %781 = vmatpush1.bf16.msra.mxu0 %v338
    %782 = vmatprep.subr.bf16.mxu0 0
    %783 = vmatpush2.bf16.msra.mxu0 0
    %784 = vmatprep.subr.bf16.mxu0 0
    %785 = vmatpush2.bf16.msra.mxu0 0
    %786 = vmatprep.subr.bf16.mxu0 0
    %787 = vmatpush2.bf16.msra.mxu0 0
    %788 = vmatprep.subr.bf16.mxu0 0
    %789 = vmatpush2.bf16.msra.mxu0 0
    %790 = vmatprep.subr.bf16.mxu0 0
    %791 = vmatpush2.bf16.msra.mxu0 0
    %792 = vmatprep.subr.bf16.mxu0 0
    %793 = vmatpush2.bf16.msra.mxu0 0
    %794 = vmatprep.subr.bf16.mxu0 0
    %795 = vmatpush2.bf16.msra.mxu0 0
    %796 = vmatprep.subr.bf16.mxu0 0
    %797 = vmatpush2.bf16.msra.mxu0 0
    %798 = vmatprep.mubr.bf16.mxu0 0
    %799 = vmatmul.mubr.bf16.gmra.mxu0 %v420
    %v800 = vpop.f32.mrf.mxu0
    %v801 = vadd.f32 0.0, %v800
    %v802 = vpop.f32.mrf.mxu0
    %v803 = vadd.f32 0.0, %v802
    %v804 = vpop.f32.mrf.mxu0
    %v805 = vadd.f32 0.0, %v804
    %v806 = vpop.f32.mrf.mxu0
    %v807 = vadd.f32 0.0, %v806
    %808 = vdwg.mxu0
    %809 = vmatprep.subr.bf16.mxu0 0
    %810 = vmatpush1.bf16.msra.mxu0 0
    %811 = vmatprep.subr.bf16.mxu0 0
    %812 = vmatpush1.bf16.msra.mxu0 0
    %813 = vmatprep.subr.bf16.mxu0 0
    %814 = vmatpush1.bf16.msra.mxu0 0
    %815 = vmatprep.subr.bf16.mxu0 0
    %816 = vmatpush1.bf16.msra.mxu0 0
    %817 = vmatprep.subr.bf16.mxu0 0
    %818 = vmatpush1.bf16.msra.mxu0 0
    %819 = vmatprep.subr.bf16.mxu0 0
    %820 = vmatpush1.bf16.msra.mxu0 0
    %821 = vmatprep.subr.bf16.mxu0 %v365
    %822 = vmatpush1.bf16.msra.mxu0 %v364
    %823 = vmatprep.subr.bf16.mxu0 %v341
    %824 = vmatpush1.bf16.msra.mxu0 %v340
    %825 = vmatprep.subr.bf16.mxu0 0
    %826 = vmatpush2.bf16.msra.mxu0 0
    %827 = vmatprep.subr.bf16.mxu0 0
    %828 = vmatpush2.bf16.msra.mxu0 0
    %829 = vmatprep.subr.bf16.mxu0 0
    %830 = vmatpush2.bf16.msra.mxu0 0
    %831 = vmatprep.subr.bf16.mxu0 0
    %832 = vmatpush2.bf16.msra.mxu0 0
    %833 = vmatprep.subr.bf16.mxu0 0
    %834 = vmatpush2.bf16.msra.mxu0 0
    %835 = vmatprep.subr.bf16.mxu0 0
    %836 = vmatpush2.bf16.msra.mxu0 0
    %837 = vmatprep.subr.bf16.mxu0 0
    %838 = vmatpush2.bf16.msra.mxu0 0
    %839 = vmatprep.subr.bf16.mxu0 0
    %840 = vmatpush2.bf16.msra.mxu0 0
    %841 = vmatprep.mubr.bf16.mxu0 0
    %842 = vmatmul.mubr.bf16.gmra.mxu0 %v420
    %v843 = vpop.f32.mrf.mxu0
    %v844 = vadd.f32 0.0, %v843
    %v845 = vpop.f32.mrf.mxu0
    %v846 = vadd.f32 0.0, %v845
    %v847 = vpop.f32.mrf.mxu0
    %v848 = vadd.f32 0.0, %v847
    %v849 = vpop.f32.mrf.mxu0
    %v850 = vadd.f32 0.0, %v849
    %851 = vdwg.mxu0
    %852 = vmatprep.subr.bf16.mxu0 0
    %853 = vmatpush1.bf16.msra.mxu0 0
    %854 = vmatprep.subr.bf16.mxu0 0
    %855 = vmatpush1.bf16.msra.mxu0 0
    %856 = vmatprep.subr.bf16.mxu0 0
    %857 = vmatpush1.bf16.msra.mxu0 0
    %858 = vmatprep.subr.bf16.mxu0 0
    %859 = vmatpush1.bf16.msra.mxu0 0
    %860 = vmatprep.subr.bf16.mxu0 0
    %861 = vmatpush1.bf16.msra.mxu0 0
    %862 = vmatprep.subr.bf16.mxu0 0
    %863 = vmatpush1.bf16.msra.mxu0 0
    %864 = vmatprep.subr.bf16.mxu0 %v367
    %865 = vmatpush1.bf16.msra.mxu0 %v366
    %866 = vmatprep.subr.bf16.mxu0 %v343
    %867 = vmatpush1.bf16.msra.mxu0 %v342
    %868 = vmatprep.subr.bf16.mxu0 0
    %869 = vmatpush2.bf16.msra.mxu0 0
    %870 = vmatprep.subr.bf16.mxu0 0
    %871 = vmatpush2.bf16.msra.mxu0 0
    %872 = vmatprep.subr.bf16.mxu0 0
    %873 = vmatpush2.bf16.msra.mxu0 0
    %874 = vmatprep.subr.bf16.mxu0 0
    %875 = vmatpush2.bf16.msra.mxu0 0
    %876 = vmatprep.subr.bf16.mxu0 0
    %877 = vmatpush2.bf16.msra.mxu0 0
    %878 = vmatprep.subr.bf16.mxu0 0
    %879 = vmatpush2.bf16.msra.mxu0 0
    %880 = vmatprep.subr.bf16.mxu0 0
    %881 = vmatpush2.bf16.msra.mxu0 0
    %882 = vmatprep.subr.bf16.mxu0 0
    %883 = vmatpush2.bf16.msra.mxu0 0
    %884 = vmatprep.mubr.bf16.mxu0 0
    %885 = vmatmul.mubr.bf16.gmra.mxu0 %v420
    %v886 = vpop.f32.mrf.mxu0
    %v887 = vadd.f32 0.0, %v886
    %v888 = vpop.f32.mrf.mxu0
    %v889 = vadd.f32 0.0, %v888
    %v890 = vpop.f32.mrf.mxu0
    %v891 = vadd.f32 0.0, %v890
    %v892 = vpop.f32.mrf.mxu0
    %v893 = vadd.f32 0.0, %v892
    %894 = vdwg.mxu0
    %895 = vmatprep.subr.bf16.mxu0 0
    %896 = vmatpush1.bf16.msra.mxu0 0
    %897 = vmatprep.subr.bf16.mxu0 0
    %898 = vmatpush1.bf16.msra.mxu0 0
    %899 = vmatprep.subr.bf16.mxu0 0
    %900 = vmatpush1.bf16.msra.mxu0 0
    %901 = vmatprep.subr.bf16.mxu0 0
    %902 = vmatpush1.bf16.msra.mxu0 0
    %903 = vmatprep.subr.bf16.mxu0 0
    %904 = vmatpush1.bf16.msra.mxu0 0
    %905 = vmatprep.subr.bf16.mxu0 0
    %906 = vmatpush1.bf16.msra.mxu0 0
    %907 = vmatprep.subr.bf16.mxu0 %v369
    %908 = vmatpush1.bf16.msra.mxu0 %v368
    %909 = vmatprep.subr.bf16.mxu0 %v345
    %910 = vmatpush1.bf16.msra.mxu0 %v344
    %911 = vmatprep.subr.bf16.mxu0 0
    %912 = vmatpush2.bf16.msra.mxu0 0
    %913 = vmatprep.subr.bf16.mxu0 0
    %914 = vmatpush2.bf16.msra.mxu0 0
    %915 = vmatprep.subr.bf16.mxu0 0
    %916 = vmatpush2.bf16.msra.mxu0 0
    %917 = vmatprep.subr.bf16.mxu0 0
    %918 = vmatpush2.bf16.msra.mxu0 0
    %919 = vmatprep.subr.bf16.mxu0 0
    %920 = vmatpush2.bf16.msra.mxu0 0
    %921 = vmatprep.subr.bf16.mxu0 0
    %922 = vmatpush2.bf16.msra.mxu0 0
    %923 = vmatprep.subr.bf16.mxu0 0
    %924 = vmatpush2.bf16.msra.mxu0 0
    %925 = vmatprep.subr.bf16.mxu0 0
    %926 = vmatpush2.bf16.msra.mxu0 0
    %927 = vmatprep.mubr.bf16.mxu0 0
    %928 = vmatmul.mubr.bf16.gmra.mxu0 %v420
    %v929 = vpop.f32.mrf.mxu0
    %v930 = vadd.f32 0.0, %v929
    %v931 = vpop.f32.mrf.mxu0
    %v932 = vadd.f32 0.0, %v931
    %v933 = vpop.f32.mrf.mxu0
    %v934 = vadd.f32 0.0, %v933
    %v935 = vpop.f32.mrf.mxu0
    %v936 = vadd.f32 0.0, %v935
    %937 = vdwg.mxu0
    %v938 = vld [vmem:[%s3] sm:$0xf]
    %v939 = vld [vmem:[%s3 + $0x4] sm:$0xf]
    %v940 = vld [vmem:[%s3 + $0x8] sm:$0xf]
    %v941 = vld [vmem:[%s3 + $0xc] sm:$0xf]
    %v942 = vld [vmem:[%s3 + $0x10] sm:$0xf]
    %v943 = vld [vmem:[%s3 + $0x14] sm:$0xf]
    %v944 = vld [vmem:[%s3 + $0x18] sm:$0xf]
    %v945 = vld [vmem:[%s3 + $0x1c] sm:$0xf]
    %v946 = vld [vmem:[%s3 + $0x20] sm:$0xf]
    %v947 = vld [vmem:[%s3 + $0x24] sm:$0xf]
    %v948 = vld [vmem:[%s3 + $0x28] sm:$0xf]
    %v949 = vld [vmem:[%s3 + $0x2c] sm:$0xf]
    %v950 = vld [vmem:[%s3 + $0x30] sm:$0xf]
    %v951 = vld [vmem:[%s3 + $0x34] sm:$0xf]
    %v952 = vld [vmem:[%s3 + $0x38] sm:$0xf]
    %v953 = vld [vmem:[%s3 + $0x3c] sm:$0xf]
    %v954 = vld [vmem:[%s3 + $0x40] sm:$0xf]
    %v955 = vld [vmem:[%s3 + $0x44] sm:$0xf]
    %v956 = vld [vmem:[%s3 + $0x48] sm:$0xf]
    %v957 = vld [vmem:[%s3 + $0x4c] sm:$0xf]
    %v958 = vld [vmem:[%s3 + $0x50] sm:$0xf]
    %v959 = vld [vmem:[%s3 + $0x54] sm:$0xf]
    %v960 = vld [vmem:[%s3 + $0x58] sm:$0xf]
    %v961 = vld [vmem:[%s3 + $0x5c] sm:$0xf]
    %v962 = vld [vmem:[%s3 + $0x60] sm:$0xf]
    %v963 = vld [vmem:[%s3 + $0x64] sm:$0xf]
    %v964 = vld [vmem:[%s3 + $0x68] sm:$0xf]
    %v965 = vld [vmem:[%s3 + $0x6c] sm:$0xf]
    %v966 = vld [vmem:[%s3 + $0x70] sm:$0xf]
    %v967 = vld [vmem:[%s3 + $0x74] sm:$0xf]
    %v968 = vld [vmem:[%s3 + $0x78] sm:$0xf]
    %v969 = vld [vmem:[%s3 + $0x7c] sm:$0xf]
    %v970 = vld [vmem:[%s3 + $0x80] sm:$0xf]
    %v971 = vld [vmem:[%s3 + $0x84] sm:$0xf]
    %v972 = vld [vmem:[%s3 + $0x88] sm:$0xf]
    %v973 = vld [vmem:[%s3 + $0x8c] sm:$0xf]
    %v974 = vld [vmem:[%s3 + $0x90] sm:$0xf]
    %v975 = vld [vmem:[%s3 + $0x94] sm:$0xf]
    %v976 = vld [vmem:[%s3 + $0x98] sm:$0xf]
    %v977 = vld [vmem:[%s3 + $0x9c] sm:$0xf]
    %v978 = vld [vmem:[%s3 + $0xa0] sm:$0xf]
    %v979 = vld [vmem:[%s3 + $0xa4] sm:$0xf]
    %v980 = vld [vmem:[%s3 + $0xa8] sm:$0xf]
    %v981 = vld [vmem:[%s3 + $0xac] sm:$0xf]
    %v982 = vld [vmem:[%s3 + $0xb0] sm:$0xf]
    %v983 = vld [vmem:[%s3 + $0xb4] sm:$0xf]
    %v984 = vld [vmem:[%s3 + $0xb8] sm:$0xf]
    %v985 = vld [vmem:[%s3 + $0xbc] sm:$0xf]
    %v986 = vld [vmem:[%s3 + $0xc0] sm:$0xf]
    %v987 = vld [vmem:[%s3 + $0xc4] sm:$0xf]
    %v988 = vld [vmem:[%s3 + $0xc8] sm:$0xf]
    %v989 = vld [vmem:[%s3 + $0xcc] sm:$0xf]
    %v990 = vld [vmem:[%s3 + $0xd0] sm:$0xf]
    %v991 = vld [vmem:[%s3 + $0xd4] sm:$0xf]
    %v992 = vld [vmem:[%s3 + $0xd8] sm:$0xf]
    %v993 = vld [vmem:[%s3 + $0xdc] sm:$0xf]
    %v994 = vld [vmem:[%s3 + $0xe0] sm:$0xf]
    %v995 = vld [vmem:[%s3 + $0xe4] sm:$0xf]
    %v996 = vld [vmem:[%s3 + $0xe8] sm:$0xf]
    %v997 = vld [vmem:[%s3 + $0xec] sm:$0xf]
    %v998 = vld [vmem:[%s3 + $0xf0] sm:$0xf]
    %v999 = vld [vmem:[%s3 + $0xf4] sm:$0xf]
    %v1000 = vld [vmem:[%s3 + $0xf8] sm:$0xf]
    %v1001 = vld [vmem:[%s3 + $0xfc] sm:$0xf]
    %v1002 = vld [vmem:[%s3 + $0x100] sm:$0xf]
    %v1003 = vld [vmem:[%s3 + $0x104] sm:$0xf]
    %v1004 = vld [vmem:[%s3 + $0x108] sm:$0xf]
    %v1005 = vld [vmem:[%s3 + $0x10c] sm:$0xf]
    %v1006 = vld [vmem:[%s3 + $0x110] sm:$0xf]
    %v1007 = vld [vmem:[%s3 + $0x114] sm:$0xf]
    %v1008 = vld [vmem:[%s3 + $0x118] sm:$0xf]
    %v1009 = vld [vmem:[%s3 + $0x11c] sm:$0xf]
    %v1010 = vld [vmem:[%s3 + $0x120] sm:$0xf]
    %v1011 = vld [vmem:[%s3 + $0x124] sm:$0xf]
    %v1012 = vld [vmem:[%s3 + $0x128] sm:$0xf]
    %v1013 = vld [vmem:[%s3 + $0x12c] sm:$0xf]
    %v1014 = vld [vmem:[%s3 + $0x130] sm:$0xf]
    %v1015 = vld [vmem:[%s3 + $0x134] sm:$0xf]
    %v1016 = vld [vmem:[%s3 + $0x138] sm:$0xf]
    %v1017 = vld [vmem:[%s3 + $0x13c] sm:$0xf]
    %v1018 = vld [vmem:[%s3 + $0x140] sm:$0xf]
    %v1019 = vld [vmem:[%s3 + $0x144] sm:$0xf]
    %v1020 = vld [vmem:[%s3 + $0x148] sm:$0xf]
    %v1021 = vld [vmem:[%s3 + $0x14c] sm:$0xf]
    %v1022 = vld [vmem:[%s3 + $0x150] sm:$0xf]
    %v1023 = vld [vmem:[%s3 + $0x154] sm:$0xf]
    %v1024 = vld [vmem:[%s3 + $0x158] sm:$0xf]
    %v1025 = vld [vmem:[%s3 + $0x15c] sm:$0xf]
    %v1026 = vld [vmem:[%s3 + $0x160] sm:$0xf]
    %v1027 = vld [vmem:[%s3 + $0x164] sm:$0xf]
    %v1028 = vld [vmem:[%s3 + $0x168] sm:$0xf]
    %v1029 = vld [vmem:[%s3 + $0x16c] sm:$0xf]
    %v1030 = vld [vmem:[%s3 + $0x170] sm:$0xf]
    %v1031 = vld [vmem:[%s3 + $0x174] sm:$0xf]
    %v1032 = vld [vmem:[%s3 + $0x178] sm:$0xf]
    %v1033 = vld [vmem:[%s3 + $0x17c] sm:$0xf]
    %v1034 = vld [vmem:[%s3 + $0x180] sm:$0xf]
    %v1035 = vld [vmem:[%s3 + $0x184] sm:$0xf]
    %v1036 = vld [vmem:[%s3 + $0x188] sm:$0xf]
    %v1037 = vld [vmem:[%s3 + $0x18c] sm:$0xf]
    %v1038 = vld [vmem:[%s3 + $0x190] sm:$0xf]
    %v1039 = vld [vmem:[%s3 + $0x194] sm:$0xf]
    %v1040 = vld [vmem:[%s3 + $0x198] sm:$0xf]
    %v1041 = vld [vmem:[%s3 + $0x19c] sm:$0xf]
    %v1042 = vld [vmem:[%s3 + $0x1a0] sm:$0xf]
    %v1043 = vld [vmem:[%s3 + $0x1a4] sm:$0xf]
    %v1044 = vld [vmem:[%s3 + $0x1a8] sm:$0xf]
    %v1045 = vld [vmem:[%s3 + $0x1ac] sm:$0xf]
    %v1046 = vld [vmem:[%s3 + $0x1b0] sm:$0xf]
    %v1047 = vld [vmem:[%s3 + $0x1b4] sm:$0xf]
    %v1048 = vld [vmem:[%s3 + $0x1b8] sm:$0xf]
    %v1049 = vld [vmem:[%s3 + $0x1bc] sm:$0xf]
    %v1050 = vld [vmem:[%s3 + $0x1c0] sm:$0xf]
    %v1051 = vld [vmem:[%s3 + $0x1c4] sm:$0xf]
    %v1052 = vld [vmem:[%s3 + $0x1c8] sm:$0xf]
    %v1053 = vld [vmem:[%s3 + $0x1cc] sm:$0xf]
    %v1054 = vld [vmem:[%s3 + $0x1d0] sm:$0xf]
    %v1055 = vld [vmem:[%s3 + $0x1d4] sm:$0xf]
    %v1056 = vld [vmem:[%s3 + $0x1d8] sm:$0xf]
    %v1057 = vld [vmem:[%s3 + $0x1dc] sm:$0xf]
    %v1058 = vld [vmem:[%s3 + $0x1e0] sm:$0xf]
    %v1059 = vld [vmem:[%s3 + $0x1e4] sm:$0xf]
    %v1060 = vld [vmem:[%s3 + $0x1e8] sm:$0xf]
    %v1061 = vld [vmem:[%s3 + $0x1ec] sm:$0xf]
    %v1062 = vld [vmem:[%s3 + $0x1f0] sm:$0xf]
    %v1063 = vld [vmem:[%s3 + $0x1f4] sm:$0xf]
    %v1064 = vld [vmem:[%s3 + $0x1f8] sm:$0xf]
    %v1065 = vld [vmem:[%s3 + $0x1fc] sm:$0xf]
    %1066 = vmatprep.subr.mxu0 0.0
    %1067 = vmatpush1.xpose.msra.mxu0 0.0
    %1068 = vmatprep.subr.mxu0 0.0
    %1069 = vmatpush1.xpose.msra.mxu0 0.0
    %1070 = vmatprep.subr.mxu0 0.0
    %1071 = vmatpush1.xpose.msra.mxu0 0.0
    %1072 = vmatprep.subr.mxu0 0.0
    %1073 = vmatpush1.xpose.msra.mxu0 0.0
    %1074 = vmatprep.subr.mxu0 0.0
    %1075 = vmatpush1.xpose.msra.mxu0 0.0
    %1076 = vmatprep.subr.mxu0 0.0
    %1077 = vmatpush1.xpose.msra.mxu0 0.0
    %1078 = vmatprep.subr.mxu0 0.0
    %1079 = vmatpush1.xpose.msra.mxu0 0.0
    %1080 = vmatprep.subr.mxu0 0.0
    %1081 = vmatpush1.xpose.msra.mxu0 0.0
    %1082 = vmatprep.subr.mxu0 0.0
    %1083 = vmatpush1.xpose.msra.mxu0 0.0
    %1084 = vmatprep.subr.mxu0 0.0
    %1085 = vmatpush1.xpose.msra.mxu0 0.0
    %1086 = vmatprep.subr.mxu0 0.0
    %1087 = vmatpush1.xpose.msra.mxu0 0.0
    %1088 = vmatprep.subr.mxu0 0.0
    %1089 = vmatpush1.xpose.msra.mxu0 0.0
    %1090 = vmatprep.subr.mxu0 0.0
    %1091 = vmatpush1.xpose.msra.mxu0 0.0
    %1092 = vmatprep.subr.mxu0 0.0
    %1093 = vmatpush1.xpose.msra.mxu0 0.0
    %1094 = vmatprep.subr.mxu0 0.0
    %1095 = vmatpush1.xpose.msra.mxu0 0.0
    %1096 = vmatprep.subr.mxu0 0.0
    %1097 = vmatpush1.xpose.msra.mxu0 %v629
    %1098 = vmatprep.subr.mxu0 0.0
    %1099 = vmatpush2.xpose.msra.mxu0 0.0
    %1100 = vmatprep.subr.mxu0 0.0
    %1101 = vmatpush2.xpose.msra.mxu0 0.0
    %1102 = vmatprep.subr.mxu0 0.0
    %1103 = vmatpush2.xpose.msra.mxu0 0.0
    %1104 = vmatprep.subr.mxu0 0.0
    %1105 = vmatpush2.xpose.msra.mxu0 0.0
    %1106 = vmatprep.subr.mxu0 0.0
    %1107 = vmatpush2.xpose.msra.mxu0 0.0
    %1108 = vmatprep.subr.mxu0 0.0
    %1109 = vmatpush2.xpose.msra.mxu0 0.0
    %1110 = vmatprep.subr.mxu0 0.0
    %1111 = vmatpush2.xpose.msra.mxu0 0.0
    %1112 = vmatprep.subr.mxu0 0.0
    %1113 = vmatpush2.xpose.msra.mxu0 0.0
    %1114 = vmatprep.subr.mxu0 0.0
    %1115 = vmatpush2.xpose.msra.mxu0 0.0
    %1116 = vmatprep.subr.mxu0 0.0
    %1117 = vmatpush2.xpose.msra.mxu0 0.0
    %1118 = vmatprep.subr.mxu0 0.0
    %1119 = vmatpush2.xpose.msra.mxu0 0.0
    %1120 = vmatprep.subr.mxu0 0.0
    %1121 = vmatpush2.xpose.msra.mxu0 0.0
    %1122 = vmatprep.subr.mxu0 0.0
    %1123 = vmatpush2.xpose.msra.mxu0 0.0
    %1124 = vmatprep.subr.mxu0 0.0
    %1125 = vmatpush2.xpose.msra.mxu0 0.0
    %1126 = vmatprep.subr.mxu0 0.0
    %1127 = vmatpush2.xpose.msra.mxu0 0.0
    %1128 = vmatprep.subr.mxu0 0.0
    %1129 = vmatpush2.xpose.msra.mxu0 0.0
    %1130 = vmatprep.mubr.f32.mxu0 0.0
    %1131 = vmatmul.mubr.f32.gmra.mxu0 %v457
    %v1132 = vpop.f32.mrf.mxu0
    %v1133 = vadd.f32 0.0, %v1132
    %v1134 = vpop.f32.mrf.mxu0
    %1135 = vdwg.mxu0
    %1136 = vmatprep.subr.mxu0 0.0
    %1137 = vmatpush1.xpose.msra.mxu0 0.0
    %1138 = vmatprep.subr.mxu0 0.0
    %1139 = vmatpush1.xpose.msra.mxu0 0.0
    %1140 = vmatprep.subr.mxu0 0.0
    %1141 = vmatpush1.xpose.msra.mxu0 0.0
    %1142 = vmatprep.subr.mxu0 0.0
    %1143 = vmatpush1.xpose.msra.mxu0 0.0
    %1144 = vmatprep.subr.mxu0 0.0
    %1145 = vmatpush1.xpose.msra.mxu0 0.0
    %1146 = vmatprep.subr.mxu0 0.0
    %1147 = vmatpush1.xpose.msra.mxu0 0.0
    %1148 = vmatprep.subr.mxu0 0.0
    %1149 = vmatpush1.xpose.msra.mxu0 0.0
    %1150 = vmatprep.subr.mxu0 0.0
    %1151 = vmatpush1.xpose.msra.mxu0 0.0
    %1152 = vmatprep.subr.mxu0 0.0
    %1153 = vmatpush1.xpose.msra.mxu0 0.0
    %1154 = vmatprep.subr.mxu0 0.0
    %1155 = vmatpush1.xpose.msra.mxu0 0.0
    %1156 = vmatprep.subr.mxu0 0.0
    %1157 = vmatpush1.xpose.msra.mxu0 0.0
    %1158 = vmatprep.subr.mxu0 0.0
    %1159 = vmatpush1.xpose.msra.mxu0 0.0
    %1160 = vmatprep.subr.mxu0 0.0
    %1161 = vmatpush1.xpose.msra.mxu0 0.0
    %1162 = vmatprep.subr.mxu0 0.0
    %1163 = vmatpush1.xpose.msra.mxu0 0.0
    %1164 = vmatprep.subr.mxu0 0.0
    %1165 = vmatpush1.xpose.msra.mxu0 0.0
    %1166 = vmatprep.subr.mxu0 0.0
    %1167 = vmatpush1.xpose.msra.mxu0 %v633
    %1168 = vmatprep.subr.mxu0 0.0
    %1169 = vmatpush2.xpose.msra.mxu0 0.0
    %1170 = vmatprep.subr.mxu0 0.0
    %1171 = vmatpush2.xpose.msra.mxu0 0.0
    %1172 = vmatprep.subr.mxu0 0.0
    %1173 = vmatpush2.xpose.msra.mxu0 0.0
    %1174 = vmatprep.subr.mxu0 0.0
    %1175 = vmatpush2.xpose.msra.mxu0 0.0
    %1176 = vmatprep.subr.mxu0 0.0
    %1177 = vmatpush2.xpose.msra.mxu0 0.0
    %1178 = vmatprep.subr.mxu0 0.0
    %1179 = vmatpush2.xpose.msra.mxu0 0.0
    %1180 = vmatprep.subr.mxu0 0.0
    %1181 = vmatpush2.xpose.msra.mxu0 0.0
    %1182 = vmatprep.subr.mxu0 0.0
    %1183 = vmatpush2.xpose.msra.mxu0 0.0
    %1184 = vmatprep.subr.mxu0 0.0
    %1185 = vmatpush2.xpose.msra.mxu0 0.0
    %1186 = vmatprep.subr.mxu0 0.0
    %1187 = vmatpush2.xpose.msra.mxu0 0.0
    %1188 = vmatprep.subr.mxu0 0.0
    %1189 = vmatpush2.xpose.msra.mxu0 0.0
    %1190 = vmatprep.subr.mxu0 0.0
    %1191 = vmatpush2.xpose.msra.mxu0 0.0
    %1192 = vmatprep.subr.mxu0 0.0
    %1193 = vmatpush2.xpose.msra.mxu0 0.0
    %1194 = vmatprep.subr.mxu0 0.0
    %1195 = vmatpush2.xpose.msra.mxu0 0.0
    %1196 = vmatprep.subr.mxu0 0.0
    %1197 = vmatpush2.xpose.msra.mxu0 0.0
    %1198 = vmatprep.subr.mxu0 0.0
    %1199 = vmatpush2.xpose.msra.mxu0 0.0
    %1200 = vmatprep.mubr.f32.mxu0 0.0
    %1201 = vmatmul.mubr.f32.gmra.mxu0 %v461
    %v1202 = vpop.f32.mrf.mxu0
    %v1203 = vadd.f32 0.0, %v1202
    %v1204 = vpop.f32.mrf.mxu0
    %1205 = vdwg.mxu0
    %v1206 = vmul.f32 %v1133, 0.17677669
    %v1207 = vmul.f32 %v1203, 0.17677669
    %vm1208 = vcmask 64512
    %v1209 = vsel %vm1208, %v1206, -inf
    %1210 = vmax.xlane.f32.xlu0 %v1209
    %v1211 = vpop.xlane.xlu0 %1210
    %v1212 = vsel %vm1208, %v1207, -inf
    %1213 = vmax.xlane.f32.xlu0 %v1212
    %v1214 = vpop.xlane.xlu0 %1213
    %v1215 = vsub.f32 %v1206, %v1211
    %v1216 = vsub.f32 %v1207, %v1214
    %v1217 = vmul.f32 %v1215, 1.442695
    %v1218 = vpow.pop %v1217
    %v1219 = vmul.f32 %v1216, 1.442695
    %v1220 = vpow.pop %v1219
    %v1221 = vsel %vm1208, %v1218, 0.0
    %1222 = vadd.xlane.f32.xlu0 %v1221
    %v1223 = vpop.xlane.xlu0 %1222
    %v1224 = vsel %vm1208, %v1220, 0.0
    %1225 = vadd.xlane.f32.xlu0 %v1224
    %v1226 = vpop.xlane.xlu0 %1225
    %v1227 = vrcp.pop %v1223
    %v1228 = vrcp.pop %v1226
    %v1229 = vmul.f32 %v1218, %v1227
    %v1230 = vmul.f32 %v1220, %v1228
    %v1232 = vsel %vm1208, %v1229, 0
    %1234 = vmatprep.subr.mxu0 0.0
    %1235 = vmatpush1.msra.mxu0 0.0
    %1236 = vmatprep.subr.mxu0 0.0
    %1237 = vmatpush1.msra.mxu0 0.0
    %1238 = vmatprep.subr.mxu0 0.0
    %1239 = vmatpush1.msra.mxu0 0.0
    %1240 = vmatprep.subr.mxu0 0.0
    %1241 = vmatpush1.msra.mxu0 0.0
    %1242 = vmatprep.subr.mxu0 0.0
    %1243 = vmatpush1.msra.mxu0 0.0
    %1244 = vmatprep.subr.mxu0 0.0
    %1245 = vmatpush1.msra.mxu0 0.0
    %1246 = vmatprep.subr.mxu0 0.0
    %1247 = vmatpush1.msra.mxu0 0.0
    %1248 = vmatprep.subr.mxu0 0.0
    %1249 = vmatpush1.msra.mxu0 0.0
    %1250 = vmatprep.subr.mxu0 0.0
    %1251 = vmatpush1.msra.mxu0 0.0
    %1252 = vmatprep.subr.mxu0 0.0
    %1253 = vmatpush1.msra.mxu0 0.0
    %1254 = vmatprep.subr.mxu0 0.0
    %1255 = vmatpush1.msra.mxu0 0.0
    %1256 = vmatprep.subr.mxu0 0.0
    %1257 = vmatpush1.msra.mxu0 0.0
    %1258 = vmatprep.subr.mxu0 0.0
    %1259 = vmatpush1.msra.mxu0 0.0
    %1260 = vmatprep.subr.mxu0 0.0
    %1261 = vmatpush1.msra.mxu0 0.0
    %1262 = vmatprep.subr.mxu0 0.0
    %1263 = vmatpush1.msra.mxu0 0.0
    %1264 = vmatprep.subr.mxu0 0.0
    %1265 = vmatpush1.msra.mxu0 %v801
    %1266 = vmatprep.subr.mxu0 0.0
    %1267 = vmatpush2.msra.mxu0 0.0
    %1268 = vmatprep.subr.mxu0 0.0
    %1269 = vmatpush2.msra.mxu0 0.0
    %1270 = vmatprep.subr.mxu0 0.0
    %1271 = vmatpush2.msra.mxu0 0.0
    %1272 = vmatprep.subr.mxu0 0.0
    %1273 = vmatpush2.msra.mxu0 0.0
    %1274 = vmatprep.subr.mxu0 0.0
    %1275 = vmatpush2.msra.mxu0 0.0
    %1276 = vmatprep.subr.mxu0 0.0
    %1277 = vmatpush2.msra.mxu0 0.0
    %1278 = vmatprep.subr.mxu0 0.0
    %1279 = vmatpush2.msra.mxu0 0.0
    %1280 = vmatprep.subr.mxu0 0.0
    %1281 = vmatpush2.msra.mxu0 0.0
    %1282 = vmatprep.subr.mxu0 0.0
    %1283 = vmatpush2.msra.mxu0 0.0
    %1284 = vmatprep.subr.mxu0 0.0
    %1285 = vmatpush2.msra.mxu0 0.0
    %1286 = vmatprep.subr.mxu0 0.0
    %1287 = vmatpush2.msra.mxu0 0.0
    %1288 = vmatprep.subr.mxu0 0.0
    %1289 = vmatpush2.msra.mxu0 0.0
    %1290 = vmatprep.subr.mxu0 0.0
    %1291 = vmatpush2.msra.mxu0 0.0
    %1292 = vmatprep.subr.mxu0 0.0
    %1293 = vmatpush2.msra.mxu0 0.0
    %1294 = vmatprep.subr.mxu0 0.0
    %1295 = vmatpush2.msra.mxu0 0.0
    %1296 = vmatprep.subr.mxu0 0.0
    %1297 = vmatpush2.msra.mxu0 0.0
    %1298 = vmatprep.mubr.f32.mxu0 0.0
    %1299 = vmatmul.mubr.f32.gmra.mxu0 %v1232
    %v1300 = vpop.f32.mrf.mxu0
    %v1301 = vadd.f32 0.0, %v1300
    %v1302 = vpop.f32.mrf.mxu0
    %1303 = vdwg.mxu0
    %v1305 = vsel %vm1208, %v1230, 0
    %1307 = vmatprep.subr.mxu0 0.0
    %1308 = vmatpush1.msra.mxu0 0.0
    %1309 = vmatprep.subr.mxu0 0.0
    %1310 = vmatpush1.msra.mxu0 0.0
    %1311 = vmatprep.subr.mxu0 0.0
    %1312 = vmatpush1.msra.mxu0 0.0
    %1313 = vmatprep.subr.mxu0 0.0
    %1314 = vmatpush1.msra.mxu0 0.0
    %1315 = vmatprep.subr.mxu0 0.0
    %1316 = vmatpush1.msra.mxu0 0.0
    %1317 = vmatprep.subr.mxu0 0.0
    %1318 = vmatpush1.msra.mxu0 0.0
    %1319 = vmatprep.subr.mxu0 0.0
    %1320 = vmatpush1.msra.mxu0 0.0
    %1321 = vmatprep.subr.mxu0 0.0
    %1322 = vmatpush1.msra.mxu0 0.0
    %1323 = vmatprep.subr.mxu0 0.0
    %1324 = vmatpush1.msra.mxu0 0.0
    %1325 = vmatprep.subr.mxu0 0.0
    %1326 = vmatpush1.msra.mxu0 0.0
    %1327 = vmatprep.subr.mxu0 0.0
    %1328 = vmatpush1.msra.mxu0 0.0
    %1329 = vmatprep.subr.mxu0 0.0
    %1330 = vmatpush1.msra.mxu0 0.0
    %1331 = vmatprep.subr.mxu0 0.0
    %1332 = vmatpush1.msra.mxu0 0.0
    %1333 = vmatprep.subr.mxu0 0.0
    %1334 = vmatpush1.msra.mxu0 0.0
    %1335 = vmatprep.subr.mxu0 0.0
    %1336 = vmatpush1.msra.mxu0 0.0
    %1337 = vmatprep.subr.mxu0 0.0
    %1338 = vmatpush1.msra.mxu0 %v805
    %1339 = vmatprep.subr.mxu0 0.0
    %1340 = vmatpush2.msra.mxu0 0.0
    %1341 = vmatprep.subr.mxu0 0.0
    %1342 = vmatpush2.msra.mxu0 0.0
    %1343 = vmatprep.subr.mxu0 0.0
    %1344 = vmatpush2.msra.mxu0 0.0
    %1345 = vmatprep.subr.mxu0 0.0
    %1346 = vmatpush2.msra.mxu0 0.0
    %1347 = vmatprep.subr.mxu0 0.0
    %1348 = vmatpush2.msra.mxu0 0.0
    %1349 = vmatprep.subr.mxu0 0.0
    %1350 = vmatpush2.msra.mxu0 0.0
    %1351 = vmatprep.subr.mxu0 0.0
    %1352 = vmatpush2.msra.mxu0 0.0
    %1353 = vmatprep.subr.mxu0 0.0
    %1354 = vmatpush2.msra.mxu0 0.0
    %1355 = vmatprep.subr.mxu0 0.0
    %1356 = vmatpush2.msra.mxu0 0.0
    %1357 = vmatprep.subr.mxu0 0.0
    %1358 = vmatpush2.msra.mxu0 0.0
    %1359 = vmatprep.subr.mxu0 0.0
    %1360 = vmatpush2.msra.mxu0 0.0
    %1361 = vmatprep.subr.mxu0 0.0
    %1362 = vmatpush2.msra.mxu0 0.0
    %1363 = vmatprep.subr.mxu0 0.0
    %1364 = vmatpush2.msra.mxu0 0.0
    %1365 = vmatprep.subr.mxu0 0.0
    %1366 = vmatpush2.msra.mxu0 0.0
    %1367 = vmatprep.subr.mxu0 0.0
    %1368 = vmatpush2.msra.mxu0 0.0
    %1369 = vmatprep.subr.mxu0 0.0
    %1370 = vmatpush2.msra.mxu0 0.0
    %1371 = vmatprep.mubr.f32.mxu0 0.0
    %1372 = vmatmul.mubr.f32.gmra.mxu0 %v1305
    %v1373 = vpop.f32.mrf.mxu0
    %v1374 = vadd.f32 0.0, %v1373
    %v1375 = vpop.f32.mrf.mxu0
    %1376 = vdwg.mxu0
    %v1377 = vpack.c.bf16 %v1374, %v1301
    %1378 = vmatprep.subr.mxu0 0.0
    %1379 = vmatpush1.xpose.msra.mxu0 0.0
    %1380 = vmatprep.subr.mxu0 0.0
    %1381 = vmatpush1.xpose.msra.mxu0 0.0
    %1382 = vmatprep.subr.mxu0 0.0
    %1383 = vmatpush1.xpose.msra.mxu0 0.0
    %1384 = vmatprep.subr.mxu0 0.0
    %1385 = vmatpush1.xpose.msra.mxu0 0.0
    %1386 = vmatprep.subr.mxu0 0.0
    %1387 = vmatpush1.xpose.msra.mxu0 0.0
    %1388 = vmatprep.subr.mxu0 0.0
    %1389 = vmatpush1.xpose.msra.mxu0 0.0
    %1390 = vmatprep.subr.mxu0 0.0
    %1391 = vmatpush1.xpose.msra.mxu0 0.0
    %1392 = vmatprep.subr.mxu0 0.0
    %1393 = vmatpush1.xpose.msra.mxu0 0.0
    %1394 = vmatprep.subr.mxu0 0.0
    %1395 = vmatpush1.xpose.msra.mxu0 0.0
    %1396 = vmatprep.subr.mxu0 0.0
    %1397 = vmatpush1.xpose.msra.mxu0 0.0
    %1398 = vmatprep.subr.mxu0 0.0
    %1399 = vmatpush1.xpose.msra.mxu0 0.0
    %1400 = vmatprep.subr.mxu0 0.0
    %1401 = vmatpush1.xpose.msra.mxu0 0.0
    %1402 = vmatprep.subr.mxu0 0.0
    %1403 = vmatpush1.xpose.msra.mxu0 0.0
    %1404 = vmatprep.subr.mxu0 0.0
    %1405 = vmatpush1.xpose.msra.mxu0 0.0
    %1406 = vmatprep.subr.mxu0 0.0
    %1407 = vmatpush1.xpose.msra.mxu0 0.0
    %1408 = vmatprep.subr.mxu0 0.0
    %1409 = vmatpush1.xpose.msra.mxu0 %v631
    %1410 = vmatprep.subr.mxu0 0.0
    %1411 = vmatpush2.xpose.msra.mxu0 0.0
    %1412 = vmatprep.subr.mxu0 0.0
    %1413 = vmatpush2.xpose.msra.mxu0 0.0
    %1414 = vmatprep.subr.mxu0 0.0
    %1415 = vmatpush2.xpose.msra.mxu0 0.0
    %1416 = vmatprep.subr.mxu0 0.0
    %1417 = vmatpush2.xpose.msra.mxu0 0.0
    %1418 = vmatprep.subr.mxu0 0.0
    %1419 = vmatpush2.xpose.msra.mxu0 0.0
    %1420 = vmatprep.subr.mxu0 0.0
    %1421 = vmatpush2.xpose.msra.mxu0 0.0
    %1422 = vmatprep.subr.mxu0 0.0
    %1423 = vmatpush2.xpose.msra.mxu0 0.0
    %1424 = vmatprep.subr.mxu0 0.0
    %1425 = vmatpush2.xpose.msra.mxu0 0.0
    %1426 = vmatprep.subr.mxu0 0.0
    %1427 = vmatpush2.xpose.msra.mxu0 0.0
    %1428 = vmatprep.subr.mxu0 0.0
    %1429 = vmatpush2.xpose.msra.mxu0 0.0
    %1430 = vmatprep.subr.mxu0 0.0
    %1431 = vmatpush2.xpose.msra.mxu0 0.0
    %1432 = vmatprep.subr.mxu0 0.0
    %1433 = vmatpush2.xpose.msra.mxu0 0.0
    %1434 = vmatprep.subr.mxu0 0.0
    %1435 = vmatpush2.xpose.msra.mxu0 0.0
    %1436 = vmatprep.subr.mxu0 0.0
    %1437 = vmatpush2.xpose.msra.mxu0 0.0
    %1438 = vmatprep.subr.mxu0 0.0
    %1439 = vmatpush2.xpose.msra.mxu0 0.0
    %1440 = vmatprep.subr.mxu0 0.0
    %1441 = vmatpush2.xpose.msra.mxu0 0.0
    %1442 = vmatprep.mubr.f32.mxu0 0.0
    %1443 = vmatmul.mubr.f32.gmra.mxu0 %v459
    %v1444 = vpop.f32.mrf.mxu0
    %v1445 = vadd.f32 0.0, %v1444
    %v1446 = vpop.f32.mrf.mxu0
    %1447 = vdwg.mxu0
    %1448 = vmatprep.subr.mxu0 0.0
    %1449 = vmatpush1.xpose.msra.mxu0 0.0
    %1450 = vmatprep.subr.mxu0 0.0
    %1451 = vmatpush1.xpose.msra.mxu0 0.0
    %1452 = vmatprep.subr.mxu0 0.0
    %1453 = vmatpush1.xpose.msra.mxu0 0.0
    %1454 = vmatprep.subr.mxu0 0.0
    %1455 = vmatpush1.xpose.msra.mxu0 0.0
    %1456 = vmatprep.subr.mxu0 0.0
    %1457 = vmatpush1.xpose.msra.mxu0 0.0
    %1458 = vmatprep.subr.mxu0 0.0
    %1459 = vmatpush1.xpose.msra.mxu0 0.0
    %1460 = vmatprep.subr.mxu0 0.0
    %1461 = vmatpush1.xpose.msra.mxu0 0.0
    %1462 = vmatprep.subr.mxu0 0.0
    %1463 = vmatpush1.xpose.msra.mxu0 0.0
    %1464 = vmatprep.subr.mxu0 0.0
    %1465 = vmatpush1.xpose.msra.mxu0 0.0
    %1466 = vmatprep.subr.mxu0 0.0
    %1467 = vmatpush1.xpose.msra.mxu0 0.0
    %1468 = vmatprep.subr.mxu0 0.0
    %1469 = vmatpush1.xpose.msra.mxu0 0.0
    %1470 = vmatprep.subr.mxu0 0.0
    %1471 = vmatpush1.xpose.msra.mxu0 0.0
    %1472 = vmatprep.subr.mxu0 0.0
    %1473 = vmatpush1.xpose.msra.mxu0 0.0
    %1474 = vmatprep.subr.mxu0 0.0
    %1475 = vmatpush1.xpose.msra.mxu0 0.0
    %1476 = vmatprep.subr.mxu0 0.0
    %1477 = vmatpush1.xpose.msra.mxu0 0.0
    %1478 = vmatprep.subr.mxu0 0.0
    %1479 = vmatpush1.xpose.msra.mxu0 %v635
    %1480 = vmatprep.subr.mxu0 0.0
    %1481 = vmatpush2.xpose.msra.mxu0 0.0
    %1482 = vmatprep.subr.mxu0 0.0
    %1483 = vmatpush2.xpose.msra.mxu0 0.0
    %1484 = vmatprep.subr.mxu0 0.0
    %1485 = vmatpush2.xpose.msra.mxu0 0.0
    %1486 = vmatprep.subr.mxu0 0.0
    %1487 = vmatpush2.xpose.msra.mxu0 0.0
    %1488 = vmatprep.subr.mxu0 0.0
    %1489 = vmatpush2.xpose.msra.mxu0 0.0
    %1490 = vmatprep.subr.mxu0 0.0
    %1491 = vmatpush2.xpose.msra.mxu0 0.0
    %1492 = vmatprep.subr.mxu0 0.0
    %1493 = vmatpush2.xpose.msra.mxu0 0.0
    %1494 = vmatprep.subr.mxu0 0.0
    %1495 = vmatpush2.xpose.msra.mxu0 0.0
    %1496 = vmatprep.subr.mxu0 0.0
    %1497 = vmatpush2.xpose.msra.mxu0 0.0
    %1498 = vmatprep.subr.mxu0 0.0
    %1499 = vmatpush2.xpose.msra.mxu0 0.0
    %1500 = vmatprep.subr.mxu0 0.0
    %1501 = vmatpush2.xpose.msra.mxu0 0.0
    %1502 = vmatprep.subr.mxu0 0.0
    %1503 = vmatpush2.xpose.msra.mxu0 0.0
    %1504 = vmatprep.subr.mxu0 0.0
    %1505 = vmatpush2.xpose.msra.mxu0 0.0
    %1506 = vmatprep.subr.mxu0 0.0
    %1507 = vmatpush2.xpose.msra.mxu0 0.0
    %1508 = vmatprep.subr.mxu0 0.0
    %1509 = vmatpush2.xpose.msra.mxu0 0.0
    %1510 = vmatprep.subr.mxu0 0.0
    %1511 = vmatpush2.xpose.msra.mxu0 0.0
    %1512 = vmatprep.mubr.f32.mxu0 0.0
    %1513 = vmatmul.mubr.f32.gmra.mxu0 %v463
    %v1514 = vpop.f32.mrf.mxu0
    %v1515 = vadd.f32 0.0, %v1514
    %v1516 = vpop.f32.mrf.mxu0
    %1517 = vdwg.mxu0
    %v1518 = vmul.f32 %v1445, 0.17677669
    %v1519 = vmul.f32 %v1515, 0.17677669
    %v1520 = vsel %vm1208, %v1518, -inf
    %1521 = vmax.xlane.f32.xlu0 %v1520
    %v1522 = vpop.xlane.xlu0 %1521
    %v1523 = vsel %vm1208, %v1519, -inf
    %1524 = vmax.xlane.f32.xlu0 %v1523
    %v1525 = vpop.xlane.xlu0 %1524
    %v1526 = vsub.f32 %v1518, %v1522
    %v1527 = vsub.f32 %v1519, %v1525
    %v1528 = vmul.f32 %v1526, 1.442695
    %v1529 = vpow.pop %v1528
    %v1530 = vmul.f32 %v1527, 1.442695
    %v1531 = vpow.pop %v1530
    %v1532 = vsel %vm1208, %v1529, 0.0
    %1533 = vadd.xlane.f32.xlu0 %v1532
    %v1534 = vpop.xlane.xlu0 %1533
    %v1535 = vsel %vm1208, %v1531, 0.0
    %1536 = vadd.xlane.f32.xlu0 %v1535
    %v1537 = vpop.xlane.xlu0 %1536
    %v1538 = vrcp.pop %v1534
    %v1539 = vrcp.pop %v1537
    %v1540 = vmul.f32 %v1529, %v1538
    %v1541 = vmul.f32 %v1531, %v1539
    %v1543 = vsel %vm1208, %v1540, 0
    %1545 = vmatprep.subr.mxu0 0.0
    %1546 = vmatpush1.msra.mxu0 0.0
    %1547 = vmatprep.subr.mxu0 0.0
    %1548 = vmatpush1.msra.mxu0 0.0
    %1549 = vmatprep.subr.mxu0 0.0
    %1550 = vmatpush1.msra.mxu0 0.0
    %1551 = vmatprep.subr.mxu0 0.0
    %1552 = vmatpush1.msra.mxu0 0.0
    %1553 = vmatprep.subr.mxu0 0.0
    %1554 = vmatpush1.msra.mxu0 0.0
    %1555 = vmatprep.subr.mxu0 0.0
    %1556 = vmatpush1.msra.mxu0 0.0
    %1557 = vmatprep.subr.mxu0 0.0
    %1558 = vmatpush1.msra.mxu0 0.0
    %1559 = vmatprep.subr.mxu0 0.0
    %1560 = vmatpush1.msra.mxu0 0.0
    %1561 = vmatprep.subr.mxu0 0.0
    %1562 = vmatpush1.msra.mxu0 0.0
    %1563 = vmatprep.subr.mxu0 0.0
    %1564 = vmatpush1.msra.mxu0 0.0
    %1565 = vmatprep.subr.mxu0 0.0
    %1566 = vmatpush1.msra.mxu0 0.0
    %1567 = vmatprep.subr.mxu0 0.0
    %1568 = vmatpush1.msra.mxu0 0.0
    %1569 = vmatprep.subr.mxu0 0.0
    %1570 = vmatpush1.msra.mxu0 0.0
    %1571 = vmatprep.subr.mxu0 0.0
    %1572 = vmatpush1.msra.mxu0 0.0
    %1573 = vmatprep.subr.mxu0 0.0
    %1574 = vmatpush1.msra.mxu0 0.0
    %1575 = vmatprep.subr.mxu0 0.0
    %1576 = vmatpush1.msra.mxu0 %v803
    %1577 = vmatprep.subr.mxu0 0.0
    %1578 = vmatpush2.msra.mxu0 0.0
    %1579 = vmatprep.subr.mxu0 0.0
    %1580 = vmatpush2.msra.mxu0 0.0
    %1581 = vmatprep.subr.mxu0 0.0
    %1582 = vmatpush2.msra.mxu0 0.0
    %1583 = vmatprep.subr.mxu0 0.0
    %1584 = vmatpush2.msra.mxu0 0.0
    %1585 = vmatprep.subr.mxu0 0.0
    %1586 = vmatpush2.msra.mxu0 0.0
    %1587 = vmatprep.subr.mxu0 0.0
    %1588 = vmatpush2.msra.mxu0 0.0
    %1589 = vmatprep.subr.mxu0 0.0
    %1590 = vmatpush2.msra.mxu0 0.0
    %1591 = vmatprep.subr.mxu0 0.0
    %1592 = vmatpush2.msra.mxu0 0.0
    %1593 = vmatprep.subr.mxu0 0.0
    %1594 = vmatpush2.msra.mxu0 0.0
    %1595 = vmatprep.subr.mxu0 0.0
    %1596 = vmatpush2.msra.mxu0 0.0
    %1597 = vmatprep.subr.mxu0 0.0
    %1598 = vmatpush2.msra.mxu0 0.0
    %1599 = vmatprep.subr.mxu0 0.0
    %1600 = vmatpush2.msra.mxu0 0.0
    %1601 = vmatprep.subr.mxu0 0.0
    %1602 = vmatpush2.msra.mxu0 0.0
    %1603 = vmatprep.subr.mxu0 0.0
    %1604 = vmatpush2.msra.mxu0 0.0
    %1605 = vmatprep.subr.mxu0 0.0
    %1606 = vmatpush2.msra.mxu0 0.0
    %1607 = vmatprep.subr.mxu0 0.0
    %1608 = vmatpush2.msra.mxu0 0.0
    %1609 = vmatprep.mubr.f32.mxu0 0.0
    %1610 = vmatmul.mubr.f32.gmra.mxu0 %v1543
    %v1611 = vpop.f32.mrf.mxu0
    %v1612 = vadd.f32 0.0, %v1611
    %v1613 = vpop.f32.mrf.mxu0
    %1614 = vdwg.mxu0
    %v1616 = vsel %vm1208, %v1541, 0
    %1618 = vmatprep.subr.mxu0 0.0
    %1619 = vmatpush1.msra.mxu0 0.0
    %1620 = vmatprep.subr.mxu0 0.0
    %1621 = vmatpush1.msra.mxu0 0.0
    %1622 = vmatprep.subr.mxu0 0.0
    %1623 = vmatpush1.msra.mxu0 0.0
    %1624 = vmatprep.subr.mxu0 0.0
    %1625 = vmatpush1.msra.mxu0 0.0
    %1626 = vmatprep.subr.mxu0 0.0
    %1627 = vmatpush1.msra.mxu0 0.0
    %1628 = vmatprep.subr.mxu0 0.0
    %1629 = vmatpush1.msra.mxu0 0.0
    %1630 = vmatprep.subr.mxu0 0.0
    %1631 = vmatpush1.msra.mxu0 0.0
    %1632 = vmatprep.subr.mxu0 0.0
    %1633 = vmatpush1.msra.mxu0 0.0
    %1634 = vmatprep.subr.mxu0 0.0
    %1635 = vmatpush1.msra.mxu0 0.0
    %1636 = vmatprep.subr.mxu0 0.0
    %1637 = vmatpush1.msra.mxu0 0.0
    %1638 = vmatprep.subr.mxu0 0.0
    %1639 = vmatpush1.msra.mxu0 0.0
    %1640 = vmatprep.subr.mxu0 0.0
    %1641 = vmatpush1.msra.mxu0 0.0
    %1642 = vmatprep.subr.mxu0 0.0
    %1643 = vmatpush1.msra.mxu0 0.0
    %1644 = vmatprep.subr.mxu0 0.0
    %1645 = vmatpush1.msra.mxu0 0.0
    %1646 = vmatprep.subr.mxu0 0.0
    %1647 = vmatpush1.msra.mxu0 0.0
    %1648 = vmatprep.subr.mxu0 0.0
    %1649 = vmatpush1.msra.mxu0 %v807
    %1650 = vmatprep.subr.mxu0 0.0
    %1651 = vmatpush2.msra.mxu0 0.0
    %1652 = vmatprep.subr.mxu0 0.0
    %1653 = vmatpush2.msra.mxu0 0.0
    %1654 = vmatprep.subr.mxu0 0.0
    %1655 = vmatpush2.msra.mxu0 0.0
    %1656 = vmatprep.subr.mxu0 0.0
    %1657 = vmatpush2.msra.mxu0 0.0
    %1658 = vmatprep.subr.mxu0 0.0
    %1659 = vmatpush2.msra.mxu0 0.0
    %1660 = vmatprep.subr.mxu0 0.0
    %1661 = vmatpush2.msra.mxu0 0.0
    %1662 = vmatprep.subr.mxu0 0.0
    %1663 = vmatpush2.msra.mxu0 0.0
    %1664 = vmatprep.subr.mxu0 0.0
    %1665 = vmatpush2.msra.mxu0 0.0
    %1666 = vmatprep.subr.mxu0 0.0
    %1667 = vmatpush2.msra.mxu0 0.0
    %1668 = vmatprep.subr.mxu0 0.0
    %1669 = vmatpush2.msra.mxu0 0.0
    %1670 = vmatprep.subr.mxu0 0.0
    %1671 = vmatpush2.msra.mxu0 0.0
    %1672 = vmatprep.subr.mxu0 0.0
    %1673 = vmatpush2.msra.mxu0 0.0
    %1674 = vmatprep.subr.mxu0 0.0
    %1675 = vmatpush2.msra.mxu0 0.0
    %1676 = vmatprep.subr.mxu0 0.0
    %1677 = vmatpush2.msra.mxu0 0.0
    %1678 = vmatprep.subr.mxu0 0.0
    %1679 = vmatpush2.msra.mxu0 0.0
    %1680 = vmatprep.subr.mxu0 0.0
    %1681 = vmatpush2.msra.mxu0 0.0
    %1682 = vmatprep.mubr.f32.mxu0 0.0
    %1683 = vmatmul.mubr.f32.gmra.mxu0 %v1616
    %v1684 = vpop.f32.mrf.mxu0
    %v1685 = vadd.f32 0.0, %v1684
    %v1686 = vpop.f32.mrf.mxu0
    %1687 = vdwg.mxu0
    %v1688 = vpack.c.bf16 %v1685, %v1612
    %v1705 = vunpack.c.l.b16 %v954
    %v1706 = vunpack.c.l.b16 %v955
    %v1707 = vunpack.c.l.b16 %v956
    %v1708 = vunpack.c.l.b16 %v957
    %v1709 = vunpack.c.l.b16 %v958
    %v1710 = vunpack.c.l.b16 %v959
    %v1711 = vunpack.c.l.b16 %v960
    %v1712 = vunpack.c.l.b16 %v961
    %v1713 = vunpack.c.l.b16 %v962
    %v1714 = vunpack.c.l.b16 %v963
    %v1715 = vunpack.c.l.b16 %v964
    %v1716 = vunpack.c.l.b16 %v965
    %v1717 = vunpack.c.l.b16 %v966
    %v1718 = vunpack.c.l.b16 %v967
    %v1719 = vunpack.c.l.b16 %v968
    %v1720 = vunpack.c.l.b16 %v969
    %v1721 = vpack.c.b16 %v1706, %v1705
    %v1722 = vpack.c.b16 %v1708, %v1707
    %v1723 = vpack.c.b16 %v1710, %v1709
    %v1724 = vpack.c.b16 %v1712, %v1711
    %v1725 = vpack.c.b16 %v1714, %v1713
    %v1726 = vpack.c.b16 %v1716, %v1715
    %v1727 = vpack.c.b16 %v1718, %v1717
    %v1728 = vpack.c.b16 %v1720, %v1719
    %1737 = vmatprep.subr.bf16.mxu0 0
    %1738 = vmatpush1.bf16.msra.mxu0 %v1728
    %1739 = vmatprep.subr.bf16.mxu0 0
    %1740 = vmatpush1.bf16.msra.mxu0 %v1727
    %1741 = vmatprep.subr.bf16.mxu0 0
    %1742 = vmatpush1.bf16.msra.mxu0 %v1726
    %1743 = vmatprep.subr.bf16.mxu0 0
    %1744 = vmatpush1.bf16.msra.mxu0 %v1725
    %1745 = vmatprep.subr.bf16.mxu0 0
    %1746 = vmatpush1.bf16.msra.mxu0 %v1724
    %1747 = vmatprep.subr.bf16.mxu0 0
    %1748 = vmatpush1.bf16.msra.mxu0 %v1723
    %1749 = vmatprep.subr.bf16.mxu0 0
    %1750 = vmatpush1.bf16.msra.mxu0 %v1722
    %1751 = vmatprep.subr.bf16.mxu0 0
    %1752 = vmatpush1.bf16.msra.mxu0 %v1721
    %1753 = vmatprep.subr.bf16.mxu0 0
    %1754 = vmatpush2.bf16.msra.mxu0 0
    %1755 = vmatprep.subr.bf16.mxu0 0
    %1756 = vmatpush2.bf16.msra.mxu0 0
    %1757 = vmatprep.subr.bf16.mxu0 0
    %1758 = vmatpush2.bf16.msra.mxu0 0
    %1759 = vmatprep.subr.bf16.mxu0 0
    %1760 = vmatpush2.bf16.msra.mxu0 0
    %1761 = vmatprep.subr.bf16.mxu0 0
    %1762 = vmatpush2.bf16.msra.mxu0 0
    %1763 = vmatprep.subr.bf16.mxu0 0
    %1764 = vmatpush2.bf16.msra.mxu0 0
    %1765 = vmatprep.subr.bf16.mxu0 0
    %1766 = vmatpush2.bf16.msra.mxu0 0
    %1767 = vmatprep.subr.bf16.mxu0 0
    %1768 = vmatpush2.bf16.msra.mxu0 0
    %1769 = vmatprep.mubr.bf16.mxu0 0
    %1770 = vmatmul.mubr.bf16.gmra.mxu0 %v1688
    %v1771 = vpop.f32.mrf.mxu0
    %v1772 = vadd.f32 0.0, %v1771
    %v1773 = vpop.f32.mrf.mxu0
    %v1774 = vpop.f32.mrf.mxu0
    %v1775 = vadd.f32 0.0, %v1774
    %v1776 = vpop.f32.mrf.mxu0
    %1777 = vdwg.mxu0
    %v1794 = vunpack.c.l.b16 %v938
    %v1795 = vunpack.c.l.b16 %v939
    %v1796 = vunpack.c.l.b16 %v940
    %v1797 = vunpack.c.l.b16 %v941
    %v1798 = vunpack.c.l.b16 %v942
    %v1799 = vunpack.c.l.b16 %v943
    %v1800 = vunpack.c.l.b16 %v944
    %v1801 = vunpack.c.l.b16 %v945
    %v1802 = vunpack.c.l.b16 %v946
    %v1803 = vunpack.c.l.b16 %v947
    %v1804 = vunpack.c.l.b16 %v948
    %v1805 = vunpack.c.l.b16 %v949
    %v1806 = vunpack.c.l.b16 %v950
    %v1807 = vunpack.c.l.b16 %v951
    %v1808 = vunpack.c.l.b16 %v952
    %v1809 = vunpack.c.l.b16 %v953
    %v1810 = vpack.c.b16 %v1795, %v1794
    %v1811 = vpack.c.b16 %v1797, %v1796
    %v1812 = vpack.c.b16 %v1799, %v1798
    %v1813 = vpack.c.b16 %v1801, %v1800
    %v1814 = vpack.c.b16 %v1803, %v1802
    %v1815 = vpack.c.b16 %v1805, %v1804
    %v1816 = vpack.c.b16 %v1807, %v1806
    %v1817 = vpack.c.b16 %v1809, %v1808
    %1826 = vmatprep.subr.bf16.mxu0 0
    %1827 = vmatpush1.bf16.msra.mxu0 %v1817
    %1828 = vmatprep.subr.bf16.mxu0 0
    %1829 = vmatpush1.bf16.msra.mxu0 %v1816
    %1830 = vmatprep.subr.bf16.mxu0 0
    %1831 = vmatpush1.bf16.msra.mxu0 %v1815
    %1832 = vmatprep.subr.bf16.mxu0 0
    %1833 = vmatpush1.bf16.msra.mxu0 %v1814
    %1834 = vmatprep.subr.bf16.mxu0 0
    %1835 = vmatpush1.bf16.msra.mxu0 %v1813
    %1836 = vmatprep.subr.bf16.mxu0 0
    %1837 = vmatpush1.bf16.msra.mxu0 %v1812
    %1838 = vmatprep.subr.bf16.mxu0 0
    %1839 = vmatpush1.bf16.msra.mxu0 %v1811
    %1840 = vmatprep.subr.bf16.mxu0 0
    %1841 = vmatpush1.bf16.msra.mxu0 %v1810
    %1842 = vmatprep.subr.bf16.mxu0 0
    %1843 = vmatpush2.bf16.msra.mxu0 0
    %1844 = vmatprep.subr.bf16.mxu0 0
    %1845 = vmatpush2.bf16.msra.mxu0 0
    %1846 = vmatprep.subr.bf16.mxu0 0
    %1847 = vmatpush2.bf16.msra.mxu0 0
    %1848 = vmatprep.subr.bf16.mxu0 0
    %1849 = vmatpush2.bf16.msra.mxu0 0
    %1850 = vmatprep.subr.bf16.mxu0 0
    %1851 = vmatpush2.bf16.msra.mxu0 0
    %1852 = vmatprep.subr.bf16.mxu0 0
    %1853 = vmatpush2.bf16.msra.mxu0 0
    %1854 = vmatprep.subr.bf16.mxu0 0
    %1855 = vmatpush2.bf16.msra.mxu0 0
    %1856 = vmatprep.subr.bf16.mxu0 0
    %1857 = vmatpush2.bf16.msra.mxu0 0
    %1858 = vmatprep.mubr.bf16.mxu0 0
    %1859 = vmatmul.mubr.bf16.gmra.mxu0 %v1377
    %v1860 = vpop.f32.mrf.mxu0
    %v1861 = vadd.f32 %v1772, %v1860
    %v1862 = vpop.f32.mrf.mxu0
    %v1863 = vpop.f32.mrf.mxu0
    %v1864 = vadd.f32 %v1775, %v1863
    %v1865 = vpop.f32.mrf.mxu0
    %1866 = vdwg.mxu0
    %1867 = vmatprep.subr.mxu0 0.0
    %1868 = vmatpush1.xpose.msra.mxu0 0.0
    %1869 = vmatprep.subr.mxu0 0.0
    %1870 = vmatpush1.xpose.msra.mxu0 0.0
    %1871 = vmatprep.subr.mxu0 0.0
    %1872 = vmatpush1.xpose.msra.mxu0 0.0
    %1873 = vmatprep.subr.mxu0 0.0
    %1874 = vmatpush1.xpose.msra.mxu0 0.0
    %1875 = vmatprep.subr.mxu0 0.0
    %1876 = vmatpush1.xpose.msra.mxu0 0.0
    %1877 = vmatprep.subr.mxu0 0.0
    %1878 = vmatpush1.xpose.msra.mxu0 0.0
    %1879 = vmatprep.subr.mxu0 0.0
    %1880 = vmatpush1.xpose.msra.mxu0 0.0
    %1881 = vmatprep.subr.mxu0 0.0
    %1882 = vmatpush1.xpose.msra.mxu0 0.0
    %1883 = vmatprep.subr.mxu0 0.0
    %1884 = vmatpush1.xpose.msra.mxu0 0.0
    %1885 = vmatprep.subr.mxu0 0.0
    %1886 = vmatpush1.xpose.msra.mxu0 0.0
    %1887 = vmatprep.subr.mxu0 0.0
    %1888 = vmatpush1.xpose.msra.mxu0 0.0
    %1889 = vmatprep.subr.mxu0 0.0
    %1890 = vmatpush1.xpose.msra.mxu0 0.0
    %1891 = vmatprep.subr.mxu0 0.0
    %1892 = vmatpush1.xpose.msra.mxu0 0.0
    %1893 = vmatprep.subr.mxu0 0.0
    %1894 = vmatpush1.xpose.msra.mxu0 0.0
    %1895 = vmatprep.subr.mxu0 0.0
    %1896 = vmatpush1.xpose.msra.mxu0 0.0
    %1897 = vmatprep.subr.mxu0 0.0
    %1898 = vmatpush1.xpose.msra.mxu0 %v672
    %1899 = vmatprep.subr.mxu0 0.0
    %1900 = vmatpush2.xpose.msra.mxu0 0.0
    %1901 = vmatprep.subr.mxu0 0.0
    %1902 = vmatpush2.xpose.msra.mxu0 0.0
    %1903 = vmatprep.subr.mxu0 0.0
    %1904 = vmatpush2.xpose.msra.mxu0 0.0
    %1905 = vmatprep.subr.mxu0 0.0
    %1906 = vmatpush2.xpose.msra.mxu0 0.0
    %1907 = vmatprep.subr.mxu0 0.0
    %1908 = vmatpush2.xpose.msra.mxu0 0.0
    %1909 = vmatprep.subr.mxu0 0.0
    %1910 = vmatpush2.xpose.msra.mxu0 0.0
    %1911 = vmatprep.subr.mxu0 0.0
    %1912 = vmatpush2.xpose.msra.mxu0 0.0
    %1913 = vmatprep.subr.mxu0 0.0
    %1914 = vmatpush2.xpose.msra.mxu0 0.0
    %1915 = vmatprep.subr.mxu0 0.0
    %1916 = vmatpush2.xpose.msra.mxu0 0.0
    %1917 = vmatprep.subr.mxu0 0.0
    %1918 = vmatpush2.xpose.msra.mxu0 0.0
    %1919 = vmatprep.subr.mxu0 0.0
    %1920 = vmatpush2.xpose.msra.mxu0 0.0
    %1921 = vmatprep.subr.mxu0 0.0
    %1922 = vmatpush2.xpose.msra.mxu0 0.0
    %1923 = vmatprep.subr.mxu0 0.0
    %1924 = vmatpush2.xpose.msra.mxu0 0.0
    %1925 = vmatprep.subr.mxu0 0.0
    %1926 = vmatpush2.xpose.msra.mxu0 0.0
    %1927 = vmatprep.subr.mxu0 0.0
    %1928 = vmatpush2.xpose.msra.mxu0 0.0
    %1929 = vmatprep.subr.mxu0 0.0
    %1930 = vmatpush2.xpose.msra.mxu0 0.0
    %1931 = vmatprep.mubr.f32.mxu0 0.0
    %1932 = vmatmul.mubr.f32.gmra.mxu0 %v500
    %v1933 = vpop.f32.mrf.mxu0
    %v1934 = vadd.f32 0.0, %v1933
    %v1935 = vpop.f32.mrf.mxu0
    %1936 = vdwg.mxu0
    %1937 = vmatprep.subr.mxu0 0.0
    %1938 = vmatpush1.xpose.msra.mxu0 0.0
    %1939 = vmatprep.subr.mxu0 0.0
    %1940 = vmatpush1.xpose.msra.mxu0 0.0
    %1941 = vmatprep.subr.mxu0 0.0
    %1942 = vmatpush1.xpose.msra.mxu0 0.0
    %1943 = vmatprep.subr.mxu0 0.0
    %1944 = vmatpush1.xpose.msra.mxu0 0.0
    %1945 = vmatprep.subr.mxu0 0.0
    %1946 = vmatpush1.xpose.msra.mxu0 0.0
    %1947 = vmatprep.subr.mxu0 0.0
    %1948 = vmatpush1.xpose.msra.mxu0 0.0
    %1949 = vmatprep.subr.mxu0 0.0
    %1950 = vmatpush1.xpose.msra.mxu0 0.0
    %1951 = vmatprep.subr.mxu0 0.0
    %1952 = vmatpush1.xpose.msra.mxu0 0.0
    %1953 = vmatprep.subr.mxu0 0.0
    %1954 = vmatpush1.xpose.msra.mxu0 0.0
    %1955 = vmatprep.subr.mxu0 0.0
    %1956 = vmatpush1.xpose.msra.mxu0 0.0
    %1957 = vmatprep.subr.mxu0 0.0
    %1958 = vmatpush1.xpose.msra.mxu0 0.0
    %1959 = vmatprep.subr.mxu0 0.0
    %1960 = vmatpush1.xpose.msra.mxu0 0.0
    %1961 = vmatprep.subr.mxu0 0.0
    %1962 = vmatpush1.xpose.msra.mxu0 0.0
    %1963 = vmatprep.subr.mxu0 0.0
    %1964 = vmatpush1.xpose.msra.mxu0 0.0
    %1965 = vmatprep.subr.mxu0 0.0
    %1966 = vmatpush1.xpose.msra.mxu0 0.0
    %1967 = vmatprep.subr.mxu0 0.0
    %1968 = vmatpush1.xpose.msra.mxu0 %v676
    %1969 = vmatprep.subr.mxu0 0.0
    %1970 = vmatpush2.xpose.msra.mxu0 0.0
    %1971 = vmatprep.subr.mxu0 0.0
    %1972 = vmatpush2.xpose.msra.mxu0 0.0
    %1973 = vmatprep.subr.mxu0 0.0
    %1974 = vmatpush2.xpose.msra.mxu0 0.0
    %1975 = vmatprep.subr.mxu0 0.0
    %1976 = vmatpush2.xpose.msra.mxu0 0.0
    %1977 = vmatprep.subr.mxu0 0.0
    %1978 = vmatpush2.xpose.msra.mxu0 0.0
    %1979 = vmatprep.subr.mxu0 0.0
    %1980 = vmatpush2.xpose.msra.mxu0 0.0
    %1981 = vmatprep.subr.mxu0 0.0
    %1982 = vmatpush2.xpose.msra.mxu0 0.0
    %1983 = vmatprep.subr.mxu0 0.0
    %1984 = vmatpush2.xpose.msra.mxu0 0.0
    %1985 = vmatprep.subr.mxu0 0.0
    %1986 = vmatpush2.xpose.msra.mxu0 0.0
    %1987 = vmatprep.subr.mxu0 0.0
    %1988 = vmatpush2.xpose.msra.mxu0 0.0
    %1989 = vmatprep.subr.mxu0 0.0
    %1990 = vmatpush2.xpose.msra.mxu0 0.0
    %1991 = vmatprep.subr.mxu0 0.0
    %1992 = vmatpush2.xpose.msra.mxu0 0.0
    %1993 = vmatprep.subr.mxu0 0.0
    %1994 = vmatpush2.xpose.msra.mxu0 0.0
    %1995 = vmatprep.subr.mxu0 0.0
    %1996 = vmatpush2.xpose.msra.mxu0 0.0
    %1997 = vmatprep.subr.mxu0 0.0
    %1998 = vmatpush2.xpose.msra.mxu0 0.0
    %1999 = vmatprep.subr.mxu0 0.0
    %2000 = vmatpush2.xpose.msra.mxu0 0.0
    %2001 = vmatprep.mubr.f32.mxu0 0.0
    %2002 = vmatmul.mubr.f32.gmra.mxu0 %v504
    %v2003 = vpop.f32.mrf.mxu0
    %v2004 = vadd.f32 0.0, %v2003
    %v2005 = vpop.f32.mrf.mxu0
    %2006 = vdwg.mxu0
    %v2007 = vmul.f32 %v1934, 0.17677669
    %v2008 = vmul.f32 %v2004, 0.17677669
    %v2009 = vsel %vm1208, %v2007, -inf
    %2010 = vmax.xlane.f32.xlu0 %v2009
    %v2011 = vpop.xlane.xlu0 %2010
    %v2012 = vsel %vm1208, %v2008, -inf
    %2013 = vmax.xlane.f32.xlu0 %v2012
    %v2014 = vpop.xlane.xlu0 %2013
    %v2015 = vsub.f32 %v2007, %v2011
    %v2016 = vsub.f32 %v2008, %v2014
    %v2017 = vmul.f32 %v2015, 1.442695
    %v2018 = vpow.pop %v2017
    %v2019 = vmul.f32 %v2016, 1.442695
    %v2020 = vpow.pop %v2019
    %v2021 = vsel %vm1208, %v2018, 0.0
    %2022 = vadd.xlane.f32.xlu0 %v2021
    %v2023 = vpop.xlane.xlu0 %2022
    %v2024 = vsel %vm1208, %v2020, 0.0
    %2025 = vadd.xlane.f32.xlu0 %v2024
    %v2026 = vpop.xlane.xlu0 %2025
    %v2027 = vrcp.pop %v2023
    %v2028 = vrcp.pop %v2026
    %v2029 = vmul.f32 %v2018, %v2027
    %v2030 = vmul.f32 %v2020, %v2028
    %v2032 = vsel %vm1208, %v2029, 0
    %2034 = vmatprep.subr.mxu0 0.0
    %2035 = vmatpush1.msra.mxu0 0.0
    %2036 = vmatprep.subr.mxu0 0.0
    %2037 = vmatpush1.msra.mxu0 0.0
    %2038 = vmatprep.subr.mxu0 0.0
    %2039 = vmatpush1.msra.mxu0 0.0
    %2040 = vmatprep.subr.mxu0 0.0
    %2041 = vmatpush1.msra.mxu0 0.0
    %2042 = vmatprep.subr.mxu0 0.0
    %2043 = vmatpush1.msra.mxu0 0.0
    %2044 = vmatprep.subr.mxu0 0.0
    %2045 = vmatpush1.msra.mxu0 0.0
    %2046 = vmatprep.subr.mxu0 0.0
    %2047 = vmatpush1.msra.mxu0 0.0
    %2048 = vmatprep.subr.mxu0 0.0
    %2049 = vmatpush1.msra.mxu0 0.0
    %2050 = vmatprep.subr.mxu0 0.0
    %2051 = vmatpush1.msra.mxu0 0.0
    %2052 = vmatprep.subr.mxu0 0.0
    %2053 = vmatpush1.msra.mxu0 0.0
    %2054 = vmatprep.subr.mxu0 0.0
    %2055 = vmatpush1.msra.mxu0 0.0
    %2056 = vmatprep.subr.mxu0 0.0
    %2057 = vmatpush1.msra.mxu0 0.0
    %2058 = vmatprep.subr.mxu0 0.0
    %2059 = vmatpush1.msra.mxu0 0.0
    %2060 = vmatprep.subr.mxu0 0.0
    %2061 = vmatpush1.msra.mxu0 0.0
    %2062 = vmatprep.subr.mxu0 0.0
    %2063 = vmatpush1.msra.mxu0 0.0
    %2064 = vmatprep.subr.mxu0 0.0
    %2065 = vmatpush1.msra.mxu0 %v844
    %2066 = vmatprep.subr.mxu0 0.0
    %2067 = vmatpush2.msra.mxu0 0.0
    %2068 = vmatprep.subr.mxu0 0.0
    %2069 = vmatpush2.msra.mxu0 0.0
    %2070 = vmatprep.subr.mxu0 0.0
    %2071 = vmatpush2.msra.mxu0 0.0
    %2072 = vmatprep.subr.mxu0 0.0
    %2073 = vmatpush2.msra.mxu0 0.0
    %2074 = vmatprep.subr.mxu0 0.0
    %2075 = vmatpush2.msra.mxu0 0.0
    %2076 = vmatprep.subr.mxu0 0.0
    %2077 = vmatpush2.msra.mxu0 0.0
    %2078 = vmatprep.subr.mxu0 0.0
    %2079 = vmatpush2.msra.mxu0 0.0
    %2080 = vmatprep.subr.mxu0 0.0
    %2081 = vmatpush2.msra.mxu0 0.0
    %2082 = vmatprep.subr.mxu0 0.0
    %2083 = vmatpush2.msra.mxu0 0.0
    %2084 = vmatprep.subr.mxu0 0.0
    %2085 = vmatpush2.msra.mxu0 0.0
    %2086 = vmatprep.subr.mxu0 0.0
    %2087 = vmatpush2.msra.mxu0 0.0
    %2088 = vmatprep.subr.mxu0 0.0
    %2089 = vmatpush2.msra.mxu0 0.0
    %2090 = vmatprep.subr.mxu0 0.0
    %2091 = vmatpush2.msra.mxu0 0.0
    %2092 = vmatprep.subr.mxu0 0.0
    %2093 = vmatpush2.msra.mxu0 0.0
    %2094 = vmatprep.subr.mxu0 0.0
    %2095 = vmatpush2.msra.mxu0 0.0
    %2096 = vmatprep.subr.mxu0 0.0
    %2097 = vmatpush2.msra.mxu0 0.0
    %2098 = vmatprep.mubr.f32.mxu0 0.0
    %2099 = vmatmul.mubr.f32.gmra.mxu0 %v2032
    %v2100 = vpop.f32.mrf.mxu0
    %v2101 = vadd.f32 0.0, %v2100
    %v2102 = vpop.f32.mrf.mxu0
    %2103 = vdwg.mxu0
    %v2105 = vsel %vm1208, %v2030, 0
    %2107 = vmatprep.subr.mxu0 0.0
    %2108 = vmatpush1.msra.mxu0 0.0
    %2109 = vmatprep.subr.mxu0 0.0
    %2110 = vmatpush1.msra.mxu0 0.0
    %2111 = vmatprep.subr.mxu0 0.0
    %2112 = vmatpush1.msra.mxu0 0.0
    %2113 = vmatprep.subr.mxu0 0.0
    %2114 = vmatpush1.msra.mxu0 0.0
    %2115 = vmatprep.subr.mxu0 0.0
    %2116 = vmatpush1.msra.mxu0 0.0
    %2117 = vmatprep.subr.mxu0 0.0
    %2118 = vmatpush1.msra.mxu0 0.0
    %2119 = vmatprep.subr.mxu0 0.0
    %2120 = vmatpush1.msra.mxu0 0.0
    %2121 = vmatprep.subr.mxu0 0.0
    %2122 = vmatpush1.msra.mxu0 0.0
    %2123 = vmatprep.subr.mxu0 0.0
    %2124 = vmatpush1.msra.mxu0 0.0
    %2125 = vmatprep.subr.mxu0 0.0
    %2126 = vmatpush1.msra.mxu0 0.0
    %2127 = vmatprep.subr.mxu0 0.0
    %2128 = vmatpush1.msra.mxu0 0.0
    %2129 = vmatprep.subr.mxu0 0.0
    %2130 = vmatpush1.msra.mxu0 0.0
    %2131 = vmatprep.subr.mxu0 0.0
    %2132 = vmatpush1.msra.mxu0 0.0
    %2133 = vmatprep.subr.mxu0 0.0
    %2134 = vmatpush1.msra.mxu0 0.0
    %2135 = vmatprep.subr.mxu0 0.0
    %2136 = vmatpush1.msra.mxu0 0.0
    %2137 = vmatprep.subr.mxu0 0.0
    %2138 = vmatpush1.msra.mxu0 %v848
    %2139 = vmatprep.subr.mxu0 0.0
    %2140 = vmatpush2.msra.mxu0 0.0
    %2141 = vmatprep.subr.mxu0 0.0
    %2142 = vmatpush2.msra.mxu0 0.0
    %2143 = vmatprep.subr.mxu0 0.0
    %2144 = vmatpush2.msra.mxu0 0.0
    %2145 = vmatprep.subr.mxu0 0.0
    %2146 = vmatpush2.msra.mxu0 0.0
    %2147 = vmatprep.subr.mxu0 0.0
    %2148 = vmatpush2.msra.mxu0 0.0
    %2149 = vmatprep.subr.mxu0 0.0
    %2150 = vmatpush2.msra.mxu0 0.0
    %2151 = vmatprep.subr.mxu0 0.0
    %2152 = vmatpush2.msra.mxu0 0.0
    %2153 = vmatprep.subr.mxu0 0.0
    %2154 = vmatpush2.msra.mxu0 0.0
    %2155 = vmatprep.subr.mxu0 0.0
    %2156 = vmatpush2.msra.mxu0 0.0
    %2157 = vmatprep.subr.mxu0 0.0
    %2158 = vmatpush2.msra.mxu0 0.0
    %2159 = vmatprep.subr.mxu0 0.0
    %2160 = vmatpush2.msra.mxu0 0.0
    %2161 = vmatprep.subr.mxu0 0.0
    %2162 = vmatpush2.msra.mxu0 0.0
    %2163 = vmatprep.subr.mxu0 0.0
    %2164 = vmatpush2.msra.mxu0 0.0
    %2165 = vmatprep.subr.mxu0 0.0
    %2166 = vmatpush2.msra.mxu0 0.0
    %2167 = vmatprep.subr.mxu0 0.0
    %2168 = vmatpush2.msra.mxu0 0.0
    %2169 = vmatprep.subr.mxu0 0.0
    %2170 = vmatpush2.msra.mxu0 0.0
    %2171 = vmatprep.mubr.f32.mxu0 0.0
    %2172 = vmatmul.mubr.f32.gmra.mxu0 %v2105
    %v2173 = vpop.f32.mrf.mxu0
    %v2174 = vadd.f32 0.0, %v2173
    %v2175 = vpop.f32.mrf.mxu0
    %2176 = vdwg.mxu0
    %v2177 = vpack.c.bf16 %v2174, %v2101
    %v2194 = vunpack.c.l.b16 %v970
    %v2195 = vunpack.c.l.b16 %v971
    %v2196 = vunpack.c.l.b16 %v972
    %v2197 = vunpack.c.l.b16 %v973
    %v2198 = vunpack.c.l.b16 %v974
    %v2199 = vunpack.c.l.b16 %v975
    %v2200 = vunpack.c.l.b16 %v976
    %v2201 = vunpack.c.l.b16 %v977
    %v2202 = vunpack.c.l.b16 %v978
    %v2203 = vunpack.c.l.b16 %v979
    %v2204 = vunpack.c.l.b16 %v980
    %v2205 = vunpack.c.l.b16 %v981
    %v2206 = vunpack.c.l.b16 %v982
    %v2207 = vunpack.c.l.b16 %v983
    %v2208 = vunpack.c.l.b16 %v984
    %v2209 = vunpack.c.l.b16 %v985
    %v2210 = vpack.c.b16 %v2195, %v2194
    %v2211 = vpack.c.b16 %v2197, %v2196
    %v2212 = vpack.c.b16 %v2199, %v2198
    %v2213 = vpack.c.b16 %v2201, %v2200
    %v2214 = vpack.c.b16 %v2203, %v2202
    %v2215 = vpack.c.b16 %v2205, %v2204
    %v2216 = vpack.c.b16 %v2207, %v2206
    %v2217 = vpack.c.b16 %v2209, %v2208
    %2226 = vmatprep.subr.bf16.mxu0 0
    %2227 = vmatpush1.bf16.msra.mxu0 %v2217
    %2228 = vmatprep.subr.bf16.mxu0 0
    %2229 = vmatpush1.bf16.msra.mxu0 %v2216
    %2230 = vmatprep.subr.bf16.mxu0 0
    %2231 = vmatpush1.bf16.msra.mxu0 %v2215
    %2232 = vmatprep.subr.bf16.mxu0 0
    %2233 = vmatpush1.bf16.msra.mxu0 %v2214
    %2234 = vmatprep.subr.bf16.mxu0 0
    %2235 = vmatpush1.bf16.msra.mxu0 %v2213
    %2236 = vmatprep.subr.bf16.mxu0 0
    %2237 = vmatpush1.bf16.msra.mxu0 %v2212
    %2238 = vmatprep.subr.bf16.mxu0 0
    %2239 = vmatpush1.bf16.msra.mxu0 %v2211
    %2240 = vmatprep.subr.bf16.mxu0 0
    %2241 = vmatpush1.bf16.msra.mxu0 %v2210
    %2242 = vmatprep.subr.bf16.mxu0 0
    %2243 = vmatpush2.bf16.msra.mxu0 0
    %2244 = vmatprep.subr.bf16.mxu0 0
    %2245 = vmatpush2.bf16.msra.mxu0 0
    %2246 = vmatprep.subr.bf16.mxu0 0
    %2247 = vmatpush2.bf16.msra.mxu0 0
    %2248 = vmatprep.subr.bf16.mxu0 0
    %2249 = vmatpush2.bf16.msra.mxu0 0
    %2250 = vmatprep.subr.bf16.mxu0 0
    %2251 = vmatpush2.bf16.msra.mxu0 0
    %2252 = vmatprep.subr.bf16.mxu0 0
    %2253 = vmatpush2.bf16.msra.mxu0 0
    %2254 = vmatprep.subr.bf16.mxu0 0
    %2255 = vmatpush2.bf16.msra.mxu0 0
    %2256 = vmatprep.subr.bf16.mxu0 0
    %2257 = vmatpush2.bf16.msra.mxu0 0
    %2258 = vmatprep.mubr.bf16.mxu0 0
    %2259 = vmatmul.mubr.bf16.gmra.mxu0 %v2177
    %v2260 = vpop.f32.mrf.mxu0
    %v2261 = vadd.f32 0.0, %v2260
    %v2262 = vpop.f32.mrf.mxu0
    %v2263 = vpop.f32.mrf.mxu0
    %v2264 = vadd.f32 0.0, %v2263
    %v2265 = vpop.f32.mrf.mxu0
    %2266 = vdwg.mxu0
    %v2267 = vadd.f32 %v1861, %v2261
    %v2268 = vadd.f32 %v1864, %v2264
    %2269 = vmatprep.subr.mxu0 0.0
    %2270 = vmatpush1.xpose.msra.mxu0 0.0
    %2271 = vmatprep.subr.mxu0 0.0
    %2272 = vmatpush1.xpose.msra.mxu0 0.0
    %2273 = vmatprep.subr.mxu0 0.0
    %2274 = vmatpush1.xpose.msra.mxu0 0.0
    %2275 = vmatprep.subr.mxu0 0.0
    %2276 = vmatpush1.xpose.msra.mxu0 0.0
    %2277 = vmatprep.subr.mxu0 0.0
    %2278 = vmatpush1.xpose.msra.mxu0 0.0
    %2279 = vmatprep.subr.mxu0 0.0
    %2280 = vmatpush1.xpose.msra.mxu0 0.0
    %2281 = vmatprep.subr.mxu0 0.0
    %2282 = vmatpush1.xpose.msra.mxu0 0.0
    %2283 = vmatprep.subr.mxu0 0.0
    %2284 = vmatpush1.xpose.msra.mxu0 0.0
    %2285 = vmatprep.subr.mxu0 0.0
    %2286 = vmatpush1.xpose.msra.mxu0 0.0
    %2287 = vmatprep.subr.mxu0 0.0
    %2288 = vmatpush1.xpose.msra.mxu0 0.0
    %2289 = vmatprep.subr.mxu0 0.0
    %2290 = vmatpush1.xpose.msra.mxu0 0.0
    %2291 = vmatprep.subr.mxu0 0.0
    %2292 = vmatpush1.xpose.msra.mxu0 0.0
    %2293 = vmatprep.subr.mxu0 0.0
    %2294 = vmatpush1.xpose.msra.mxu0 0.0
    %2295 = vmatprep.subr.mxu0 0.0
    %2296 = vmatpush1.xpose.msra.mxu0 0.0
    %2297 = vmatprep.subr.mxu0 0.0
    %2298 = vmatpush1.xpose.msra.mxu0 0.0
    %2299 = vmatprep.subr.mxu0 0.0
    %2300 = vmatpush1.xpose.msra.mxu0 %v674
    %2301 = vmatprep.subr.mxu0 0.0
    %2302 = vmatpush2.xpose.msra.mxu0 0.0
    %2303 = vmatprep.subr.mxu0 0.0
    %2304 = vmatpush2.xpose.msra.mxu0 0.0
    %2305 = vmatprep.subr.mxu0 0.0
    %2306 = vmatpush2.xpose.msra.mxu0 0.0
    %2307 = vmatprep.subr.mxu0 0.0
    %2308 = vmatpush2.xpose.msra.mxu0 0.0
    %2309 = vmatprep.subr.mxu0 0.0
    %2310 = vmatpush2.xpose.msra.mxu0 0.0
    %2311 = vmatprep.subr.mxu0 0.0
    %2312 = vmatpush2.xpose.msra.mxu0 0.0
    %2313 = vmatprep.subr.mxu0 0.0
    %2314 = vmatpush2.xpose.msra.mxu0 0.0
    %2315 = vmatprep.subr.mxu0 0.0
    %2316 = vmatpush2.xpose.msra.mxu0 0.0
    %2317 = vmatprep.subr.mxu0 0.0
    %2318 = vmatpush2.xpose.msra.mxu0 0.0
    %2319 = vmatprep.subr.mxu0 0.0
    %2320 = vmatpush2.xpose.msra.mxu0 0.0
    %2321 = vmatprep.subr.mxu0 0.0
    %2322 = vmatpush2.xpose.msra.mxu0 0.0
    %2323 = vmatprep.subr.mxu0 0.0
    %2324 = vmatpush2.xpose.msra.mxu0 0.0
    %2325 = vmatprep.subr.mxu0 0.0
    %2326 = vmatpush2.xpose.msra.mxu0 0.0
    %2327 = vmatprep.subr.mxu0 0.0
    %2328 = vmatpush2.xpose.msra.mxu0 0.0
    %2329 = vmatprep.subr.mxu0 0.0
    %2330 = vmatpush2.xpose.msra.mxu0 0.0
    %2331 = vmatprep.subr.mxu0 0.0
    %2332 = vmatpush2.xpose.msra.mxu0 0.0
    %2333 = vmatprep.mubr.f32.mxu0 0.0
    %2334 = vmatmul.mubr.f32.gmra.mxu0 %v502
    %v2335 = vpop.f32.mrf.mxu0
    %v2336 = vadd.f32 0.0, %v2335
    %v2337 = vpop.f32.mrf.mxu0
    %2338 = vdwg.mxu0
    %2339 = vmatprep.subr.mxu0 0.0
    %2340 = vmatpush1.xpose.msra.mxu0 0.0
    %2341 = vmatprep.subr.mxu0 0.0
    %2342 = vmatpush1.xpose.msra.mxu0 0.0
    %2343 = vmatprep.subr.mxu0 0.0
    %2344 = vmatpush1.xpose.msra.mxu0 0.0
    %2345 = vmatprep.subr.mxu0 0.0
    %2346 = vmatpush1.xpose.msra.mxu0 0.0
    %2347 = vmatprep.subr.mxu0 0.0
    %2348 = vmatpush1.xpose.msra.mxu0 0.0
    %2349 = vmatprep.subr.mxu0 0.0
    %2350 = vmatpush1.xpose.msra.mxu0 0.0
    %2351 = vmatprep.subr.mxu0 0.0
    %2352 = vmatpush1.xpose.msra.mxu0 0.0
    %2353 = vmatprep.subr.mxu0 0.0
    %2354 = vmatpush1.xpose.msra.mxu0 0.0
    %2355 = vmatprep.subr.mxu0 0.0
    %2356 = vmatpush1.xpose.msra.mxu0 0.0
    %2357 = vmatprep.subr.mxu0 0.0
    %2358 = vmatpush1.xpose.msra.mxu0 0.0
    %2359 = vmatprep.subr.mxu0 0.0
    %2360 = vmatpush1.xpose.msra.mxu0 0.0
    %2361 = vmatprep.subr.mxu0 0.0
    %2362 = vmatpush1.xpose.msra.mxu0 0.0
    %2363 = vmatprep.subr.mxu0 0.0
    %2364 = vmatpush1.xpose.msra.mxu0 0.0
    %2365 = vmatprep.subr.mxu0 0.0
    %2366 = vmatpush1.xpose.msra.mxu0 0.0
    %2367 = vmatprep.subr.mxu0 0.0
    %2368 = vmatpush1.xpose.msra.mxu0 0.0
    %2369 = vmatprep.subr.mxu0 0.0
    %2370 = vmatpush1.xpose.msra.mxu0 %v678
    %2371 = vmatprep.subr.mxu0 0.0
    %2372 = vmatpush2.xpose.msra.mxu0 0.0
    %2373 = vmatprep.subr.mxu0 0.0
    %2374 = vmatpush2.xpose.msra.mxu0 0.0
    %2375 = vmatprep.subr.mxu0 0.0
    %2376 = vmatpush2.xpose.msra.mxu0 0.0
    %2377 = vmatprep.subr.mxu0 0.0
    %2378 = vmatpush2.xpose.msra.mxu0 0.0
    %2379 = vmatprep.subr.mxu0 0.0
    %2380 = vmatpush2.xpose.msra.mxu0 0.0
    %2381 = vmatprep.subr.mxu0 0.0
    %2382 = vmatpush2.xpose.msra.mxu0 0.0
    %2383 = vmatprep.subr.mxu0 0.0
    %2384 = vmatpush2.xpose.msra.mxu0 0.0
    %2385 = vmatprep.subr.mxu0 0.0
    %2386 = vmatpush2.xpose.msra.mxu0 0.0
    %2387 = vmatprep.subr.mxu0 0.0
    %2388 = vmatpush2.xpose.msra.mxu0 0.0
    %2389 = vmatprep.subr.mxu0 0.0
    %2390 = vmatpush2.xpose.msra.mxu0 0.0
    %2391 = vmatprep.subr.mxu0 0.0
    %2392 = vmatpush2.xpose.msra.mxu0 0.0
    %2393 = vmatprep.subr.mxu0 0.0
    %2394 = vmatpush2.xpose.msra.mxu0 0.0
    %2395 = vmatprep.subr.mxu0 0.0
    %2396 = vmatpush2.xpose.msra.mxu0 0.0
    %2397 = vmatprep.subr.mxu0 0.0
    %2398 = vmatpush2.xpose.msra.mxu0 0.0
    %2399 = vmatprep.subr.mxu0 0.0
    %2400 = vmatpush2.xpose.msra.mxu0 0.0
    %2401 = vmatprep.subr.mxu0 0.0
    %2402 = vmatpush2.xpose.msra.mxu0 0.0
    %2403 = vmatprep.mubr.f32.mxu0 0.0
    %2404 = vmatmul.mubr.f32.gmra.mxu0 %v506
    %v2405 = vpop.f32.mrf.mxu0
    %v2406 = vadd.f32 0.0, %v2405
    %v2407 = vpop.f32.mrf.mxu0
    %2408 = vdwg.mxu0
    %v2409 = vmul.f32 %v2336, 0.17677669
    %v2410 = vmul.f32 %v2406, 0.17677669
    %v2411 = vsel %vm1208, %v2409, -inf
    %2412 = vmax.xlane.f32.xlu0 %v2411
    %v2413 = vpop.xlane.xlu0 %2412
    %v2414 = vsel %vm1208, %v2410, -inf
    %2415 = vmax.xlane.f32.xlu0 %v2414
    %v2416 = vpop.xlane.xlu0 %2415
    %v2417 = vsub.f32 %v2409, %v2413
    %v2418 = vsub.f32 %v2410, %v2416
    %v2419 = vmul.f32 %v2417, 1.442695
    %v2420 = vpow.pop %v2419
    %v2421 = vmul.f32 %v2418, 1.442695
    %v2422 = vpow.pop %v2421
    %v2423 = vsel %vm1208, %v2420, 0.0
    %2424 = vadd.xlane.f32.xlu0 %v2423
    %v2425 = vpop.xlane.xlu0 %2424
    %v2426 = vsel %vm1208, %v2422, 0.0
    %2427 = vadd.xlane.f32.xlu0 %v2426
    %v2428 = vpop.xlane.xlu0 %2427
    %v2429 = vrcp.pop %v2425
    %v2430 = vrcp.pop %v2428
    %v2431 = vmul.f32 %v2420, %v2429
    %v2432 = vmul.f32 %v2422, %v2430
    %v2434 = vsel %vm1208, %v2431, 0
    %2436 = vmatprep.subr.mxu0 0.0
    %2437 = vmatpush1.msra.mxu0 0.0
    %2438 = vmatprep.subr.mxu0 0.0
    %2439 = vmatpush1.msra.mxu0 0.0
    %2440 = vmatprep.subr.mxu0 0.0
    %2441 = vmatpush1.msra.mxu0 0.0
    %2442 = vmatprep.subr.mxu0 0.0
    %2443 = vmatpush1.msra.mxu0 0.0
    %2444 = vmatprep.subr.mxu0 0.0
    %2445 = vmatpush1.msra.mxu0 0.0
    %2446 = vmatprep.subr.mxu0 0.0
    %2447 = vmatpush1.msra.mxu0 0.0
    %2448 = vmatprep.subr.mxu0 0.0
    %2449 = vmatpush1.msra.mxu0 0.0
    %2450 = vmatprep.subr.mxu0 0.0
    %2451 = vmatpush1.msra.mxu0 0.0
    %2452 = vmatprep.subr.mxu0 0.0
    %2453 = vmatpush1.msra.mxu0 0.0
    %2454 = vmatprep.subr.mxu0 0.0
    %2455 = vmatpush1.msra.mxu0 0.0
    %2456 = vmatprep.subr.mxu0 0.0
    %2457 = vmatpush1.msra.mxu0 0.0
    %2458 = vmatprep.subr.mxu0 0.0
    %2459 = vmatpush1.msra.mxu0 0.0
    %2460 = vmatprep.subr.mxu0 0.0
    %2461 = vmatpush1.msra.mxu0 0.0
    %2462 = vmatprep.subr.mxu0 0.0
    %2463 = vmatpush1.msra.mxu0 0.0
    %2464 = vmatprep.subr.mxu0 0.0
    %2465 = vmatpush1.msra.mxu0 0.0
    %2466 = vmatprep.subr.mxu0 0.0
    %2467 = vmatpush1.msra.mxu0 %v846
    %2468 = vmatprep.subr.mxu0 0.0
    %2469 = vmatpush2.msra.mxu0 0.0
    %2470 = vmatprep.subr.mxu0 0.0
    %2471 = vmatpush2.msra.mxu0 0.0
    %2472 = vmatprep.subr.mxu0 0.0
    %2473 = vmatpush2.msra.mxu0 0.0
    %2474 = vmatprep.subr.mxu0 0.0
    %2475 = vmatpush2.msra.mxu0 0.0
    %2476 = vmatprep.subr.mxu0 0.0
    %2477 = vmatpush2.msra.mxu0 0.0
    %2478 = vmatprep.subr.mxu0 0.0
    %2479 = vmatpush2.msra.mxu0 0.0
    %2480 = vmatprep.subr.mxu0 0.0
    %2481 = vmatpush2.msra.mxu0 0.0
    %2482 = vmatprep.subr.mxu0 0.0
    %2483 = vmatpush2.msra.mxu0 0.0
    %2484 = vmatprep.subr.mxu0 0.0
    %2485 = vmatpush2.msra.mxu0 0.0
    %2486 = vmatprep.subr.mxu0 0.0
    %2487 = vmatpush2.msra.mxu0 0.0
    %2488 = vmatprep.subr.mxu0 0.0
    %2489 = vmatpush2.msra.mxu0 0.0
    %2490 = vmatprep.subr.mxu0 0.0
    %2491 = vmatpush2.msra.mxu0 0.0
    %2492 = vmatprep.subr.mxu0 0.0
    %2493 = vmatpush2.msra.mxu0 0.0
    %2494 = vmatprep.subr.mxu0 0.0
    %2495 = vmatpush2.msra.mxu0 0.0
    %2496 = vmatprep.subr.mxu0 0.0
    %2497 = vmatpush2.msra.mxu0 0.0
    %2498 = vmatprep.subr.mxu0 0.0
    %2499 = vmatpush2.msra.mxu0 0.0
    %2500 = vmatprep.mubr.f32.mxu0 0.0
    %2501 = vmatmul.mubr.f32.gmra.mxu0 %v2434
    %v2502 = vpop.f32.mrf.mxu0
    %v2503 = vadd.f32 0.0, %v2502
    %v2504 = vpop.f32.mrf.mxu0
    %2505 = vdwg.mxu0
    %v2507 = vsel %vm1208, %v2432, 0
    %2509 = vmatprep.subr.mxu0 0.0
    %2510 = vmatpush1.msra.mxu0 0.0
    %2511 = vmatprep.subr.mxu0 0.0
    %2512 = vmatpush1.msra.mxu0 0.0
    %2513 = vmatprep.subr.mxu0 0.0
    %2514 = vmatpush1.msra.mxu0 0.0
    %2515 = vmatprep.subr.mxu0 0.0
    %2516 = vmatpush1.msra.mxu0 0.0
    %2517 = vmatprep.subr.mxu0 0.0
    %2518 = vmatpush1.msra.mxu0 0.0
    %2519 = vmatprep.subr.mxu0 0.0
    %2520 = vmatpush1.msra.mxu0 0.0
    %2521 = vmatprep.subr.mxu0 0.0
    %2522 = vmatpush1.msra.mxu0 0.0
    %2523 = vmatprep.subr.mxu0 0.0
    %2524 = vmatpush1.msra.mxu0 0.0
    %2525 = vmatprep.subr.mxu0 0.0
    %2526 = vmatpush1.msra.mxu0 0.0
    %2527 = vmatprep.subr.mxu0 0.0
    %2528 = vmatpush1.msra.mxu0 0.0
    %2529 = vmatprep.subr.mxu0 0.0
    %2530 = vmatpush1.msra.mxu0 0.0
    %2531 = vmatprep.subr.mxu0 0.0
    %2532 = vmatpush1.msra.mxu0 0.0
    %2533 = vmatprep.subr.mxu0 0.0
    %2534 = vmatpush1.msra.mxu0 0.0
    %2535 = vmatprep.subr.mxu0 0.0
    %2536 = vmatpush1.msra.mxu0 0.0
    %2537 = vmatprep.subr.mxu0 0.0
    %2538 = vmatpush1.msra.mxu0 0.0
    %2539 = vmatprep.subr.mxu0 0.0
    %2540 = vmatpush1.msra.mxu0 %v850
    %2541 = vmatprep.subr.mxu0 0.0
    %2542 = vmatpush2.msra.mxu0 0.0
    %2543 = vmatprep.subr.mxu0 0.0
    %2544 = vmatpush2.msra.mxu0 0.0
    %2545 = vmatprep.subr.mxu0 0.0
    %2546 = vmatpush2.msra.mxu0 0.0
    %2547 = vmatprep.subr.mxu0 0.0
    %2548 = vmatpush2.msra.mxu0 0.0
    %2549 = vmatprep.subr.mxu0 0.0
    %2550 = vmatpush2.msra.mxu0 0.0
    %2551 = vmatprep.subr.mxu0 0.0
    %2552 = vmatpush2.msra.mxu0 0.0
    %2553 = vmatprep.subr.mxu0 0.0
    %2554 = vmatpush2.msra.mxu0 0.0
    %2555 = vmatprep.subr.mxu0 0.0
    %2556 = vmatpush2.msra.mxu0 0.0
    %2557 = vmatprep.subr.mxu0 0.0
    %2558 = vmatpush2.msra.mxu0 0.0
    %2559 = vmatprep.subr.mxu0 0.0
    %2560 = vmatpush2.msra.mxu0 0.0
    %2561 = vmatprep.subr.mxu0 0.0
    %2562 = vmatpush2.msra.mxu0 0.0
    %2563 = vmatprep.subr.mxu0 0.0
    %2564 = vmatpush2.msra.mxu0 0.0
    %2565 = vmatprep.subr.mxu0 0.0
    %2566 = vmatpush2.msra.mxu0 0.0
    %2567 = vmatprep.subr.mxu0 0.0
    %2568 = vmatpush2.msra.mxu0 0.0
    %2569 = vmatprep.subr.mxu0 0.0
    %2570 = vmatpush2.msra.mxu0 0.0
    %2571 = vmatprep.subr.mxu0 0.0
    %2572 = vmatpush2.msra.mxu0 0.0
    %2573 = vmatprep.mubr.f32.mxu0 0.0
    %2574 = vmatmul.mubr.f32.gmra.mxu0 %v2507
    %v2575 = vpop.f32.mrf.mxu0
    %v2576 = vadd.f32 0.0, %v2575
    %v2577 = vpop.f32.mrf.mxu0
    %2578 = vdwg.mxu0
    %v2579 = vpack.c.bf16 %v2576, %v2503
    %v2596 = vunpack.c.l.b16 %v986
    %v2597 = vunpack.c.l.b16 %v987
    %v2598 = vunpack.c.l.b16 %v988
    %v2599 = vunpack.c.l.b16 %v989
    %v2600 = vunpack.c.l.b16 %v990
    %v2601 = vunpack.c.l.b16 %v991
    %v2602 = vunpack.c.l.b16 %v992
    %v2603 = vunpack.c.l.b16 %v993
    %v2604 = vunpack.c.l.b16 %v994
    %v2605 = vunpack.c.l.b16 %v995
    %v2606 = vunpack.c.l.b16 %v996
    %v2607 = vunpack.c.l.b16 %v997
    %v2608 = vunpack.c.l.b16 %v998
    %v2609 = vunpack.c.l.b16 %v999
    %v2610 = vunpack.c.l.b16 %v1000
    %v2611 = vunpack.c.l.b16 %v1001
    %v2612 = vpack.c.b16 %v2597, %v2596
    %v2613 = vpack.c.b16 %v2599, %v2598
    %v2614 = vpack.c.b16 %v2601, %v2600
    %v2615 = vpack.c.b16 %v2603, %v2602
    %v2616 = vpack.c.b16 %v2605, %v2604
    %v2617 = vpack.c.b16 %v2607, %v2606
    %v2618 = vpack.c.b16 %v2609, %v2608
    %v2619 = vpack.c.b16 %v2611, %v2610
    %2628 = vmatprep.subr.bf16.mxu0 0
    %2629 = vmatpush1.bf16.msra.mxu0 %v2619
    %2630 = vmatprep.subr.bf16.mxu0 0
    %2631 = vmatpush1.bf16.msra.mxu0 %v2618
    %2632 = vmatprep.subr.bf16.mxu0 0
    %2633 = vmatpush1.bf16.msra.mxu0 %v2617
    %2634 = vmatprep.subr.bf16.mxu0 0
    %2635 = vmatpush1.bf16.msra.mxu0 %v2616
    %2636 = vmatprep.subr.bf16.mxu0 0
    %2637 = vmatpush1.bf16.msra.mxu0 %v2615
    %2638 = vmatprep.subr.bf16.mxu0 0
    %2639 = vmatpush1.bf16.msra.mxu0 %v2614
    %2640 = vmatprep.subr.bf16.mxu0 0
    %2641 = vmatpush1.bf16.msra.mxu0 %v2613
    %2642 = vmatprep.subr.bf16.mxu0 0
    %2643 = vmatpush1.bf16.msra.mxu0 %v2612
    %2644 = vmatprep.subr.bf16.mxu0 0
    %2645 = vmatpush2.bf16.msra.mxu0 0
    %2646 = vmatprep.subr.bf16.mxu0 0
    %2647 = vmatpush2.bf16.msra.mxu0 0
    %2648 = vmatprep.subr.bf16.mxu0 0
    %2649 = vmatpush2.bf16.msra.mxu0 0
    %2650 = vmatprep.subr.bf16.mxu0 0
    %2651 = vmatpush2.bf16.msra.mxu0 0
    %2652 = vmatprep.subr.bf16.mxu0 0
    %2653 = vmatpush2.bf16.msra.mxu0 0
    %2654 = vmatprep.subr.bf16.mxu0 0
    %2655 = vmatpush2.bf16.msra.mxu0 0
    %2656 = vmatprep.subr.bf16.mxu0 0
    %2657 = vmatpush2.bf16.msra.mxu0 0
    %2658 = vmatprep.subr.bf16.mxu0 0
    %2659 = vmatpush2.bf16.msra.mxu0 0
    %2660 = vmatprep.mubr.bf16.mxu0 0
    %2661 = vmatmul.mubr.bf16.gmra.mxu0 %v2579
    %v2662 = vpop.f32.mrf.mxu0
    %v2663 = vadd.f32 0.0, %v2662
    %v2664 = vpop.f32.mrf.mxu0
    %v2665 = vpop.f32.mrf.mxu0
    %v2666 = vadd.f32 0.0, %v2665
    %v2667 = vpop.f32.mrf.mxu0
    %2668 = vdwg.mxu0
    %v2669 = vadd.f32 %v2267, %v2663
    %v2670 = vadd.f32 %v2268, %v2666
    %2671 = vmatprep.subr.mxu0 0.0
    %2672 = vmatpush1.xpose.msra.mxu0 0.0
    %2673 = vmatprep.subr.mxu0 0.0
    %2674 = vmatpush1.xpose.msra.mxu0 0.0
    %2675 = vmatprep.subr.mxu0 0.0
    %2676 = vmatpush1.xpose.msra.mxu0 0.0
    %2677 = vmatprep.subr.mxu0 0.0
    %2678 = vmatpush1.xpose.msra.mxu0 0.0
    %2679 = vmatprep.subr.mxu0 0.0
    %2680 = vmatpush1.xpose.msra.mxu0 0.0
    %2681 = vmatprep.subr.mxu0 0.0
    %2682 = vmatpush1.xpose.msra.mxu0 0.0
    %2683 = vmatprep.subr.mxu0 0.0
    %2684 = vmatpush1.xpose.msra.mxu0 0.0
    %2685 = vmatprep.subr.mxu0 0.0
    %2686 = vmatpush1.xpose.msra.mxu0 0.0
    %2687 = vmatprep.subr.mxu0 0.0
    %2688 = vmatpush1.xpose.msra.mxu0 0.0
    %2689 = vmatprep.subr.mxu0 0.0
    %2690 = vmatpush1.xpose.msra.mxu0 0.0
    %2691 = vmatprep.subr.mxu0 0.0
    %2692 = vmatpush1.xpose.msra.mxu0 0.0
    %2693 = vmatprep.subr.mxu0 0.0
    %2694 = vmatpush1.xpose.msra.mxu0 0.0
    %2695 = vmatprep.subr.mxu0 0.0
    %2696 = vmatpush1.xpose.msra.mxu0 0.0
    %2697 = vmatprep.subr.mxu0 0.0
    %2698 = vmatpush1.xpose.msra.mxu0 0.0
    %2699 = vmatprep.subr.mxu0 0.0
    %2700 = vmatpush1.xpose.msra.mxu0 0.0
    %2701 = vmatprep.subr.mxu0 0.0
    %2702 = vmatpush1.xpose.msra.mxu0 %v715
    %2703 = vmatprep.subr.mxu0 0.0
    %2704 = vmatpush2.xpose.msra.mxu0 0.0
    %2705 = vmatprep.subr.mxu0 0.0
    %2706 = vmatpush2.xpose.msra.mxu0 0.0
    %2707 = vmatprep.subr.mxu0 0.0
    %2708 = vmatpush2.xpose.msra.mxu0 0.0
    %2709 = vmatprep.subr.mxu0 0.0
    %2710 = vmatpush2.xpose.msra.mxu0 0.0
    %2711 = vmatprep.subr.mxu0 0.0
    %2712 = vmatpush2.xpose.msra.mxu0 0.0
    %2713 = vmatprep.subr.mxu0 0.0
    %2714 = vmatpush2.xpose.msra.mxu0 0.0
    %2715 = vmatprep.subr.mxu0 0.0
    %2716 = vmatpush2.xpose.msra.mxu0 0.0
    %2717 = vmatprep.subr.mxu0 0.0
    %2718 = vmatpush2.xpose.msra.mxu0 0.0
    %2719 = vmatprep.subr.mxu0 0.0
    %2720 = vmatpush2.xpose.msra.mxu0 0.0
    %2721 = vmatprep.subr.mxu0 0.0
    %2722 = vmatpush2.xpose.msra.mxu0 0.0
    %2723 = vmatprep.subr.mxu0 0.0
    %2724 = vmatpush2.xpose.msra.mxu0 0.0
    %2725 = vmatprep.subr.mxu0 0.0
    %2726 = vmatpush2.xpose.msra.mxu0 0.0
    %2727 = vmatprep.subr.mxu0 0.0
    %2728 = vmatpush2.xpose.msra.mxu0 0.0
    %2729 = vmatprep.subr.mxu0 0.0
    %2730 = vmatpush2.xpose.msra.mxu0 0.0
    %2731 = vmatprep.subr.mxu0 0.0
    %2732 = vmatpush2.xpose.msra.mxu0 0.0
    %2733 = vmatprep.subr.mxu0 0.0
    %2734 = vmatpush2.xpose.msra.mxu0 0.0
    %2735 = vmatprep.mubr.f32.mxu0 0.0
    %2736 = vmatmul.mubr.f32.gmra.mxu0 %v543
    %v2737 = vpop.f32.mrf.mxu0
    %v2738 = vadd.f32 0.0, %v2737
    %v2739 = vpop.f32.mrf.mxu0
    %2740 = vdwg.mxu0
    %2741 = vmatprep.subr.mxu0 0.0
    %2742 = vmatpush1.xpose.msra.mxu0 0.0
    %2743 = vmatprep.subr.mxu0 0.0
    %2744 = vmatpush1.xpose.msra.mxu0 0.0
    %2745 = vmatprep.subr.mxu0 0.0
    %2746 = vmatpush1.xpose.msra.mxu0 0.0
    %2747 = vmatprep.subr.mxu0 0.0
    %2748 = vmatpush1.xpose.msra.mxu0 0.0
    %2749 = vmatprep.subr.mxu0 0.0
    %2750 = vmatpush1.xpose.msra.mxu0 0.0
    %2751 = vmatprep.subr.mxu0 0.0
    %2752 = vmatpush1.xpose.msra.mxu0 0.0
    %2753 = vmatprep.subr.mxu0 0.0
    %2754 = vmatpush1.xpose.msra.mxu0 0.0
    %2755 = vmatprep.subr.mxu0 0.0
    %2756 = vmatpush1.xpose.msra.mxu0 0.0
    %2757 = vmatprep.subr.mxu0 0.0
    %2758 = vmatpush1.xpose.msra.mxu0 0.0
    %2759 = vmatprep.subr.mxu0 0.0
    %2760 = vmatpush1.xpose.msra.mxu0 0.0
    %2761 = vmatprep.subr.mxu0 0.0
    %2762 = vmatpush1.xpose.msra.mxu0 0.0
    %2763 = vmatprep.subr.mxu0 0.0
    %2764 = vmatpush1.xpose.msra.mxu0 0.0
    %2765 = vmatprep.subr.mxu0 0.0
    %2766 = vmatpush1.xpose.msra.mxu0 0.0
    %2767 = vmatprep.subr.mxu0 0.0
    %2768 = vmatpush1.xpose.msra.mxu0 0.0
    %2769 = vmatprep.subr.mxu0 0.0
    %2770 = vmatpush1.xpose.msra.mxu0 0.0
    %2771 = vmatprep.subr.mxu0 0.0
    %2772 = vmatpush1.xpose.msra.mxu0 %v719
    %2773 = vmatprep.subr.mxu0 0.0
    %2774 = vmatpush2.xpose.msra.mxu0 0.0
    %2775 = vmatprep.subr.mxu0 0.0
    %2776 = vmatpush2.xpose.msra.mxu0 0.0
    %2777 = vmatprep.subr.mxu0 0.0
    %2778 = vmatpush2.xpose.msra.mxu0 0.0
    %2779 = vmatprep.subr.mxu0 0.0
    %2780 = vmatpush2.xpose.msra.mxu0 0.0
    %2781 = vmatprep.subr.mxu0 0.0
    %2782 = vmatpush2.xpose.msra.mxu0 0.0
    %2783 = vmatprep.subr.mxu0 0.0
    %2784 = vmatpush2.xpose.msra.mxu0 0.0
    %2785 = vmatprep.subr.mxu0 0.0
    %2786 = vmatpush2.xpose.msra.mxu0 0.0
    %2787 = vmatprep.subr.mxu0 0.0
    %2788 = vmatpush2.xpose.msra.mxu0 0.0
    %2789 = vmatprep.subr.mxu0 0.0
    %2790 = vmatpush2.xpose.msra.mxu0 0.0
    %2791 = vmatprep.subr.mxu0 0.0
    %2792 = vmatpush2.xpose.msra.mxu0 0.0
    %2793 = vmatprep.subr.mxu0 0.0
    %2794 = vmatpush2.xpose.msra.mxu0 0.0
    %2795 = vmatprep.subr.mxu0 0.0
    %2796 = vmatpush2.xpose.msra.mxu0 0.0
    %2797 = vmatprep.subr.mxu0 0.0
    %2798 = vmatpush2.xpose.msra.mxu0 0.0
    %2799 = vmatprep.subr.mxu0 0.0
    %2800 = vmatpush2.xpose.msra.mxu0 0.0
    %2801 = vmatprep.subr.mxu0 0.0
    %2802 = vmatpush2.xpose.msra.mxu0 0.0
    %2803 = vmatprep.subr.mxu0 0.0
    %2804 = vmatpush2.xpose.msra.mxu0 0.0
    %2805 = vmatprep.mubr.f32.mxu0 0.0
    %2806 = vmatmul.mubr.f32.gmra.mxu0 %v547
    %v2807 = vpop.f32.mrf.mxu0
    %v2808 = vadd.f32 0.0, %v2807
    %v2809 = vpop.f32.mrf.mxu0
    %2810 = vdwg.mxu0
    %v2811 = vmul.f32 %v2738, 0.17677669
    %v2812 = vmul.f32 %v2808, 0.17677669
    %v2813 = vsel %vm1208, %v2811, -inf
    %2814 = vmax.xlane.f32.xlu0 %v2813
    %v2815 = vpop.xlane.xlu0 %2814
    %v2816 = vsel %vm1208, %v2812, -inf
    %2817 = vmax.xlane.f32.xlu0 %v2816
    %v2818 = vpop.xlane.xlu0 %2817
    %v2819 = vsub.f32 %v2811, %v2815
    %v2820 = vsub.f32 %v2812, %v2818
    %v2821 = vmul.f32 %v2819, 1.442695
    %v2822 = vpow.pop %v2821
    %v2823 = vmul.f32 %v2820, 1.442695
    %v2824 = vpow.pop %v2823
    %v2825 = vsel %vm1208, %v2822, 0.0
    %2826 = vadd.xlane.f32.xlu0 %v2825
    %v2827 = vpop.xlane.xlu0 %2826
    %v2828 = vsel %vm1208, %v2824, 0.0
    %2829 = vadd.xlane.f32.xlu0 %v2828
    %v2830 = vpop.xlane.xlu0 %2829
    %v2831 = vrcp.pop %v2827
    %v2832 = vrcp.pop %v2830
    %v2833 = vmul.f32 %v2822, %v2831
    %v2834 = vmul.f32 %v2824, %v2832
    %v2836 = vsel %vm1208, %v2833, 0
    %2838 = vmatprep.subr.mxu0 0.0
    %2839 = vmatpush1.msra.mxu0 0.0
    %2840 = vmatprep.subr.mxu0 0.0
    %2841 = vmatpush1.msra.mxu0 0.0
    %2842 = vmatprep.subr.mxu0 0.0
    %2843 = vmatpush1.msra.mxu0 0.0
    %2844 = vmatprep.subr.mxu0 0.0
    %2845 = vmatpush1.msra.mxu0 0.0
    %2846 = vmatprep.subr.mxu0 0.0
    %2847 = vmatpush1.msra.mxu0 0.0
    %2848 = vmatprep.subr.mxu0 0.0
    %2849 = vmatpush1.msra.mxu0 0.0
    %2850 = vmatprep.subr.mxu0 0.0
    %2851 = vmatpush1.msra.mxu0 0.0
    %2852 = vmatprep.subr.mxu0 0.0
    %2853 = vmatpush1.msra.mxu0 0.0
    %2854 = vmatprep.subr.mxu0 0.0
    %2855 = vmatpush1.msra.mxu0 0.0
    %2856 = vmatprep.subr.mxu0 0.0
    %2857 = vmatpush1.msra.mxu0 0.0
    %2858 = vmatprep.subr.mxu0 0.0
    %2859 = vmatpush1.msra.mxu0 0.0
    %2860 = vmatprep.subr.mxu0 0.0
    %2861 = vmatpush1.msra.mxu0 0.0
    %2862 = vmatprep.subr.mxu0 0.0
    %2863 = vmatpush1.msra.mxu0 0.0
    %2864 = vmatprep.subr.mxu0 0.0
    %2865 = vmatpush1.msra.mxu0 0.0
    %2866 = vmatprep.subr.mxu0 0.0
    %2867 = vmatpush1.msra.mxu0 0.0
    %2868 = vmatprep.subr.mxu0 0.0
    %2869 = vmatpush1.msra.mxu0 %v887
    %2870 = vmatprep.subr.mxu0 0.0
    %2871 = vmatpush2.msra.mxu0 0.0
    %2872 = vmatprep.subr.mxu0 0.0
    %2873 = vmatpush2.msra.mxu0 0.0
    %2874 = vmatprep.subr.mxu0 0.0
    %2875 = vmatpush2.msra.mxu0 0.0
    %2876 = vmatprep.subr.mxu0 0.0
    %2877 = vmatpush2.msra.mxu0 0.0
    %2878 = vmatprep.subr.mxu0 0.0
    %2879 = vmatpush2.msra.mxu0 0.0
    %2880 = vmatprep.subr.mxu0 0.0
    %2881 = vmatpush2.msra.mxu0 0.0
    %2882 = vmatprep.subr.mxu0 0.0
    %2883 = vmatpush2.msra.mxu0 0.0
    %2884 = vmatprep.subr.mxu0 0.0
    %2885 = vmatpush2.msra.mxu0 0.0
    %2886 = vmatprep.subr.mxu0 0.0
    %2887 = vmatpush2.msra.mxu0 0.0
    %2888 = vmatprep.subr.mxu0 0.0
    %2889 = vmatpush2.msra.mxu0 0.0
    %2890 = vmatprep.subr.mxu0 0.0
    %2891 = vmatpush2.msra.mxu0 0.0
    %2892 = vmatprep.subr.mxu0 0.0
    %2893 = vmatpush2.msra.mxu0 0.0
    %2894 = vmatprep.subr.mxu0 0.0
    %2895 = vmatpush2.msra.mxu0 0.0
    %2896 = vmatprep.subr.mxu0 0.0
    %2897 = vmatpush2.msra.mxu0 0.0
    %2898 = vmatprep.subr.mxu0 0.0
    %2899 = vmatpush2.msra.mxu0 0.0
    %2900 = vmatprep.subr.mxu0 0.0
    %2901 = vmatpush2.msra.mxu0 0.0
    %2902 = vmatprep.mubr.f32.mxu0 0.0
    %2903 = vmatmul.mubr.f32.gmra.mxu0 %v2836
    %v2904 = vpop.f32.mrf.mxu0
    %v2905 = vadd.f32 0.0, %v2904
    %v2906 = vpop.f32.mrf.mxu0
    %2907 = vdwg.mxu0
    %v2909 = vsel %vm1208, %v2834, 0
    %2911 = vmatprep.subr.mxu0 0.0
    %2912 = vmatpush1.msra.mxu0 0.0
    %2913 = vmatprep.subr.mxu0 0.0
    %2914 = vmatpush1.msra.mxu0 0.0
    %2915 = vmatprep.subr.mxu0 0.0
    %2916 = vmatpush1.msra.mxu0 0.0
    %2917 = vmatprep.subr.mxu0 0.0
    %2918 = vmatpush1.msra.mxu0 0.0
    %2919 = vmatprep.subr.mxu0 0.0
    %2920 = vmatpush1.msra.mxu0 0.0
    %2921 = vmatprep.subr.mxu0 0.0
    %2922 = vmatpush1.msra.mxu0 0.0
    %2923 = vmatprep.subr.mxu0 0.0
    %2924 = vmatpush1.msra.mxu0 0.0
    %2925 = vmatprep.subr.mxu0 0.0
    %2926 = vmatpush1.msra.mxu0 0.0
    %2927 = vmatprep.subr.mxu0 0.0
    %2928 = vmatpush1.msra.mxu0 0.0
    %2929 = vmatprep.subr.mxu0 0.0
    %2930 = vmatpush1.msra.mxu0 0.0
    %2931 = vmatprep.subr.mxu0 0.0
    %2932 = vmatpush1.msra.mxu0 0.0
    %2933 = vmatprep.subr.mxu0 0.0
    %2934 = vmatpush1.msra.mxu0 0.0
    %2935 = vmatprep.subr.mxu0 0.0
    %2936 = vmatpush1.msra.mxu0 0.0
    %2937 = vmatprep.subr.mxu0 0.0
    %2938 = vmatpush1.msra.mxu0 0.0
    %2939 = vmatprep.subr.mxu0 0.0
    %2940 = vmatpush1.msra.mxu0 0.0
    %2941 = vmatprep.subr.mxu0 0.0
    %2942 = vmatpush1.msra.mxu0 %v891
    %2943 = vmatprep.subr.mxu0 0.0
    %2944 = vmatpush2.msra.mxu0 0.0
    %2945 = vmatprep.subr.mxu0 0.0
    %2946 = vmatpush2.msra.mxu0 0.0
    %2947 = vmatprep.subr.mxu0 0.0
    %2948 = vmatpush2.msra.mxu0 0.0
    %2949 = vmatprep.subr.mxu0 0.0
    %2950 = vmatpush2.msra.mxu0 0.0
    %2951 = vmatprep.subr.mxu0 0.0
    %2952 = vmatpush2.msra.mxu0 0.0
    %2953 = vmatprep.subr.mxu0 0.0
    %2954 = vmatpush2.msra.mxu0 0.0
    %2955 = vmatprep.subr.mxu0 0.0
    %2956 = vmatpush2.msra.mxu0 0.0
    %2957 = vmatprep.subr.mxu0 0.0
    %2958 = vmatpush2.msra.mxu0 0.0
    %2959 = vmatprep.subr.mxu0 0.0
    %2960 = vmatpush2.msra.mxu0 0.0
    %2961 = vmatprep.subr.mxu0 0.0
    %2962 = vmatpush2.msra.mxu0 0.0
    %2963 = vmatprep.subr.mxu0 0.0
    %2964 = vmatpush2.msra.mxu0 0.0
    %2965 = vmatprep.subr.mxu0 0.0
    %2966 = vmatpush2.msra.mxu0 0.0
    %2967 = vmatprep.subr.mxu0 0.0
    %2968 = vmatpush2.msra.mxu0 0.0
    %2969 = vmatprep.subr.mxu0 0.0
    %2970 = vmatpush2.msra.mxu0 0.0
    %2971 = vmatprep.subr.mxu0 0.0
    %2972 = vmatpush2.msra.mxu0 0.0
    %2973 = vmatprep.subr.mxu0 0.0
    %2974 = vmatpush2.msra.mxu0 0.0
    %2975 = vmatprep.mubr.f32.mxu0 0.0
    %2976 = vmatmul.mubr.f32.gmra.mxu0 %v2909
    %v2977 = vpop.f32.mrf.mxu0
    %v2978 = vadd.f32 0.0, %v2977
    %v2979 = vpop.f32.mrf.mxu0
    %2980 = vdwg.mxu0
    %v2981 = vpack.c.bf16 %v2978, %v2905
    %v2998 = vunpack.c.l.b16 %v1002
    %v2999 = vunpack.c.l.b16 %v1003
    %v3000 = vunpack.c.l.b16 %v1004
    %v3001 = vunpack.c.l.b16 %v1005
    %v3002 = vunpack.c.l.b16 %v1006
    %v3003 = vunpack.c.l.b16 %v1007
    %v3004 = vunpack.c.l.b16 %v1008
    %v3005 = vunpack.c.l.b16 %v1009
    %v3006 = vunpack.c.l.b16 %v1010
    %v3007 = vunpack.c.l.b16 %v1011
    %v3008 = vunpack.c.l.b16 %v1012
    %v3009 = vunpack.c.l.b16 %v1013
    %v3010 = vunpack.c.l.b16 %v1014
    %v3011 = vunpack.c.l.b16 %v1015
    %v3012 = vunpack.c.l.b16 %v1016
    %v3013 = vunpack.c.l.b16 %v1017
    %v3014 = vpack.c.b16 %v2999, %v2998
    %v3015 = vpack.c.b16 %v3001, %v3000
    %v3016 = vpack.c.b16 %v3003, %v3002
    %v3017 = vpack.c.b16 %v3005, %v3004
    %v3018 = vpack.c.b16 %v3007, %v3006
    %v3019 = vpack.c.b16 %v3009, %v3008
    %v3020 = vpack.c.b16 %v3011, %v3010
    %v3021 = vpack.c.b16 %v3013, %v3012
    %3030 = vmatprep.subr.bf16.mxu0 0
    %3031 = vmatpush1.bf16.msra.mxu0 %v3021
    %3032 = vmatprep.subr.bf16.mxu0 0
    %3033 = vmatpush1.bf16.msra.mxu0 %v3020
    %3034 = vmatprep.subr.bf16.mxu0 0
    %3035 = vmatpush1.bf16.msra.mxu0 %v3019
    %3036 = vmatprep.subr.bf16.mxu0 0
    %3037 = vmatpush1.bf16.msra.mxu0 %v3018
    %3038 = vmatprep.subr.bf16.mxu0 0
    %3039 = vmatpush1.bf16.msra.mxu0 %v3017
    %3040 = vmatprep.subr.bf16.mxu0 0
    %3041 = vmatpush1.bf16.msra.mxu0 %v3016
    %3042 = vmatprep.subr.bf16.mxu0 0
    %3043 = vmatpush1.bf16.msra.mxu0 %v3015
    %3044 = vmatprep.subr.bf16.mxu0 0
    %3045 = vmatpush1.bf16.msra.mxu0 %v3014
    %3046 = vmatprep.subr.bf16.mxu0 0
    %3047 = vmatpush2.bf16.msra.mxu0 0
    %3048 = vmatprep.subr.bf16.mxu0 0
    %3049 = vmatpush2.bf16.msra.mxu0 0
    %3050 = vmatprep.subr.bf16.mxu0 0
    %3051 = vmatpush2.bf16.msra.mxu0 0
    %3052 = vmatprep.subr.bf16.mxu0 0
    %3053 = vmatpush2.bf16.msra.mxu0 0
    %3054 = vmatprep.subr.bf16.mxu0 0
    %3055 = vmatpush2.bf16.msra.mxu0 0
    %3056 = vmatprep.subr.bf16.mxu0 0
    %3057 = vmatpush2.bf16.msra.mxu0 0
    %3058 = vmatprep.subr.bf16.mxu0 0
    %3059 = vmatpush2.bf16.msra.mxu0 0
    %3060 = vmatprep.subr.bf16.mxu0 0
    %3061 = vmatpush2.bf16.msra.mxu0 0
    %3062 = vmatprep.mubr.bf16.mxu0 0
    %3063 = vmatmul.mubr.bf16.gmra.mxu0 %v2981
    %v3064 = vpop.f32.mrf.mxu0
    %v3065 = vadd.f32 0.0, %v3064
    %v3066 = vpop.f32.mrf.mxu0
    %v3067 = vpop.f32.mrf.mxu0
    %v3068 = vadd.f32 0.0, %v3067
    %v3069 = vpop.f32.mrf.mxu0
    %3070 = vdwg.mxu0
    %v3071 = vadd.f32 %v2669, %v3065
    %v3072 = vadd.f32 %v2670, %v3068
    %3073 = vmatprep.subr.mxu0 0.0
    %3074 = vmatpush1.xpose.msra.mxu0 0.0
    %3075 = vmatprep.subr.mxu0 0.0
    %3076 = vmatpush1.xpose.msra.mxu0 0.0
    %3077 = vmatprep.subr.mxu0 0.0
    %3078 = vmatpush1.xpose.msra.mxu0 0.0
    %3079 = vmatprep.subr.mxu0 0.0
    %3080 = vmatpush1.xpose.msra.mxu0 0.0
    %3081 = vmatprep.subr.mxu0 0.0
    %3082 = vmatpush1.xpose.msra.mxu0 0.0
    %3083 = vmatprep.subr.mxu0 0.0
    %3084 = vmatpush1.xpose.msra.mxu0 0.0
    %3085 = vmatprep.subr.mxu0 0.0
    %3086 = vmatpush1.xpose.msra.mxu0 0.0
    %3087 = vmatprep.subr.mxu0 0.0
    %3088 = vmatpush1.xpose.msra.mxu0 0.0
    %3089 = vmatprep.subr.mxu0 0.0
    %3090 = vmatpush1.xpose.msra.mxu0 0.0
    %3091 = vmatprep.subr.mxu0 0.0
    %3092 = vmatpush1.xpose.msra.mxu0 0.0
    %3093 = vmatprep.subr.mxu0 0.0
    %3094 = vmatpush1.xpose.msra.mxu0 0.0
    %3095 = vmatprep.subr.mxu0 0.0
    %3096 = vmatpush1.xpose.msra.mxu0 0.0
    %3097 = vmatprep.subr.mxu0 0.0
    %3098 = vmatpush1.xpose.msra.mxu0 0.0
    %3099 = vmatprep.subr.mxu0 0.0
    %3100 = vmatpush1.xpose.msra.mxu0 0.0
    %3101 = vmatprep.subr.mxu0 0.0
    %3102 = vmatpush1.xpose.msra.mxu0 0.0
    %3103 = vmatprep.subr.mxu0 0.0
    %3104 = vmatpush1.xpose.msra.mxu0 %v717
    %3105 = vmatprep.subr.mxu0 0.0
    %3106 = vmatpush2.xpose.msra.mxu0 0.0
    %3107 = vmatprep.subr.mxu0 0.0
    %3108 = vmatpush2.xpose.msra.mxu0 0.0
    %3109 = vmatprep.subr.mxu0 0.0
    %3110 = vmatpush2.xpose.msra.mxu0 0.0
    %3111 = vmatprep.subr.mxu0 0.0
    %3112 = vmatpush2.xpose.msra.mxu0 0.0
    %3113 = vmatprep.subr.mxu0 0.0
    %3114 = vmatpush2.xpose.msra.mxu0 0.0
    %3115 = vmatprep.subr.mxu0 0.0
    %3116 = vmatpush2.xpose.msra.mxu0 0.0
    %3117 = vmatprep.subr.mxu0 0.0
    %3118 = vmatpush2.xpose.msra.mxu0 0.0
    %3119 = vmatprep.subr.mxu0 0.0
    %3120 = vmatpush2.xpose.msra.mxu0 0.0
    %3121 = vmatprep.subr.mxu0 0.0
    %3122 = vmatpush2.xpose.msra.mxu0 0.0
    %3123 = vmatprep.subr.mxu0 0.0
    %3124 = vmatpush2.xpose.msra.mxu0 0.0
    %3125 = vmatprep.subr.mxu0 0.0
    %3126 = vmatpush2.xpose.msra.mxu0 0.0
    %3127 = vmatprep.subr.mxu0 0.0
    %3128 = vmatpush2.xpose.msra.mxu0 0.0
    %3129 = vmatprep.subr.mxu0 0.0
    %3130 = vmatpush2.xpose.msra.mxu0 0.0
    %3131 = vmatprep.subr.mxu0 0.0
    %3132 = vmatpush2.xpose.msra.mxu0 0.0
    %3133 = vmatprep.subr.mxu0 0.0
    %3134 = vmatpush2.xpose.msra.mxu0 0.0
    %3135 = vmatprep.subr.mxu0 0.0
    %3136 = vmatpush2.xpose.msra.mxu0 0.0
    %3137 = vmatprep.mubr.f32.mxu0 0.0
    %3138 = vmatmul.mubr.f32.gmra.mxu0 %v545
    %v3139 = vpop.f32.mrf.mxu0
    %v3140 = vadd.f32 0.0, %v3139
    %v3141 = vpop.f32.mrf.mxu0
    %3142 = vdwg.mxu0
    %3143 = vmatprep.subr.mxu0 0.0
    %3144 = vmatpush1.xpose.msra.mxu0 0.0
    %3145 = vmatprep.subr.mxu0 0.0
    %3146 = vmatpush1.xpose.msra.mxu0 0.0
    %3147 = vmatprep.subr.mxu0 0.0
    %3148 = vmatpush1.xpose.msra.mxu0 0.0
    %3149 = vmatprep.subr.mxu0 0.0
    %3150 = vmatpush1.xpose.msra.mxu0 0.0
    %3151 = vmatprep.subr.mxu0 0.0
    %3152 = vmatpush1.xpose.msra.mxu0 0.0
    %3153 = vmatprep.subr.mxu0 0.0
    %3154 = vmatpush1.xpose.msra.mxu0 0.0
    %3155 = vmatprep.subr.mxu0 0.0
    %3156 = vmatpush1.xpose.msra.mxu0 0.0
    %3157 = vmatprep.subr.mxu0 0.0
    %3158 = vmatpush1.xpose.msra.mxu0 0.0
    %3159 = vmatprep.subr.mxu0 0.0
    %3160 = vmatpush1.xpose.msra.mxu0 0.0
    %3161 = vmatprep.subr.mxu0 0.0
    %3162 = vmatpush1.xpose.msra.mxu0 0.0
    %3163 = vmatprep.subr.mxu0 0.0
    %3164 = vmatpush1.xpose.msra.mxu0 0.0
    %3165 = vmatprep.subr.mxu0 0.0
    %3166 = vmatpush1.xpose.msra.mxu0 0.0
    %3167 = vmatprep.subr.mxu0 0.0
    %3168 = vmatpush1.xpose.msra.mxu0 0.0
    %3169 = vmatprep.subr.mxu0 0.0
    %3170 = vmatpush1.xpose.msra.mxu0 0.0
    %3171 = vmatprep.subr.mxu0 0.0
    %3172 = vmatpush1.xpose.msra.mxu0 0.0
    %3173 = vmatprep.subr.mxu0 0.0
    %3174 = vmatpush1.xpose.msra.mxu0 %v721
    %3175 = vmatprep.subr.mxu0 0.0
    %3176 = vmatpush2.xpose.msra.mxu0 0.0
    %3177 = vmatprep.subr.mxu0 0.0
    %3178 = vmatpush2.xpose.msra.mxu0 0.0
    %3179 = vmatprep.subr.mxu0 0.0
    %3180 = vmatpush2.xpose.msra.mxu0 0.0
    %3181 = vmatprep.subr.mxu0 0.0
    %3182 = vmatpush2.xpose.msra.mxu0 0.0
    %3183 = vmatprep.subr.mxu0 0.0
    %3184 = vmatpush2.xpose.msra.mxu0 0.0
    %3185 = vmatprep.subr.mxu0 0.0
    %3186 = vmatpush2.xpose.msra.mxu0 0.0
    %3187 = vmatprep.subr.mxu0 0.0
    %3188 = vmatpush2.xpose.msra.mxu0 0.0
    %3189 = vmatprep.subr.mxu0 0.0
    %3190 = vmatpush2.xpose.msra.mxu0 0.0
    %3191 = vmatprep.subr.mxu0 0.0
    %3192 = vmatpush2.xpose.msra.mxu0 0.0
    %3193 = vmatprep.subr.mxu0 0.0
    %3194 = vmatpush2.xpose.msra.mxu0 0.0
    %3195 = vmatprep.subr.mxu0 0.0
    %3196 = vmatpush2.xpose.msra.mxu0 0.0
    %3197 = vmatprep.subr.mxu0 0.0
    %3198 = vmatpush2.xpose.msra.mxu0 0.0
    %3199 = vmatprep.subr.mxu0 0.0
    %3200 = vmatpush2.xpose.msra.mxu0 0.0
    %3201 = vmatprep.subr.mxu0 0.0
    %3202 = vmatpush2.xpose.msra.mxu0 0.0
    %3203 = vmatprep.subr.mxu0 0.0
    %3204 = vmatpush2.xpose.msra.mxu0 0.0
    %3205 = vmatprep.subr.mxu0 0.0
    %3206 = vmatpush2.xpose.msra.mxu0 0.0
    %3207 = vmatprep.mubr.f32.mxu0 0.0
    %3208 = vmatmul.mubr.f32.gmra.mxu0 %v549
    %v3209 = vpop.f32.mrf.mxu0
    %v3210 = vadd.f32 0.0, %v3209
    %v3211 = vpop.f32.mrf.mxu0
    %3212 = vdwg.mxu0
    %v3213 = vmul.f32 %v3140, 0.17677669
    %v3214 = vmul.f32 %v3210, 0.17677669
    %v3215 = vsel %vm1208, %v3213, -inf
    %3216 = vmax.xlane.f32.xlu0 %v3215
    %v3217 = vpop.xlane.xlu0 %3216
    %v3218 = vsel %vm1208, %v3214, -inf
    %3219 = vmax.xlane.f32.xlu0 %v3218
    %v3220 = vpop.xlane.xlu0 %3219
    %v3221 = vsub.f32 %v3213, %v3217
    %v3222 = vsub.f32 %v3214, %v3220
    %v3223 = vmul.f32 %v3221, 1.442695
    %v3224 = vpow.pop %v3223
    %v3225 = vmul.f32 %v3222, 1.442695
    %v3226 = vpow.pop %v3225
    %v3227 = vsel %vm1208, %v3224, 0.0
    %3228 = vadd.xlane.f32.xlu0 %v3227
    %v3229 = vpop.xlane.xlu0 %3228
    %v3230 = vsel %vm1208, %v3226, 0.0
    %3231 = vadd.xlane.f32.xlu0 %v3230
    %v3232 = vpop.xlane.xlu0 %3231
    %v3233 = vrcp.pop %v3229
    %v3234 = vrcp.pop %v3232
    %v3235 = vmul.f32 %v3224, %v3233
    %v3236 = vmul.f32 %v3226, %v3234
    %v3238 = vsel %vm1208, %v3235, 0
    %3240 = vmatprep.subr.mxu0 0.0
    %3241 = vmatpush1.msra.mxu0 0.0
    %3242 = vmatprep.subr.mxu0 0.0
    %3243 = vmatpush1.msra.mxu0 0.0
    %3244 = vmatprep.subr.mxu0 0.0
    %3245 = vmatpush1.msra.mxu0 0.0
    %3246 = vmatprep.subr.mxu0 0.0
    %3247 = vmatpush1.msra.mxu0 0.0
    %3248 = vmatprep.subr.mxu0 0.0
    %3249 = vmatpush1.msra.mxu0 0.0
    %3250 = vmatprep.subr.mxu0 0.0
    %3251 = vmatpush1.msra.mxu0 0.0
    %3252 = vmatprep.subr.mxu0 0.0
    %3253 = vmatpush1.msra.mxu0 0.0
    %3254 = vmatprep.subr.mxu0 0.0
    %3255 = vmatpush1.msra.mxu0 0.0
    %3256 = vmatprep.subr.mxu0 0.0
    %3257 = vmatpush1.msra.mxu0 0.0
    %3258 = vmatprep.subr.mxu0 0.0
    %3259 = vmatpush1.msra.mxu0 0.0
    %3260 = vmatprep.subr.mxu0 0.0
    %3261 = vmatpush1.msra.mxu0 0.0
    %3262 = vmatprep.subr.mxu0 0.0
    %3263 = vmatpush1.msra.mxu0 0.0
    %3264 = vmatprep.subr.mxu0 0.0
    %3265 = vmatpush1.msra.mxu0 0.0
    %3266 = vmatprep.subr.mxu0 0.0
    %3267 = vmatpush1.msra.mxu0 0.0
    %3268 = vmatprep.subr.mxu0 0.0
    %3269 = vmatpush1.msra.mxu0 0.0
    %3270 = vmatprep.subr.mxu0 0.0
    %3271 = vmatpush1.msra.mxu0 %v889
    %3272 = vmatprep.subr.mxu0 0.0
    %3273 = vmatpush2.msra.mxu0 0.0
    %3274 = vmatprep.subr.mxu0 0.0
    %3275 = vmatpush2.msra.mxu0 0.0
    %3276 = vmatprep.subr.mxu0 0.0
    %3277 = vmatpush2.msra.mxu0 0.0
    %3278 = vmatprep.subr.mxu0 0.0
    %3279 = vmatpush2.msra.mxu0 0.0
    %3280 = vmatprep.subr.mxu0 0.0
    %3281 = vmatpush2.msra.mxu0 0.0
    %3282 = vmatprep.subr.mxu0 0.0
    %3283 = vmatpush2.msra.mxu0 0.0
    %3284 = vmatprep.subr.mxu0 0.0
    %3285 = vmatpush2.msra.mxu0 0.0
    %3286 = vmatprep.subr.mxu0 0.0
    %3287 = vmatpush2.msra.mxu0 0.0
    %3288 = vmatprep.subr.mxu0 0.0
    %3289 = vmatpush2.msra.mxu0 0.0
    %3290 = vmatprep.subr.mxu0 0.0
    %3291 = vmatpush2.msra.mxu0 0.0
    %3292 = vmatprep.subr.mxu0 0.0
    %3293 = vmatpush2.msra.mxu0 0.0
    %3294 = vmatprep.subr.mxu0 0.0
    %3295 = vmatpush2.msra.mxu0 0.0
    %3296 = vmatprep.subr.mxu0 0.0
    %3297 = vmatpush2.msra.mxu0 0.0
    %3298 = vmatprep.subr.mxu0 0.0
    %3299 = vmatpush2.msra.mxu0 0.0
    %3300 = vmatprep.subr.mxu0 0.0
    %3301 = vmatpush2.msra.mxu0 0.0
    %3302 = vmatprep.subr.mxu0 0.0
    %3303 = vmatpush2.msra.mxu0 0.0
    %3304 = vmatprep.mubr.f32.mxu0 0.0
    %3305 = vmatmul.mubr.f32.gmra.mxu0 %v3238
    %v3306 = vpop.f32.mrf.mxu0
    %v3307 = vadd.f32 0.0, %v3306
    %v3308 = vpop.f32.mrf.mxu0
    %3309 = vdwg.mxu0
    %v3311 = vsel %vm1208, %v3236, 0
    %3313 = vmatprep.subr.mxu0 0.0
    %3314 = vmatpush1.msra.mxu0 0.0
    %3315 = vmatprep.subr.mxu0 0.0
    %3316 = vmatpush1.msra.mxu0 0.0
    %3317 = vmatprep.subr.mxu0 0.0
    %3318 = vmatpush1.msra.mxu0 0.0
    %3319 = vmatprep.subr.mxu0 0.0
    %3320 = vmatpush1.msra.mxu0 0.0
    %3321 = vmatprep.subr.mxu0 0.0
    %3322 = vmatpush1.msra.mxu0 0.0
    %3323 = vmatprep.subr.mxu0 0.0
    %3324 = vmatpush1.msra.mxu0 0.0
    %3325 = vmatprep.subr.mxu0 0.0
    %3326 = vmatpush1.msra.mxu0 0.0
    %3327 = vmatprep.subr.mxu0 0.0
    %3328 = vmatpush1.msra.mxu0 0.0
    %3329 = vmatprep.subr.mxu0 0.0
    %3330 = vmatpush1.msra.mxu0 0.0
    %3331 = vmatprep.subr.mxu0 0.0
    %3332 = vmatpush1.msra.mxu0 0.0
    %3333 = vmatprep.subr.mxu0 0.0
    %3334 = vmatpush1.msra.mxu0 0.0
    %3335 = vmatprep.subr.mxu0 0.0
    %3336 = vmatpush1.msra.mxu0 0.0
    %3337 = vmatprep.subr.mxu0 0.0
    %3338 = vmatpush1.msra.mxu0 0.0
    %3339 = vmatprep.subr.mxu0 0.0
    %3340 = vmatpush1.msra.mxu0 0.0
    %3341 = vmatprep.subr.mxu0 0.0
    %3342 = vmatpush1.msra.mxu0 0.0
    %3343 = vmatprep.subr.mxu0 0.0
    %3344 = vmatpush1.msra.mxu0 %v893
    %3345 = vmatprep.subr.mxu0 0.0
    %3346 = vmatpush2.msra.mxu0 0.0
    %3347 = vmatprep.subr.mxu0 0.0
    %3348 = vmatpush2.msra.mxu0 0.0
    %3349 = vmatprep.subr.mxu0 0.0
    %3350 = vmatpush2.msra.mxu0 0.0
    %3351 = vmatprep.subr.mxu0 0.0
    %3352 = vmatpush2.msra.mxu0 0.0
    %3353 = vmatprep.subr.mxu0 0.0
    %3354 = vmatpush2.msra.mxu0 0.0
    %3355 = vmatprep.subr.mxu0 0.0
    %3356 = vmatpush2.msra.mxu0 0.0
    %3357 = vmatprep.subr.mxu0 0.0
    %3358 = vmatpush2.msra.mxu0 0.0
    %3359 = vmatprep.subr.mxu0 0.0
    %3360 = vmatpush2.msra.mxu0 0.0
    %3361 = vmatprep.subr.mxu0 0.0
    %3362 = vmatpush2.msra.mxu0 0.0
    %3363 = vmatprep.subr.mxu0 0.0
    %3364 = vmatpush2.msra.mxu0 0.0
    %3365 = vmatprep.subr.mxu0 0.0
    %3366 = vmatpush2.msra.mxu0 0.0
    %3367 = vmatprep.subr.mxu0 0.0
    %3368 = vmatpush2.msra.mxu0 0.0
    %3369 = vmatprep.subr.mxu0 0.0
    %3370 = vmatpush2.msra.mxu0 0.0
    %3371 = vmatprep.subr.mxu0 0.0
    %3372 = vmatpush2.msra.mxu0 0.0
    %3373 = vmatprep.subr.mxu0 0.0
    %3374 = vmatpush2.msra.mxu0 0.0
    %3375 = vmatprep.subr.mxu0 0.0
    %3376 = vmatpush2.msra.mxu0 0.0
    %3377 = vmatprep.mubr.f32.mxu0 0.0
    %3378 = vmatmul.mubr.f32.gmra.mxu0 %v3311
    %v3379 = vpop.f32.mrf.mxu0
    %v3380 = vadd.f32 0.0, %v3379
    %v3381 = vpop.f32.mrf.mxu0
    %3382 = vdwg.mxu0
    %v3383 = vpack.c.bf16 %v3380, %v3307
    %v3400 = vunpack.c.l.b16 %v1018
    %v3401 = vunpack.c.l.b16 %v1019
    %v3402 = vunpack.c.l.b16 %v1020
    %v3403 = vunpack.c.l.b16 %v1021
    %v3404 = vunpack.c.l.b16 %v1022
    %v3405 = vunpack.c.l.b16 %v1023
    %v3406 = vunpack.c.l.b16 %v1024
    %v3407 = vunpack.c.l.b16 %v1025
    %v3408 = vunpack.c.l.b16 %v1026
    %v3409 = vunpack.c.l.b16 %v1027
    %v3410 = vunpack.c.l.b16 %v1028
    %v3411 = vunpack.c.l.b16 %v1029
    %v3412 = vunpack.c.l.b16 %v1030
    %v3413 = vunpack.c.l.b16 %v1031
    %v3414 = vunpack.c.l.b16 %v1032
    %v3415 = vunpack.c.l.b16 %v1033
    %v3416 = vpack.c.b16 %v3401, %v3400
    %v3417 = vpack.c.b16 %v3403, %v3402
    %v3418 = vpack.c.b16 %v3405, %v3404
    %v3419 = vpack.c.b16 %v3407, %v3406
    %v3420 = vpack.c.b16 %v3409, %v3408
    %v3421 = vpack.c.b16 %v3411, %v3410
    %v3422 = vpack.c.b16 %v3413, %v3412
    %v3423 = vpack.c.b16 %v3415, %v3414
    %3432 = vmatprep.subr.bf16.mxu0 0
    %3433 = vmatpush1.bf16.msra.mxu0 %v3423
    %3434 = vmatprep.subr.bf16.mxu0 0
    %3435 = vmatpush1.bf16.msra.mxu0 %v3422
    %3436 = vmatprep.subr.bf16.mxu0 0
    %3437 = vmatpush1.bf16.msra.mxu0 %v3421
    %3438 = vmatprep.subr.bf16.mxu0 0
    %3439 = vmatpush1.bf16.msra.mxu0 %v3420
    %3440 = vmatprep.subr.bf16.mxu0 0
    %3441 = vmatpush1.bf16.msra.mxu0 %v3419
    %3442 = vmatprep.subr.bf16.mxu0 0
    %3443 = vmatpush1.bf16.msra.mxu0 %v3418
    %3444 = vmatprep.subr.bf16.mxu0 0
    %3445 = vmatpush1.bf16.msra.mxu0 %v3417
    %3446 = vmatprep.subr.bf16.mxu0 0
    %3447 = vmatpush1.bf16.msra.mxu0 %v3416
    %3448 = vmatprep.subr.bf16.mxu0 0
    %3449 = vmatpush2.bf16.msra.mxu0 0
    %3450 = vmatprep.subr.bf16.mxu0 0
    %3451 = vmatpush2.bf16.msra.mxu0 0
    %3452 = vmatprep.subr.bf16.mxu0 0
    %3453 = vmatpush2.bf16.msra.mxu0 0
    %3454 = vmatprep.subr.bf16.mxu0 0
    %3455 = vmatpush2.bf16.msra.mxu0 0
    %3456 = vmatprep.subr.bf16.mxu0 0
    %3457 = vmatpush2.bf16.msra.mxu0 0
    %3458 = vmatprep.subr.bf16.mxu0 0
    %3459 = vmatpush2.bf16.msra.mxu0 0
    %3460 = vmatprep.subr.bf16.mxu0 0
    %3461 = vmatpush2.bf16.msra.mxu0 0
    %3462 = vmatprep.subr.bf16.mxu0 0
    %3463 = vmatpush2.bf16.msra.mxu0 0
    %3464 = vmatprep.mubr.bf16.mxu0 0
    %3465 = vmatmul.mubr.bf16.gmra.mxu0 %v3383
    %v3466 = vpop.f32.mrf.mxu0
    %v3467 = vadd.f32 0.0, %v3466
    %v3468 = vpop.f32.mrf.mxu0
    %v3469 = vpop.f32.mrf.mxu0
    %v3470 = vadd.f32 0.0, %v3469
    %v3471 = vpop.f32.mrf.mxu0
    %3472 = vdwg.mxu0
    %v3473 = vadd.f32 %v3071, %v3467
    %v3474 = vadd.f32 %v3072, %v3470
    %3475 = vmatprep.subr.mxu0 0.0
    %3476 = vmatpush1.xpose.msra.mxu0 0.0
    %3477 = vmatprep.subr.mxu0 0.0
    %3478 = vmatpush1.xpose.msra.mxu0 0.0
    %3479 = vmatprep.subr.mxu0 0.0
    %3480 = vmatpush1.xpose.msra.mxu0 0.0
    %3481 = vmatprep.subr.mxu0 0.0
    %3482 = vmatpush1.xpose.msra.mxu0 0.0
    %3483 = vmatprep.subr.mxu0 0.0
    %3484 = vmatpush1.xpose.msra.mxu0 0.0
    %3485 = vmatprep.subr.mxu0 0.0
    %3486 = vmatpush1.xpose.msra.mxu0 0.0
    %3487 = vmatprep.subr.mxu0 0.0
    %3488 = vmatpush1.xpose.msra.mxu0 0.0
    %3489 = vmatprep.subr.mxu0 0.0
    %3490 = vmatpush1.xpose.msra.mxu0 0.0
    %3491 = vmatprep.subr.mxu0 0.0
    %3492 = vmatpush1.xpose.msra.mxu0 0.0
    %3493 = vmatprep.subr.mxu0 0.0
    %3494 = vmatpush1.xpose.msra.mxu0 0.0
    %3495 = vmatprep.subr.mxu0 0.0
    %3496 = vmatpush1.xpose.msra.mxu0 0.0
    %3497 = vmatprep.subr.mxu0 0.0
    %3498 = vmatpush1.xpose.msra.mxu0 0.0
    %3499 = vmatprep.subr.mxu0 0.0
    %3500 = vmatpush1.xpose.msra.mxu0 0.0
    %3501 = vmatprep.subr.mxu0 0.0
    %3502 = vmatpush1.xpose.msra.mxu0 0.0
    %3503 = vmatprep.subr.mxu0 0.0
    %3504 = vmatpush1.xpose.msra.mxu0 0.0
    %3505 = vmatprep.subr.mxu0 0.0
    %3506 = vmatpush1.xpose.msra.mxu0 %v758
    %3507 = vmatprep.subr.mxu0 0.0
    %3508 = vmatpush2.xpose.msra.mxu0 0.0
    %3509 = vmatprep.subr.mxu0 0.0
    %3510 = vmatpush2.xpose.msra.mxu0 0.0
    %3511 = vmatprep.subr.mxu0 0.0
    %3512 = vmatpush2.xpose.msra.mxu0 0.0
    %3513 = vmatprep.subr.mxu0 0.0
    %3514 = vmatpush2.xpose.msra.mxu0 0.0
    %3515 = vmatprep.subr.mxu0 0.0
    %3516 = vmatpush2.xpose.msra.mxu0 0.0
    %3517 = vmatprep.subr.mxu0 0.0
    %3518 = vmatpush2.xpose.msra.mxu0 0.0
    %3519 = vmatprep.subr.mxu0 0.0
    %3520 = vmatpush2.xpose.msra.mxu0 0.0
    %3521 = vmatprep.subr.mxu0 0.0
    %3522 = vmatpush2.xpose.msra.mxu0 0.0
    %3523 = vmatprep.subr.mxu0 0.0
    %3524 = vmatpush2.xpose.msra.mxu0 0.0
    %3525 = vmatprep.subr.mxu0 0.0
    %3526 = vmatpush2.xpose.msra.mxu0 0.0
    %3527 = vmatprep.subr.mxu0 0.0
    %3528 = vmatpush2.xpose.msra.mxu0 0.0
    %3529 = vmatprep.subr.mxu0 0.0
    %3530 = vmatpush2.xpose.msra.mxu0 0.0
    %3531 = vmatprep.subr.mxu0 0.0
    %3532 = vmatpush2.xpose.msra.mxu0 0.0
    %3533 = vmatprep.subr.mxu0 0.0
    %3534 = vmatpush2.xpose.msra.mxu0 0.0
    %3535 = vmatprep.subr.mxu0 0.0
    %3536 = vmatpush2.xpose.msra.mxu0 0.0
    %3537 = vmatprep.subr.mxu0 0.0
    %3538 = vmatpush2.xpose.msra.mxu0 0.0
    %3539 = vmatprep.mubr.f32.mxu0 0.0
    %3540 = vmatmul.mubr.f32.gmra.mxu0 %v586
    %v3541 = vpop.f32.mrf.mxu0
    %v3542 = vadd.f32 0.0, %v3541
    %v3543 = vpop.f32.mrf.mxu0
    %3544 = vdwg.mxu0
    %3545 = vmatprep.subr.mxu0 0.0
    %3546 = vmatpush1.xpose.msra.mxu0 0.0
    %3547 = vmatprep.subr.mxu0 0.0
    %3548 = vmatpush1.xpose.msra.mxu0 0.0
    %3549 = vmatprep.subr.mxu0 0.0
    %3550 = vmatpush1.xpose.msra.mxu0 0.0
    %3551 = vmatprep.subr.mxu0 0.0
    %3552 = vmatpush1.xpose.msra.mxu0 0.0
    %3553 = vmatprep.subr.mxu0 0.0
    %3554 = vmatpush1.xpose.msra.mxu0 0.0
    %3555 = vmatprep.subr.mxu0 0.0
    %3556 = vmatpush1.xpose.msra.mxu0 0.0
    %3557 = vmatprep.subr.mxu0 0.0
    %3558 = vmatpush1.xpose.msra.mxu0 0.0
    %3559 = vmatprep.subr.mxu0 0.0
    %3560 = vmatpush1.xpose.msra.mxu0 0.0
    %3561 = vmatprep.subr.mxu0 0.0
    %3562 = vmatpush1.xpose.msra.mxu0 0.0
    %3563 = vmatprep.subr.mxu0 0.0
    %3564 = vmatpush1.xpose.msra.mxu0 0.0
    %3565 = vmatprep.subr.mxu0 0.0
    %3566 = vmatpush1.xpose.msra.mxu0 0.0
    %3567 = vmatprep.subr.mxu0 0.0
    %3568 = vmatpush1.xpose.msra.mxu0 0.0
    %3569 = vmatprep.subr.mxu0 0.0
    %3570 = vmatpush1.xpose.msra.mxu0 0.0
    %3571 = vmatprep.subr.mxu0 0.0
    %3572 = vmatpush1.xpose.msra.mxu0 0.0
    %3573 = vmatprep.subr.mxu0 0.0
    %3574 = vmatpush1.xpose.msra.mxu0 0.0
    %3575 = vmatprep.subr.mxu0 0.0
    %3576 = vmatpush1.xpose.msra.mxu0 %v762
    %3577 = vmatprep.subr.mxu0 0.0
    %3578 = vmatpush2.xpose.msra.mxu0 0.0
    %3579 = vmatprep.subr.mxu0 0.0
    %3580 = vmatpush2.xpose.msra.mxu0 0.0
    %3581 = vmatprep.subr.mxu0 0.0
    %3582 = vmatpush2.xpose.msra.mxu0 0.0
    %3583 = vmatprep.subr.mxu0 0.0
    %3584 = vmatpush2.xpose.msra.mxu0 0.0
    %3585 = vmatprep.subr.mxu0 0.0
    %3586 = vmatpush2.xpose.msra.mxu0 0.0
    %3587 = vmatprep.subr.mxu0 0.0
    %3588 = vmatpush2.xpose.msra.mxu0 0.0
    %3589 = vmatprep.subr.mxu0 0.0
    %3590 = vmatpush2.xpose.msra.mxu0 0.0
    %3591 = vmatprep.subr.mxu0 0.0
    %3592 = vmatpush2.xpose.msra.mxu0 0.0
    %3593 = vmatprep.subr.mxu0 0.0
    %3594 = vmatpush2.xpose.msra.mxu0 0.0
    %3595 = vmatprep.subr.mxu0 0.0
    %3596 = vmatpush2.xpose.msra.mxu0 0.0
    %3597 = vmatprep.subr.mxu0 0.0
    %3598 = vmatpush2.xpose.msra.mxu0 0.0
    %3599 = vmatprep.subr.mxu0 0.0
    %3600 = vmatpush2.xpose.msra.mxu0 0.0
    %3601 = vmatprep.subr.mxu0 0.0
    %3602 = vmatpush2.xpose.msra.mxu0 0.0
    %3603 = vmatprep.subr.mxu0 0.0
    %3604 = vmatpush2.xpose.msra.mxu0 0.0
    %3605 = vmatprep.subr.mxu0 0.0
    %3606 = vmatpush2.xpose.msra.mxu0 0.0
    %3607 = vmatprep.subr.mxu0 0.0
    %3608 = vmatpush2.xpose.msra.mxu0 0.0
    %3609 = vmatprep.mubr.f32.mxu0 0.0
    %3610 = vmatmul.mubr.f32.gmra.mxu0 %v590
    %v3611 = vpop.f32.mrf.mxu0
    %v3612 = vadd.f32 0.0, %v3611
    %v3613 = vpop.f32.mrf.mxu0
    %3614 = vdwg.mxu0
    %v3615 = vmul.f32 %v3542, 0.17677669
    %v3616 = vmul.f32 %v3612, 0.17677669
    %v3617 = vsel %vm1208, %v3615, -inf
    %3618 = vmax.xlane.f32.xlu0 %v3617
    %v3619 = vpop.xlane.xlu0 %3618
    %v3620 = vsel %vm1208, %v3616, -inf
    %3621 = vmax.xlane.f32.xlu0 %v3620
    %v3622 = vpop.xlane.xlu0 %3621
    %v3623 = vsub.f32 %v3615, %v3619
    %v3624 = vsub.f32 %v3616, %v3622
    %v3625 = vmul.f32 %v3623, 1.442695
    %v3626 = vpow.pop %v3625
    %v3627 = vmul.f32 %v3624, 1.442695
    %v3628 = vpow.pop %v3627
    %v3629 = vsel %vm1208, %v3626, 0.0
    %3630 = vadd.xlane.f32.xlu0 %v3629
    %v3631 = vpop.xlane.xlu0 %3630
    %v3632 = vsel %vm1208, %v3628, 0.0
    %3633 = vadd.xlane.f32.xlu0 %v3632
    %v3634 = vpop.xlane.xlu0 %3633
    %v3635 = vrcp.pop %v3631
    %v3636 = vrcp.pop %v3634
    %v3637 = vmul.f32 %v3626, %v3635
    %v3638 = vmul.f32 %v3628, %v3636
    %v3640 = vsel %vm1208, %v3637, 0
    %3642 = vmatprep.subr.mxu0 0.0
    %3643 = vmatpush1.msra.mxu0 0.0
    %3644 = vmatprep.subr.mxu0 0.0
    %3645 = vmatpush1.msra.mxu0 0.0
    %3646 = vmatprep.subr.mxu0 0.0
    %3647 = vmatpush1.msra.mxu0 0.0
    %3648 = vmatprep.subr.mxu0 0.0
    %3649 = vmatpush1.msra.mxu0 0.0
    %3650 = vmatprep.subr.mxu0 0.0
    %3651 = vmatpush1.msra.mxu0 0.0
    %3652 = vmatprep.subr.mxu0 0.0
    %3653 = vmatpush1.msra.mxu0 0.0
    %3654 = vmatprep.subr.mxu0 0.0
    %3655 = vmatpush1.msra.mxu0 0.0
    %3656 = vmatprep.subr.mxu0 0.0
    %3657 = vmatpush1.msra.mxu0 0.0
    %3658 = vmatprep.subr.mxu0 0.0
    %3659 = vmatpush1.msra.mxu0 0.0
    %3660 = vmatprep.subr.mxu0 0.0
    %3661 = vmatpush1.msra.mxu0 0.0
    %3662 = vmatprep.subr.mxu0 0.0
    %3663 = vmatpush1.msra.mxu0 0.0
    %3664 = vmatprep.subr.mxu0 0.0
    %3665 = vmatpush1.msra.mxu0 0.0
    %3666 = vmatprep.subr.mxu0 0.0
    %3667 = vmatpush1.msra.mxu0 0.0
    %3668 = vmatprep.subr.mxu0 0.0
    %3669 = vmatpush1.msra.mxu0 0.0
    %3670 = vmatprep.subr.mxu0 0.0
    %3671 = vmatpush1.msra.mxu0 0.0
    %3672 = vmatprep.subr.mxu0 0.0
    %3673 = vmatpush1.msra.mxu0 %v930
    %3674 = vmatprep.subr.mxu0 0.0
    %3675 = vmatpush2.msra.mxu0 0.0
    %3676 = vmatprep.subr.mxu0 0.0
    %3677 = vmatpush2.msra.mxu0 0.0
    %3678 = vmatprep.subr.mxu0 0.0
    %3679 = vmatpush2.msra.mxu0 0.0
    %3680 = vmatprep.subr.mxu0 0.0
    %3681 = vmatpush2.msra.mxu0 0.0
    %3682 = vmatprep.subr.mxu0 0.0
    %3683 = vmatpush2.msra.mxu0 0.0
    %3684 = vmatprep.subr.mxu0 0.0
    %3685 = vmatpush2.msra.mxu0 0.0
    %3686 = vmatprep.subr.mxu0 0.0
    %3687 = vmatpush2.msra.mxu0 0.0
    %3688 = vmatprep.subr.mxu0 0.0
    %3689 = vmatpush2.msra.mxu0 0.0
    %3690 = vmatprep.subr.mxu0 0.0
    %3691 = vmatpush2.msra.mxu0 0.0
    %3692 = vmatprep.subr.mxu0 0.0
    %3693 = vmatpush2.msra.mxu0 0.0
    %3694 = vmatprep.subr.mxu0 0.0
    %3695 = vmatpush2.msra.mxu0 0.0
    %3696 = vmatprep.subr.mxu0 0.0
    %3697 = vmatpush2.msra.mxu0 0.0
    %3698 = vmatprep.subr.mxu0 0.0
    %3699 = vmatpush2.msra.mxu0 0.0
    %3700 = vmatprep.subr.mxu0 0.0
    %3701 = vmatpush2.msra.mxu0 0.0
    %3702 = vmatprep.subr.mxu0 0.0
    %3703 = vmatpush2.msra.mxu0 0.0
    %3704 = vmatprep.subr.mxu0 0.0
    %3705 = vmatpush2.msra.mxu0 0.0
    %3706 = vmatprep.mubr.f32.mxu0 0.0
    %3707 = vmatmul.mubr.f32.gmra.mxu0 %v3640
    %v3708 = vpop.f32.mrf.mxu0
    %v3709 = vadd.f32 0.0, %v3708
    %v3710 = vpop.f32.mrf.mxu0
    %3711 = vdwg.mxu0
    %v3713 = vsel %vm1208, %v3638, 0
    %3715 = vmatprep.subr.mxu0 0.0
    %3716 = vmatpush1.msra.mxu0 0.0
    %3717 = vmatprep.subr.mxu0 0.0
    %3718 = vmatpush1.msra.mxu0 0.0
    %3719 = vmatprep.subr.mxu0 0.0
    %3720 = vmatpush1.msra.mxu0 0.0
    %3721 = vmatprep.subr.mxu0 0.0
    %3722 = vmatpush1.msra.mxu0 0.0
    %3723 = vmatprep.subr.mxu0 0.0
    %3724 = vmatpush1.msra.mxu0 0.0
    %3725 = vmatprep.subr.mxu0 0.0
    %3726 = vmatpush1.msra.mxu0 0.0
    %3727 = vmatprep.subr.mxu0 0.0
    %3728 = vmatpush1.msra.mxu0 0.0
    %3729 = vmatprep.subr.mxu0 0.0
    %3730 = vmatpush1.msra.mxu0 0.0
    %3731 = vmatprep.subr.mxu0 0.0
    %3732 = vmatpush1.msra.mxu0 0.0
    %3733 = vmatprep.subr.mxu0 0.0
    %3734 = vmatpush1.msra.mxu0 0.0
    %3735 = vmatprep.subr.mxu0 0.0
    %3736 = vmatpush1.msra.mxu0 0.0
    %3737 = vmatprep.subr.mxu0 0.0
    %3738 = vmatpush1.msra.mxu0 0.0
    %3739 = vmatprep.subr.mxu0 0.0
    %3740 = vmatpush1.msra.mxu0 0.0
    %3741 = vmatprep.subr.mxu0 0.0
    %3742 = vmatpush1.msra.mxu0 0.0
    %3743 = vmatprep.subr.mxu0 0.0
    %3744 = vmatpush1.msra.mxu0 0.0
    %3745 = vmatprep.subr.mxu0 0.0
    %3746 = vmatpush1.msra.mxu0 %v934
    %3747 = vmatprep.subr.mxu0 0.0
    %3748 = vmatpush2.msra.mxu0 0.0
    %3749 = vmatprep.subr.mxu0 0.0
    %3750 = vmatpush2.msra.mxu0 0.0
    %3751 = vmatprep.subr.mxu0 0.0
    %3752 = vmatpush2.msra.mxu0 0.0
    %3753 = vmatprep.subr.mxu0 0.0
    %3754 = vmatpush2.msra.mxu0 0.0
    %3755 = vmatprep.subr.mxu0 0.0
    %3756 = vmatpush2.msra.mxu0 0.0
    %3757 = vmatprep.subr.mxu0 0.0
    %3758 = vmatpush2.msra.mxu0 0.0
    %3759 = vmatprep.subr.mxu0 0.0
    %3760 = vmatpush2.msra.mxu0 0.0
    %3761 = vmatprep.subr.mxu0 0.0
    %3762 = vmatpush2.msra.mxu0 0.0
    %3763 = vmatprep.subr.mxu0 0.0
    %3764 = vmatpush2.msra.mxu0 0.0
    %3765 = vmatprep.subr.mxu0 0.0
    %3766 = vmatpush2.msra.mxu0 0.0
    %3767 = vmatprep.subr.mxu0 0.0
    %3768 = vmatpush2.msra.mxu0 0.0
    %3769 = vmatprep.subr.mxu0 0.0
    %3770 = vmatpush2.msra.mxu0 0.0
    %3771 = vmatprep.subr.mxu0 0.0
    %3772 = vmatpush2.msra.mxu0 0.0
    %3773 = vmatprep.subr.mxu0 0.0
    %3774 = vmatpush2.msra.mxu0 0.0
    %3775 = vmatprep.subr.mxu0 0.0
    %3776 = vmatpush2.msra.mxu0 0.0
    %3777 = vmatprep.subr.mxu0 0.0
    %3778 = vmatpush2.msra.mxu0 0.0
    %3779 = vmatprep.mubr.f32.mxu0 0.0
    %3780 = vmatmul.mubr.f32.gmra.mxu0 %v3713
    %v3781 = vpop.f32.mrf.mxu0
    %v3782 = vadd.f32 0.0, %v3781
    %v3783 = vpop.f32.mrf.mxu0
    %3784 = vdwg.mxu0
    %v3785 = vpack.c.bf16 %v3782, %v3709
    %v3802 = vunpack.c.l.b16 %v1034
    %v3803 = vunpack.c.l.b16 %v1035
    %v3804 = vunpack.c.l.b16 %v1036
    %v3805 = vunpack.c.l.b16 %v1037
    %v3806 = vunpack.c.l.b16 %v1038
    %v3807 = vunpack.c.l.b16 %v1039
    %v3808 = vunpack.c.l.b16 %v1040
    %v3809 = vunpack.c.l.b16 %v1041
    %v3810 = vunpack.c.l.b16 %v1042
    %v3811 = vunpack.c.l.b16 %v1043
    %v3812 = vunpack.c.l.b16 %v1044
    %v3813 = vunpack.c.l.b16 %v1045
    %v3814 = vunpack.c.l.b16 %v1046
    %v3815 = vunpack.c.l.b16 %v1047
    %v3816 = vunpack.c.l.b16 %v1048
    %v3817 = vunpack.c.l.b16 %v1049
    %v3818 = vpack.c.b16 %v3803, %v3802
    %v3819 = vpack.c.b16 %v3805, %v3804
    %v3820 = vpack.c.b16 %v3807, %v3806
    %v3821 = vpack.c.b16 %v3809, %v3808
    %v3822 = vpack.c.b16 %v3811, %v3810
    %v3823 = vpack.c.b16 %v3813, %v3812
    %v3824 = vpack.c.b16 %v3815, %v3814
    %v3825 = vpack.c.b16 %v3817, %v3816
    %3834 = vmatprep.subr.bf16.mxu0 0
    %3835 = vmatpush1.bf16.msra.mxu0 %v3825
    %3836 = vmatprep.subr.bf16.mxu0 0
    %3837 = vmatpush1.bf16.msra.mxu0 %v3824
    %3838 = vmatprep.subr.bf16.mxu0 0
    %3839 = vmatpush1.bf16.msra.mxu0 %v3823
    %3840 = vmatprep.subr.bf16.mxu0 0
    %3841 = vmatpush1.bf16.msra.mxu0 %v3822
    %3842 = vmatprep.subr.bf16.mxu0 0
    %3843 = vmatpush1.bf16.msra.mxu0 %v3821
    %3844 = vmatprep.subr.bf16.mxu0 0
    %3845 = vmatpush1.bf16.msra.mxu0 %v3820
    %3846 = vmatprep.subr.bf16.mxu0 0
    %3847 = vmatpush1.bf16.msra.mxu0 %v3819
    %3848 = vmatprep.subr.bf16.mxu0 0
    %3849 = vmatpush1.bf16.msra.mxu0 %v3818
    %3850 = vmatprep.subr.bf16.mxu0 0
    %3851 = vmatpush2.bf16.msra.mxu0 0
    %3852 = vmatprep.subr.bf16.mxu0 0
    %3853 = vmatpush2.bf16.msra.mxu0 0
    %3854 = vmatprep.subr.bf16.mxu0 0
    %3855 = vmatpush2.bf16.msra.mxu0 0
    %3856 = vmatprep.subr.bf16.mxu0 0
    %3857 = vmatpush2.bf16.msra.mxu0 0
    %3858 = vmatprep.subr.bf16.mxu0 0
    %3859 = vmatpush2.bf16.msra.mxu0 0
    %3860 = vmatprep.subr.bf16.mxu0 0
    %3861 = vmatpush2.bf16.msra.mxu0 0
    %3862 = vmatprep.subr.bf16.mxu0 0
    %3863 = vmatpush2.bf16.msra.mxu0 0
    %3864 = vmatprep.subr.bf16.mxu0 0
    %3865 = vmatpush2.bf16.msra.mxu0 0
    %3866 = vmatprep.mubr.bf16.mxu0 0
    %3867 = vmatmul.mubr.bf16.gmra.mxu0 %v3785
    %v3868 = vpop.f32.mrf.mxu0
    %v3869 = vadd.f32 0.0, %v3868
    %v3870 = vpop.f32.mrf.mxu0
    %v3871 = vpop.f32.mrf.mxu0
    %v3872 = vadd.f32 0.0, %v3871
    %v3873 = vpop.f32.mrf.mxu0
    %3874 = vdwg.mxu0
    %v3875 = vadd.f32 %v3473, %v3869
    %v3876 = vadd.f32 %v3474, %v3872
    %3877 = vmatprep.subr.mxu0 0.0
    %3878 = vmatpush1.xpose.msra.mxu0 0.0
    %3879 = vmatprep.subr.mxu0 0.0
    %3880 = vmatpush1.xpose.msra.mxu0 0.0
    %3881 = vmatprep.subr.mxu0 0.0
    %3882 = vmatpush1.xpose.msra.mxu0 0.0
    %3883 = vmatprep.subr.mxu0 0.0
    %3884 = vmatpush1.xpose.msra.mxu0 0.0
    %3885 = vmatprep.subr.mxu0 0.0
    %3886 = vmatpush1.xpose.msra.mxu0 0.0
    %3887 = vmatprep.subr.mxu0 0.0
    %3888 = vmatpush1.xpose.msra.mxu0 0.0
    %3889 = vmatprep.subr.mxu0 0.0
    %3890 = vmatpush1.xpose.msra.mxu0 0.0
    %3891 = vmatprep.subr.mxu0 0.0
    %3892 = vmatpush1.xpose.msra.mxu0 0.0
    %3893 = vmatprep.subr.mxu0 0.0
    %3894 = vmatpush1.xpose.msra.mxu0 0.0
    %3895 = vmatprep.subr.mxu0 0.0
    %3896 = vmatpush1.xpose.msra.mxu0 0.0
    %3897 = vmatprep.subr.mxu0 0.0
    %3898 = vmatpush1.xpose.msra.mxu0 0.0
    %3899 = vmatprep.subr.mxu0 0.0
    %3900 = vmatpush1.xpose.msra.mxu0 0.0
    %3901 = vmatprep.subr.mxu0 0.0
    %3902 = vmatpush1.xpose.msra.mxu0 0.0
    %3903 = vmatprep.subr.mxu0 0.0
    %3904 = vmatpush1.xpose.msra.mxu0 0.0
    %3905 = vmatprep.subr.mxu0 0.0
    %3906 = vmatpush1.xpose.msra.mxu0 0.0
    %3907 = vmatprep.subr.mxu0 0.0
    %3908 = vmatpush1.xpose.msra.mxu0 %v760
    %3909 = vmatprep.subr.mxu0 0.0
    %3910 = vmatpush2.xpose.msra.mxu0 0.0
    %3911 = vmatprep.subr.mxu0 0.0
    %3912 = vmatpush2.xpose.msra.mxu0 0.0
    %3913 = vmatprep.subr.mxu0 0.0
    %3914 = vmatpush2.xpose.msra.mxu0 0.0
    %3915 = vmatprep.subr.mxu0 0.0
    %3916 = vmatpush2.xpose.msra.mxu0 0.0
    %3917 = vmatprep.subr.mxu0 0.0
    %3918 = vmatpush2.xpose.msra.mxu0 0.0
    %3919 = vmatprep.subr.mxu0 0.0
    %3920 = vmatpush2.xpose.msra.mxu0 0.0
    %3921 = vmatprep.subr.mxu0 0.0
    %3922 = vmatpush2.xpose.msra.mxu0 0.0
    %3923 = vmatprep.subr.mxu0 0.0
    %3924 = vmatpush2.xpose.msra.mxu0 0.0
    %3925 = vmatprep.subr.mxu0 0.0
    %3926 = vmatpush2.xpose.msra.mxu0 0.0
    %3927 = vmatprep.subr.mxu0 0.0
    %3928 = vmatpush2.xpose.msra.mxu0 0.0
    %3929 = vmatprep.subr.mxu0 0.0
    %3930 = vmatpush2.xpose.msra.mxu0 0.0
    %3931 = vmatprep.subr.mxu0 0.0
    %3932 = vmatpush2.xpose.msra.mxu0 0.0
    %3933 = vmatprep.subr.mxu0 0.0
    %3934 = vmatpush2.xpose.msra.mxu0 0.0
    %3935 = vmatprep.subr.mxu0 0.0
    %3936 = vmatpush2.xpose.msra.mxu0 0.0
    %3937 = vmatprep.subr.mxu0 0.0
    %3938 = vmatpush2.xpose.msra.mxu0 0.0
    %3939 = vmatprep.subr.mxu0 0.0
    %3940 = vmatpush2.xpose.msra.mxu0 0.0
    %3941 = vmatprep.mubr.f32.mxu0 0.0
    %3942 = vmatmul.mubr.f32.gmra.mxu0 %v588
    %v3943 = vpop.f32.mrf.mxu0
    %v3944 = vadd.f32 0.0, %v3943
    %v3945 = vpop.f32.mrf.mxu0
    %3946 = vdwg.mxu0
    %3947 = vmatprep.subr.mxu0 0.0
    %3948 = vmatpush1.xpose.msra.mxu0 0.0
    %3949 = vmatprep.subr.mxu0 0.0
    %3950 = vmatpush1.xpose.msra.mxu0 0.0
    %3951 = vmatprep.subr.mxu0 0.0
    %3952 = vmatpush1.xpose.msra.mxu0 0.0
    %3953 = vmatprep.subr.mxu0 0.0
    %3954 = vmatpush1.xpose.msra.mxu0 0.0
    %3955 = vmatprep.subr.mxu0 0.0
    %3956 = vmatpush1.xpose.msra.mxu0 0.0
    %3957 = vmatprep.subr.mxu0 0.0
    %3958 = vmatpush1.xpose.msra.mxu0 0.0
    %3959 = vmatprep.subr.mxu0 0.0
    %3960 = vmatpush1.xpose.msra.mxu0 0.0
    %3961 = vmatprep.subr.mxu0 0.0
    %3962 = vmatpush1.xpose.msra.mxu0 0.0
    %3963 = vmatprep.subr.mxu0 0.0
    %3964 = vmatpush1.xpose.msra.mxu0 0.0
    %3965 = vmatprep.subr.mxu0 0.0
    %3966 = vmatpush1.xpose.msra.mxu0 0.0
    %3967 = vmatprep.subr.mxu0 0.0
    %3968 = vmatpush1.xpose.msra.mxu0 0.0
    %3969 = vmatprep.subr.mxu0 0.0
    %3970 = vmatpush1.xpose.msra.mxu0 0.0
    %3971 = vmatprep.subr.mxu0 0.0
    %3972 = vmatpush1.xpose.msra.mxu0 0.0
    %3973 = vmatprep.subr.mxu0 0.0
    %3974 = vmatpush1.xpose.msra.mxu0 0.0
    %3975 = vmatprep.subr.mxu0 0.0
    %3976 = vmatpush1.xpose.msra.mxu0 0.0
    %3977 = vmatprep.subr.mxu0 0.0
    %3978 = vmatpush1.xpose.msra.mxu0 %v764
    %3979 = vmatprep.subr.mxu0 0.0
    %3980 = vmatpush2.xpose.msra.mxu0 0.0
    %3981 = vmatprep.subr.mxu0 0.0
    %3982 = vmatpush2.xpose.msra.mxu0 0.0
    %3983 = vmatprep.subr.mxu0 0.0
    %3984 = vmatpush2.xpose.msra.mxu0 0.0
    %3985 = vmatprep.subr.mxu0 0.0
    %3986 = vmatpush2.xpose.msra.mxu0 0.0
    %3987 = vmatprep.subr.mxu0 0.0
    %3988 = vmatpush2.xpose.msra.mxu0 0.0
    %3989 = vmatprep.subr.mxu0 0.0
    %3990 = vmatpush2.xpose.msra.mxu0 0.0
    %3991 = vmatprep.subr.mxu0 0.0
    %3992 = vmatpush2.xpose.msra.mxu0 0.0
    %3993 = vmatprep.subr.mxu0 0.0
    %3994 = vmatpush2.xpose.msra.mxu0 0.0
    %3995 = vmatprep.subr.mxu0 0.0
    %3996 = vmatpush2.xpose.msra.mxu0 0.0
    %3997 = vmatprep.subr.mxu0 0.0
    %3998 = vmatpush2.xpose.msra.mxu0 0.0
    %3999 = vmatprep.subr.mxu0 0.0
    %4000 = vmatpush2.xpose.msra.mxu0 0.0
    %4001 = vmatprep.subr.mxu0 0.0
    %4002 = vmatpush2.xpose.msra.mxu0 0.0
    %4003 = vmatprep.subr.mxu0 0.0
    %4004 = vmatpush2.xpose.msra.mxu0 0.0
    %4005 = vmatprep.subr.mxu0 0.0
    %4006 = vmatpush2.xpose.msra.mxu0 0.0
    %4007 = vmatprep.subr.mxu0 0.0
    %4008 = vmatpush2.xpose.msra.mxu0 0.0
    %4009 = vmatprep.subr.mxu0 0.0
    %4010 = vmatpush2.xpose.msra.mxu0 0.0
    %4011 = vmatprep.mubr.f32.mxu0 0.0
    %4012 = vmatmul.mubr.f32.gmra.mxu0 %v592
    %v4013 = vpop.f32.mrf.mxu0
    %v4014 = vadd.f32 0.0, %v4013
    %v4015 = vpop.f32.mrf.mxu0
    %4016 = vdwg.mxu0
    %v4017 = vmul.f32 %v3944, 0.17677669
    %v4018 = vmul.f32 %v4014, 0.17677669
    %v4019 = vsel %vm1208, %v4017, -inf
    %4020 = vmax.xlane.f32.xlu0 %v4019
    %v4021 = vpop.xlane.xlu0 %4020
    %v4022 = vsel %vm1208, %v4018, -inf
    %4023 = vmax.xlane.f32.xlu0 %v4022
    %v4024 = vpop.xlane.xlu0 %4023
    %v4025 = vsub.f32 %v4017, %v4021
    %v4026 = vsub.f32 %v4018, %v4024
    %v4027 = vmul.f32 %v4025, 1.442695
    %v4028 = vpow.pop %v4027
    %v4029 = vmul.f32 %v4026, 1.442695
    %v4030 = vpow.pop %v4029
    %v4031 = vsel %vm1208, %v4028, 0.0
    %4032 = vadd.xlane.f32.xlu0 %v4031
    %v4033 = vpop.xlane.xlu0 %4032
    %v4034 = vsel %vm1208, %v4030, 0.0
    %4035 = vadd.xlane.f32.xlu0 %v4034
    %v4036 = vpop.xlane.xlu0 %4035
    %v4037 = vrcp.pop %v4033
    %v4038 = vrcp.pop %v4036
    %v4039 = vmul.f32 %v4028, %v4037
    %v4040 = vmul.f32 %v4030, %v4038
    %v4042 = vsel %vm1208, %v4039, 0
    %4044 = vmatprep.subr.mxu0 0.0
    %4045 = vmatpush1.msra.mxu0 0.0
    %4046 = vmatprep.subr.mxu0 0.0
    %4047 = vmatpush1.msra.mxu0 0.0
    %4048 = vmatprep.subr.mxu0 0.0
    %4049 = vmatpush1.msra.mxu0 0.0
    %4050 = vmatprep.subr.mxu0 0.0
    %4051 = vmatpush1.msra.mxu0 0.0
    %4052 = vmatprep.subr.mxu0 0.0
    %4053 = vmatpush1.msra.mxu0 0.0
    %4054 = vmatprep.subr.mxu0 0.0
    %4055 = vmatpush1.msra.mxu0 0.0
    %4056 = vmatprep.subr.mxu0 0.0
    %4057 = vmatpush1.msra.mxu0 0.0
    %4058 = vmatprep.subr.mxu0 0.0
    %4059 = vmatpush1.msra.mxu0 0.0
    %4060 = vmatprep.subr.mxu0 0.0
    %4061 = vmatpush1.msra.mxu0 0.0
    %4062 = vmatprep.subr.mxu0 0.0
    %4063 = vmatpush1.msra.mxu0 0.0
    %4064 = vmatprep.subr.mxu0 0.0
    %4065 = vmatpush1.msra.mxu0 0.0
    %4066 = vmatprep.subr.mxu0 0.0
    %4067 = vmatpush1.msra.mxu0 0.0
    %4068 = vmatprep.subr.mxu0 0.0
    %4069 = vmatpush1.msra.mxu0 0.0
    %4070 = vmatprep.subr.mxu0 0.0
    %4071 = vmatpush1.msra.mxu0 0.0
    %4072 = vmatprep.subr.mxu0 0.0
    %4073 = vmatpush1.msra.mxu0 0.0
    %4074 = vmatprep.subr.mxu0 0.0
    %4075 = vmatpush1.msra.mxu0 %v932
    %4076 = vmatprep.subr.mxu0 0.0
    %4077 = vmatpush2.msra.mxu0 0.0
    %4078 = vmatprep.subr.mxu0 0.0
    %4079 = vmatpush2.msra.mxu0 0.0
    %4080 = vmatprep.subr.mxu0 0.0
    %4081 = vmatpush2.msra.mxu0 0.0
    %4082 = vmatprep.subr.mxu0 0.0
    %4083 = vmatpush2.msra.mxu0 0.0
    %4084 = vmatprep.subr.mxu0 0.0
    %4085 = vmatpush2.msra.mxu0 0.0
    %4086 = vmatprep.subr.mxu0 0.0
    %4087 = vmatpush2.msra.mxu0 0.0
    %4088 = vmatprep.subr.mxu0 0.0
    %4089 = vmatpush2.msra.mxu0 0.0
    %4090 = vmatprep.subr.mxu0 0.0
    %4091 = vmatpush2.msra.mxu0 0.0
    %4092 = vmatprep.subr.mxu0 0.0
    %4093 = vmatpush2.msra.mxu0 0.0
    %4094 = vmatprep.subr.mxu0 0.0
    %4095 = vmatpush2.msra.mxu0 0.0
    %4096 = vmatprep.subr.mxu0 0.0
    %4097 = vmatpush2.msra.mxu0 0.0
    %4098 = vmatprep.subr.mxu0 0.0
    %4099 = vmatpush2.msra.mxu0 0.0
    %4100 = vmatprep.subr.mxu0 0.0
    %4101 = vmatpush2.msra.mxu0 0.0
    %4102 = vmatprep.subr.mxu0 0.0
    %4103 = vmatpush2.msra.mxu0 0.0
    %4104 = vmatprep.subr.mxu0 0.0
    %4105 = vmatpush2.msra.mxu0 0.0
    %4106 = vmatprep.subr.mxu0 0.0
    %4107 = vmatpush2.msra.mxu0 0.0
    %4108 = vmatprep.mubr.f32.mxu0 0.0
    %4109 = vmatmul.mubr.f32.gmra.mxu0 %v4042
    %v4110 = vpop.f32.mrf.mxu0
    %v4111 = vadd.f32 0.0, %v4110
    %v4112 = vpop.f32.mrf.mxu0
    %4113 = vdwg.mxu0
    %v4115 = vsel %vm1208, %v4040, 0
    %4117 = vmatprep.subr.mxu0 0.0
    %4118 = vmatpush1.msra.mxu0 0.0
    %4119 = vmatprep.subr.mxu0 0.0
    %4120 = vmatpush1.msra.mxu0 0.0
    %4121 = vmatprep.subr.mxu0 0.0
    %4122 = vmatpush1.msra.mxu0 0.0
    %4123 = vmatprep.subr.mxu0 0.0
    %4124 = vmatpush1.msra.mxu0 0.0
    %4125 = vmatprep.subr.mxu0 0.0
    %4126 = vmatpush1.msra.mxu0 0.0
    %4127 = vmatprep.subr.mxu0 0.0
    %4128 = vmatpush1.msra.mxu0 0.0
    %4129 = vmatprep.subr.mxu0 0.0
    %4130 = vmatpush1.msra.mxu0 0.0
    %4131 = vmatprep.subr.mxu0 0.0
    %4132 = vmatpush1.msra.mxu0 0.0
    %4133 = vmatprep.subr.mxu0 0.0
    %4134 = vmatpush1.msra.mxu0 0.0
    %4135 = vmatprep.subr.mxu0 0.0
    %4136 = vmatpush1.msra.mxu0 0.0
    %4137 = vmatprep.subr.mxu0 0.0
    %4138 = vmatpush1.msra.mxu0 0.0
    %4139 = vmatprep.subr.mxu0 0.0
    %4140 = vmatpush1.msra.mxu0 0.0
    %4141 = vmatprep.subr.mxu0 0.0
    %4142 = vmatpush1.msra.mxu0 0.0
    %4143 = vmatprep.subr.mxu0 0.0
    %4144 = vmatpush1.msra.mxu0 0.0
    %4145 = vmatprep.subr.mxu0 0.0
    %4146 = vmatpush1.msra.mxu0 0.0
    %4147 = vmatprep.subr.mxu0 0.0
    %4148 = vmatpush1.msra.mxu0 %v936
    %4149 = vmatprep.subr.mxu0 0.0
    %4150 = vmatpush2.msra.mxu0 0.0
    %4151 = vmatprep.subr.mxu0 0.0
    %4152 = vmatpush2.msra.mxu0 0.0
    %4153 = vmatprep.subr.mxu0 0.0
    %4154 = vmatpush2.msra.mxu0 0.0
    %4155 = vmatprep.subr.mxu0 0.0
    %4156 = vmatpush2.msra.mxu0 0.0
    %4157 = vmatprep.subr.mxu0 0.0
    %4158 = vmatpush2.msra.mxu0 0.0
    %4159 = vmatprep.subr.mxu0 0.0
    %4160 = vmatpush2.msra.mxu0 0.0
    %4161 = vmatprep.subr.mxu0 0.0
    %4162 = vmatpush2.msra.mxu0 0.0
    %4163 = vmatprep.subr.mxu0 0.0
    %4164 = vmatpush2.msra.mxu0 0.0
    %4165 = vmatprep.subr.mxu0 0.0
    %4166 = vmatpush2.msra.mxu0 0.0
    %4167 = vmatprep.subr.mxu0 0.0
    %4168 = vmatpush2.msra.mxu0 0.0
    %4169 = vmatprep.subr.mxu0 0.0
    %4170 = vmatpush2.msra.mxu0 0.0
    %4171 = vmatprep.subr.mxu0 0.0
    %4172 = vmatpush2.msra.mxu0 0.0
    %4173 = vmatprep.subr.mxu0 0.0
    %4174 = vmatpush2.msra.mxu0 0.0
    %4175 = vmatprep.subr.mxu0 0.0
    %4176 = vmatpush2.msra.mxu0 0.0
    %4177 = vmatprep.subr.mxu0 0.0
    %4178 = vmatpush2.msra.mxu0 0.0
    %4179 = vmatprep.subr.mxu0 0.0
    %4180 = vmatpush2.msra.mxu0 0.0
    %4181 = vmatprep.mubr.f32.mxu0 0.0
    %4182 = vmatmul.mubr.f32.gmra.mxu0 %v4115
    %v4183 = vpop.f32.mrf.mxu0
    %v4184 = vadd.f32 0.0, %v4183
    %v4185 = vpop.f32.mrf.mxu0
    %4186 = vdwg.mxu0
    %v4187 = vpack.c.bf16 %v4184, %v4111
    %v4204 = vunpack.c.l.b16 %v1050
    %v4205 = vunpack.c.l.b16 %v1051
    %v4206 = vunpack.c.l.b16 %v1052
    %v4207 = vunpack.c.l.b16 %v1053
    %v4208 = vunpack.c.l.b16 %v1054
    %v4209 = vunpack.c.l.b16 %v1055
    %v4210 = vunpack.c.l.b16 %v1056
    %v4211 = vunpack.c.l.b16 %v1057
    %v4212 = vunpack.c.l.b16 %v1058
    %v4213 = vunpack.c.l.b16 %v1059
    %v4214 = vunpack.c.l.b16 %v1060
    %v4215 = vunpack.c.l.b16 %v1061
    %v4216 = vunpack.c.l.b16 %v1062
    %v4217 = vunpack.c.l.b16 %v1063
    %v4218 = vunpack.c.l.b16 %v1064
    %v4219 = vunpack.c.l.b16 %v1065
    %v4220 = vpack.c.b16 %v4205, %v4204
    %v4221 = vpack.c.b16 %v4207, %v4206
    %v4222 = vpack.c.b16 %v4209, %v4208
    %v4223 = vpack.c.b16 %v4211, %v4210
    %v4224 = vpack.c.b16 %v4213, %v4212
    %v4225 = vpack.c.b16 %v4215, %v4214
    %v4226 = vpack.c.b16 %v4217, %v4216
    %v4227 = vpack.c.b16 %v4219, %v4218
    %4236 = vmatprep.subr.bf16.mxu0 0
    %4237 = vmatpush1.bf16.msra.mxu0 %v4227
    %4238 = vmatprep.subr.bf16.mxu0 0
    %4239 = vmatpush1.bf16.msra.mxu0 %v4226
    %4240 = vmatprep.subr.bf16.mxu0 0
    %4241 = vmatpush1.bf16.msra.mxu0 %v4225
    %4242 = vmatprep.subr.bf16.mxu0 0
    %4243 = vmatpush1.bf16.msra.mxu0 %v4224
    %4244 = vmatprep.subr.bf16.mxu0 0
    %4245 = vmatpush1.bf16.msra.mxu0 %v4223
    %4246 = vmatprep.subr.bf16.mxu0 0
    %4247 = vmatpush1.bf16.msra.mxu0 %v4222
    %4248 = vmatprep.subr.bf16.mxu0 0
    %4249 = vmatpush1.bf16.msra.mxu0 %v4221
    %4250 = vmatprep.subr.bf16.mxu0 0
    %4251 = vmatpush1.bf16.msra.mxu0 %v4220
    %4252 = vmatprep.subr.bf16.mxu0 0
    %4253 = vmatpush2.bf16.msra.mxu0 0
    %4254 = vmatprep.subr.bf16.mxu0 0
    %4255 = vmatpush2.bf16.msra.mxu0 0
    %4256 = vmatprep.subr.bf16.mxu0 0
    %4257 = vmatpush2.bf16.msra.mxu0 0
    %4258 = vmatprep.subr.bf16.mxu0 0
    %4259 = vmatpush2.bf16.msra.mxu0 0
    %4260 = vmatprep.subr.bf16.mxu0 0
    %4261 = vmatpush2.bf16.msra.mxu0 0
    %4262 = vmatprep.subr.bf16.mxu0 0
    %4263 = vmatpush2.bf16.msra.mxu0 0
    %4264 = vmatprep.subr.bf16.mxu0 0
    %4265 = vmatpush2.bf16.msra.mxu0 0
    %4266 = vmatprep.subr.bf16.mxu0 0
    %4267 = vmatpush2.bf16.msra.mxu0 0
    %4268 = vmatprep.mubr.bf16.mxu0 0
    %4269 = vmatmul.mubr.bf16.gmra.mxu0 %v4187
    %v4270 = vpop.f32.mrf.mxu0
    %v4271 = vadd.f32 0.0, %v4270
    %v4272 = vpop.f32.mrf.mxu0
    %v4273 = vpop.f32.mrf.mxu0
    %v4274 = vadd.f32 0.0, %v4273
    %v4275 = vpop.f32.mrf.mxu0
    %4276 = vdwg.mxu0
    %v4277 = vadd.f32 %v3875, %v4271
    %v4278 = vadd.f32 %v3876, %v4274
    %v4279 = vlaneseq
    %v4280 = vshrl.u32 %v4279, 7
    %v4281 = vsub.s32 1, %v4280
    %v4282 = vrot.slane %v28, %v4281
    %v4283 = vadd.f32 %v4277, %v4282
    %v4284 = vadd.f32 %v4278, %v4282
    %v4285 = vadd.f32 %v4283, %v127
    %v4286 = vadd.f32 %v4284, %v128
    %v4287 = vsel %vm418, %v4285, 0.0
    %4288 = vadd.xlane.f32.xlu0 %v4287
    %v4289 = vpop.xlane.xlu0 %4288
    %v4290 = vsel %vm418, %v4286, 0.0
    %4291 = vadd.xlane.f32.xlu0 %v4290
    %v4292 = vpop.xlane.xlu0 %4291
    %v4293 = vrcp.pop 32.0
    %v4294 = vmul.f32 %v4289, %v4293
    %v4295 = vmul.f32 %v4292, %v4293
    %v4296 = vsub.f32 %v4285, %v4294
    %v4297 = vsub.f32 %v4286, %v4295
    %v4298 = vmul.f32 %v4296, %v4296
    %v4299 = vmul.f32 %v4297, %v4297
    %v4300 = vsel %vm418, %v4298, 0.0
    %4301 = vadd.xlane.f32.xlu0 %v4300
    %v4302 = vpop.xlane.xlu0 %4301
    %v4303 = vsel %vm418, %v4299, 0.0
    %4304 = vadd.xlane.f32.xlu0 %v4303
    %v4305 = vpop.xlane.xlu0 %4304
    %v4306 = vmul.f32 %v4302, 0.032258064
    %v4307 = vmul.f32 %v4305, 0.032258064
    %v4308 = vrsqrt.pop %v4306
    %v4309 = vmul.f32 %v4306, %v4308
    %vm4310 = vcmp.eq.f32.partialorder %v4306, inf
    %v4311 = vsel %vm4310, %v4306, %v4309
    %vm4312 = vcmp.eq.f32.partialorder %v4306, 0.0
    %v4313 = vand.u32 %v4306, 2147483648
    %v4314 = vsel %vm4312, %v4313, %v4311
    %v4315 = vrsqrt.pop %v4307
    %v4316 = vmul.f32 %v4307, %v4315
    %vm4317 = vcmp.eq.f32.partialorder %v4307, inf
    %v4318 = vsel %vm4317, %v4307, %v4316
    %vm4319 = vcmp.eq.f32.partialorder %v4307, 0.0
    %v4320 = vand.u32 %v4307, 2147483648
    %v4321 = vsel %vm4319, %v4320, %v4318
    %v4322 = vadd.f32 %v4314, 0.001
    %v4323 = vadd.f32 %v4321, 0.001
    %v4324 = vrcp.pop %v4322
    %v4325 = vrcp.pop %v4323
    %v4326 = vmul.f32 %v4296, %v4324
    %v4327 = vmul.f32 %v4297, %v4325
    %v4328 = vlaneseq
    %v4329 = vshrl.u32 %v4328, 7
    %v4330 = vsub.s32 2, %v4329
    %v4331 = vrot.slane %v28, %v4330
    %v4332 = vmul.f32 %v4326, %v4331
    %v4333 = vmul.f32 %v4327, %v4331
    %v4334 = vlaneseq
    %v4335 = vshrl.u32 %v4334, 7
    %v4336 = vsub.s32 3, %v4335
    %v4337 = vrot.slane %v28, %v4336
    %v4338 = vadd.f32 %v4332, %v4337
    %v4339 = vadd.f32 %v4333, %v4337
    %v4340 = vpack.c.bf16 %v4339, %v4338
    %v4341 = vld [vmem:[%s4] sm:$0xff]
    %v4342 = vld [vmem:[%s4 + $0x8] sm:$0xff]
    %v4343 = vld [vmem:[%s4 + $0x10] sm:$0xff]
    %v4344 = vld [vmem:[%s4 + $0x18] sm:$0xff]
    %v4345 = vld [vmem:[%s4 + $0x20] sm:$0xff]
    %v4346 = vld [vmem:[%s4 + $0x28] sm:$0xff]
    %v4347 = vld [vmem:[%s4 + $0x30] sm:$0xff]
    %v4348 = vld [vmem:[%s4 + $0x38] sm:$0xff]
    %v4349 = vlaneseq
    %v4350 = vshrl.u32 %v4349, 7
    %v4351 = vsub.s32 4, %v4350
    %v4352 = vrot.slane %v28, %v4351
    %v4353 = vlaneseq
    %v4354 = vshrl.u32 %v4353, 7
    %v4355 = vsub.s32 4, %v4354
    %v4356 = vrot.slane %v29, %v4355
    %v4357 = vlaneseq
    %v4358 = vshrl.u32 %v4357, 7
    %v4359 = vsub.s32 4, %v4358
    %v4360 = vrot.slane %v30, %v4359
    %v4361 = vlaneseq
    %v4362 = vshrl.u32 %v4361, 7
    %v4363 = vsub.s32 4, %v4362
    %v4364 = vrot.slane %v31, %v4363
    %v4373 = vunpack.c.l.b16 %v4341
    %v4374 = vunpack.c.h.b16 %v4341
    %v4375 = vunpack.c.l.b16 %v4342
    %v4376 = vunpack.c.h.b16 %v4342
    %v4377 = vunpack.c.l.b16 %v4343
    %v4378 = vunpack.c.h.b16 %v4343
    %v4379 = vunpack.c.l.b16 %v4344
    %v4380 = vunpack.c.h.b16 %v4344
    %v4381 = vunpack.c.l.b16 %v4345
    %v4382 = vunpack.c.h.b16 %v4345
    %v4383 = vunpack.c.l.b16 %v4346
    %v4384 = vunpack.c.h.b16 %v4346
    %v4385 = vunpack.c.l.b16 %v4347
    %v4386 = vunpack.c.h.b16 %v4347
    %v4387 = vunpack.c.l.b16 %v4348
    %v4388 = vunpack.c.h.b16 %v4348
    %v4389 = vpack.c.b16 %v4377, %v4373
    %v4390 = vpack.c.b16 %v4378, %v4374
    %v4391 = vpack.c.b16 %v4379, %v4375
    %v4392 = vpack.c.b16 %v4380, %v4376
    %v4393 = vpack.c.b16 %v4385, %v4381
    %v4394 = vpack.c.b16 %v4386, %v4382
    %v4395 = vpack.c.b16 %v4387, %v4383
    %v4396 = vpack.c.b16 %v4388, %v4384
    %v4406 = vsel %vm418, %v4340, 0
    %4408 = vmatprep.subr.bf16.mxu0 0
    %4409 = vmatpush1.bf16.msra.mxu0 0
    %4410 = vmatprep.subr.bf16.mxu0 0
    %4411 = vmatpush1.bf16.msra.mxu0 0
    %4412 = vmatprep.subr.bf16.mxu0 0
    %4413 = vmatpush1.bf16.msra.mxu0 0
    %4414 = vmatprep.subr.bf16.mxu0 0
    %4415 = vmatpush1.bf16.msra.mxu0 0
    %4416 = vmatprep.subr.bf16.mxu0 0
    %4417 = vmatpush1.bf16.msra.mxu0 0
    %4418 = vmatprep.subr.bf16.mxu0 0
    %4419 = vmatpush1.bf16.msra.mxu0 0
    %4420 = vmatprep.subr.bf16.mxu0 %v4394
    %4421 = vmatpush1.bf16.msra.mxu0 %v4393
    %4422 = vmatprep.subr.bf16.mxu0 %v4390
    %4423 = vmatpush1.bf16.msra.mxu0 %v4389
    %4424 = vmatprep.subr.bf16.mxu0 0
    %4425 = vmatpush2.bf16.msra.mxu0 0
    %4426 = vmatprep.subr.bf16.mxu0 0
    %4427 = vmatpush2.bf16.msra.mxu0 0
    %4428 = vmatprep.subr.bf16.mxu0 0
    %4429 = vmatpush2.bf16.msra.mxu0 0
    %4430 = vmatprep.subr.bf16.mxu0 0
    %4431 = vmatpush2.bf16.msra.mxu0 0
    %4432 = vmatprep.subr.bf16.mxu0 0
    %4433 = vmatpush2.bf16.msra.mxu0 0
    %4434 = vmatprep.subr.bf16.mxu0 0
    %4435 = vmatpush2.bf16.msra.mxu0 0
    %4436 = vmatprep.subr.bf16.mxu0 0
    %4437 = vmatpush2.bf16.msra.mxu0 0
    %4438 = vmatprep.subr.bf16.mxu0 0
    %4439 = vmatpush2.bf16.msra.mxu0 0
    %4440 = vmatprep.mubr.bf16.mxu0 0
    %4441 = vmatmul.mubr.bf16.gmra.mxu0 %v4406
    %v4442 = vpop.f32.mrf.mxu0
    %v4443 = vadd.f32 %v4352, %v4442
    %v4444 = vpop.f32.mrf.mxu0
    %v4445 = vadd.f32 %v4356, %v4444
    %v4446 = vpop.f32.mrf.mxu0
    %v4447 = vadd.f32 %v4352, %v4446
    %v4448 = vpop.f32.mrf.mxu0
    %v4449 = vadd.f32 %v4356, %v4448
    %4450 = vdwg.mxu0
    %4451 = vmatprep.subr.bf16.mxu0 0
    %4452 = vmatpush1.bf16.msra.mxu0 0
    %4453 = vmatprep.subr.bf16.mxu0 0
    %4454 = vmatpush1.bf16.msra.mxu0 0
    %4455 = vmatprep.subr.bf16.mxu0 0
    %4456 = vmatpush1.bf16.msra.mxu0 0
    %4457 = vmatprep.subr.bf16.mxu0 0
    %4458 = vmatpush1.bf16.msra.mxu0 0
    %4459 = vmatprep.subr.bf16.mxu0 0
    %4460 = vmatpush1.bf16.msra.mxu0 0
    %4461 = vmatprep.subr.bf16.mxu0 0
    %4462 = vmatpush1.bf16.msra.mxu0 0
    %4463 = vmatprep.subr.bf16.mxu0 %v4396
    %4464 = vmatpush1.bf16.msra.mxu0 %v4395
    %4465 = vmatprep.subr.bf16.mxu0 %v4392
    %4466 = vmatpush1.bf16.msra.mxu0 %v4391
    %4467 = vmatprep.subr.bf16.mxu0 0
    %4468 = vmatpush2.bf16.msra.mxu0 0
    %4469 = vmatprep.subr.bf16.mxu0 0
    %4470 = vmatpush2.bf16.msra.mxu0 0
    %4471 = vmatprep.subr.bf16.mxu0 0
    %4472 = vmatpush2.bf16.msra.mxu0 0
    %4473 = vmatprep.subr.bf16.mxu0 0
    %4474 = vmatpush2.bf16.msra.mxu0 0
    %4475 = vmatprep.subr.bf16.mxu0 0
    %4476 = vmatpush2.bf16.msra.mxu0 0
    %4477 = vmatprep.subr.bf16.mxu0 0
    %4478 = vmatpush2.bf16.msra.mxu0 0
    %4479 = vmatprep.subr.bf16.mxu0 0
    %4480 = vmatpush2.bf16.msra.mxu0 0
    %4481 = vmatprep.subr.bf16.mxu0 0
    %4482 = vmatpush2.bf16.msra.mxu0 0
    %4483 = vmatprep.mubr.bf16.mxu0 0
    %4484 = vmatmul.mubr.bf16.gmra.mxu0 %v4406
    %v4485 = vpop.f32.mrf.mxu0
    %v4486 = vadd.f32 %v4360, %v4485
    %v4487 = vpop.f32.mrf.mxu0
    %v4488 = vadd.f32 %v4364, %v4487
    %v4489 = vpop.f32.mrf.mxu0
    %v4490 = vadd.f32 %v4360, %v4489
    %v4491 = vpop.f32.mrf.mxu0
    %v4492 = vadd.f32 %v4364, %v4491
    %4493 = vdwg.mxu0
    %v4494 = vmax.f32 %v4443, 0.0
    %v4495 = vmax.f32 %v4445, 0.0
    %v4496 = vmax.f32 %v4486, 0.0
    %v4497 = vmax.f32 %v4488, 0.0
    %v4498 = vmax.f32 %v4447, 0.0
    %v4499 = vmax.f32 %v4449, 0.0
    %v4500 = vmax.f32 %v4490, 0.0
    %v4501 = vmax.f32 %v4492, 0.0
    %v4502 = vpack.c.bf16 %v4498, %v4494
    %v4503 = vpack.c.bf16 %v4499, %v4495
    %v4504 = vpack.c.bf16 %v4500, %v4496
    %v4505 = vpack.c.bf16 %v4501, %v4497
    %v4506 = vld [vmem:[%s5] sm:$0xf]
    %v4507 = vld [vmem:[%s5 + $0x4] sm:$0xf]
    %v4508 = vld [vmem:[%s5 + $0x8] sm:$0xf]
    %v4509 = vld [vmem:[%s5 + $0xc] sm:$0xf]
    %v4510 = vld [vmem:[%s5 + $0x10] sm:$0xf]
    %v4511 = vld [vmem:[%s5 + $0x14] sm:$0xf]
    %v4512 = vld [vmem:[%s5 + $0x18] sm:$0xf]
    %v4513 = vld [vmem:[%s5 + $0x1c] sm:$0xf]
    %v4514 = vld [vmem:[%s5 + $0x20] sm:$0xf]
    %v4515 = vld [vmem:[%s5 + $0x24] sm:$0xf]
    %v4516 = vld [vmem:[%s5 + $0x28] sm:$0xf]
    %v4517 = vld [vmem:[%s5 + $0x2c] sm:$0xf]
    %v4518 = vld [vmem:[%s5 + $0x30] sm:$0xf]
    %v4519 = vld [vmem:[%s5 + $0x34] sm:$0xf]
    %v4520 = vld [vmem:[%s5 + $0x38] sm:$0xf]
    %v4521 = vld [vmem:[%s5 + $0x3c] sm:$0xf]
    %v4522 = vld [vmem:[%s5 + $0x40] sm:$0xf]
    %v4523 = vld [vmem:[%s5 + $0x44] sm:$0xf]
    %v4524 = vld [vmem:[%s5 + $0x48] sm:$0xf]
    %v4525 = vld [vmem:[%s5 + $0x4c] sm:$0xf]
    %v4526 = vld [vmem:[%s5 + $0x50] sm:$0xf]
    %v4527 = vld [vmem:[%s5 + $0x54] sm:$0xf]
    %v4528 = vld [vmem:[%s5 + $0x58] sm:$0xf]
    %v4529 = vld [vmem:[%s5 + $0x5c] sm:$0xf]
    %v4530 = vld [vmem:[%s5 + $0x60] sm:$0xf]
    %v4531 = vld [vmem:[%s5 + $0x64] sm:$0xf]
    %v4532 = vld [vmem:[%s5 + $0x68] sm:$0xf]
    %v4533 = vld [vmem:[%s5 + $0x6c] sm:$0xf]
    %v4534 = vld [vmem:[%s5 + $0x70] sm:$0xf]
    %v4535 = vld [vmem:[%s5 + $0x74] sm:$0xf]
    %v4536 = vld [vmem:[%s5 + $0x78] sm:$0xf]
    %v4537 = vld [vmem:[%s5 + $0x7c] sm:$0xf]
    %v4538 = vld [vmem:[%s5 + $0x80] sm:$0xf]
    %v4539 = vld [vmem:[%s5 + $0x84] sm:$0xf]
    %v4540 = vld [vmem:[%s5 + $0x88] sm:$0xf]
    %v4541 = vld [vmem:[%s5 + $0x8c] sm:$0xf]
    %v4542 = vld [vmem:[%s5 + $0x90] sm:$0xf]
    %v4543 = vld [vmem:[%s5 + $0x94] sm:$0xf]
    %v4544 = vld [vmem:[%s5 + $0x98] sm:$0xf]
    %v4545 = vld [vmem:[%s5 + $0x9c] sm:$0xf]
    %v4546 = vld [vmem:[%s5 + $0xa0] sm:$0xf]
    %v4547 = vld [vmem:[%s5 + $0xa4] sm:$0xf]
    %v4548 = vld [vmem:[%s5 + $0xa8] sm:$0xf]
    %v4549 = vld [vmem:[%s5 + $0xac] sm:$0xf]
    %v4550 = vld [vmem:[%s5 + $0xb0] sm:$0xf]
    %v4551 = vld [vmem:[%s5 + $0xb4] sm:$0xf]
    %v4552 = vld [vmem:[%s5 + $0xb8] sm:$0xf]
    %v4553 = vld [vmem:[%s5 + $0xbc] sm:$0xf]
    %v4554 = vld [vmem:[%s5 + $0xc0] sm:$0xf]
    %v4555 = vld [vmem:[%s5 + $0xc4] sm:$0xf]
    %v4556 = vld [vmem:[%s5 + $0xc8] sm:$0xf]
    %v4557 = vld [vmem:[%s5 + $0xcc] sm:$0xf]
    %v4558 = vld [vmem:[%s5 + $0xd0] sm:$0xf]
    %v4559 = vld [vmem:[%s5 + $0xd4] sm:$0xf]
    %v4560 = vld [vmem:[%s5 + $0xd8] sm:$0xf]
    %v4561 = vld [vmem:[%s5 + $0xdc] sm:$0xf]
    %v4562 = vld [vmem:[%s5 + $0xe0] sm:$0xf]
    %v4563 = vld [vmem:[%s5 + $0xe4] sm:$0xf]
    %v4564 = vld [vmem:[%s5 + $0xe8] sm:$0xf]
    %v4565 = vld [vmem:[%s5 + $0xec] sm:$0xf]
    %v4566 = vld [vmem:[%s5 + $0xf0] sm:$0xf]
    %v4567 = vld [vmem:[%s5 + $0xf4] sm:$0xf]
    %v4568 = vld [vmem:[%s5 + $0xf8] sm:$0xf]
    %v4569 = vld [vmem:[%s5 + $0xfc] sm:$0xf]
    %v4570 = vlaneseq
    %v4571 = vshrl.u32 %v4570, 7
    %v4572 = vsub.s32 5, %v4571
    %v4573 = vrot.slane %v28, %v4572
    %v4638 = vunpack.c.l.b16 %v4506
    %v4639 = vunpack.c.l.b16 %v4507
    %v4640 = vunpack.c.l.b16 %v4508
    %v4641 = vunpack.c.l.b16 %v4509
    %v4642 = vunpack.c.l.b16 %v4510
    %v4643 = vunpack.c.l.b16 %v4511
    %v4644 = vunpack.c.l.b16 %v4512
    %v4645 = vunpack.c.l.b16 %v4513
    %v4646 = vunpack.c.l.b16 %v4514
    %v4647 = vunpack.c.l.b16 %v4515
    %v4648 = vunpack.c.l.b16 %v4516
    %v4649 = vunpack.c.l.b16 %v4517
    %v4650 = vunpack.c.l.b16 %v4518
    %v4651 = vunpack.c.l.b16 %v4519
    %v4652 = vunpack.c.l.b16 %v4520
    %v4653 = vunpack.c.l.b16 %v4521
    %v4654 = vunpack.c.l.b16 %v4522
    %v4655 = vunpack.c.l.b16 %v4523
    %v4656 = vunpack.c.l.b16 %v4524
    %v4657 = vunpack.c.l.b16 %v4525
    %v4658 = vunpack.c.l.b16 %v4526
    %v4659 = vunpack.c.l.b16 %v4527
    %v4660 = vunpack.c.l.b16 %v4528
    %v4661 = vunpack.c.l.b16 %v4529
    %v4662 = vunpack.c.l.b16 %v4530
    %v4663 = vunpack.c.l.b16 %v4531
    %v4664 = vunpack.c.l.b16 %v4532
    %v4665 = vunpack.c.l.b16 %v4533
    %v4666 = vunpack.c.l.b16 %v4534
    %v4667 = vunpack.c.l.b16 %v4535
    %v4668 = vunpack.c.l.b16 %v4536
    %v4669 = vunpack.c.l.b16 %v4537
    %v4670 = vunpack.c.l.b16 %v4538
    %v4671 = vunpack.c.l.b16 %v4539
    %v4672 = vunpack.c.l.b16 %v4540
    %v4673 = vunpack.c.l.b16 %v4541
    %v4674 = vunpack.c.l.b16 %v4542
    %v4675 = vunpack.c.l.b16 %v4543
    %v4676 = vunpack.c.l.b16 %v4544
    %v4677 = vunpack.c.l.b16 %v4545
    %v4678 = vunpack.c.l.b16 %v4546
    %v4679 = vunpack.c.l.b16 %v4547
    %v4680 = vunpack.c.l.b16 %v4548
    %v4681 = vunpack.c.l.b16 %v4549
    %v4682 = vunpack.c.l.b16 %v4550
    %v4683 = vunpack.c.l.b16 %v4551
    %v4684 = vunpack.c.l.b16 %v4552
    %v4685 = vunpack.c.l.b16 %v4553
    %v4686 = vunpack.c.l.b16 %v4554
    %v4687 = vunpack.c.l.b16 %v4555
    %v4688 = vunpack.c.l.b16 %v4556
    %v4689 = vunpack.c.l.b16 %v4557
    %v4690 = vunpack.c.l.b16 %v4558
    %v4691 = vunpack.c.l.b16 %v4559
    %v4692 = vunpack.c.l.b16 %v4560
    %v4693 = vunpack.c.l.b16 %v4561
    %v4694 = vunpack.c.l.b16 %v4562
    %v4695 = vunpack.c.l.b16 %v4563
    %v4696 = vunpack.c.l.b16 %v4564
    %v4697 = vunpack.c.l.b16 %v4565
    %v4698 = vunpack.c.l.b16 %v4566
    %v4699 = vunpack.c.l.b16 %v4567
    %v4700 = vunpack.c.l.b16 %v4568
    %v4701 = vunpack.c.l.b16 %v4569
    %v4702 = vpack.c.b16 %v4639, %v4638
    %v4703 = vpack.c.b16 %v4641, %v4640
    %v4704 = vpack.c.b16 %v4643, %v4642
    %v4705 = vpack.c.b16 %v4645, %v4644
    %v4706 = vpack.c.b16 %v4647, %v4646
    %v4707 = vpack.c.b16 %v4649, %v4648
    %v4708 = vpack.c.b16 %v4651, %v4650
    %v4709 = vpack.c.b16 %v4653, %v4652
    %v4710 = vpack.c.b16 %v4655, %v4654
    %v4711 = vpack.c.b16 %v4657, %v4656
    %v4712 = vpack.c.b16 %v4659, %v4658
    %v4713 = vpack.c.b16 %v4661, %v4660
    %v4714 = vpack.c.b16 %v4663, %v4662
    %v4715 = vpack.c.b16 %v4665, %v4664
    %v4716 = vpack.c.b16 %v4667, %v4666
    %v4717 = vpack.c.b16 %v4669, %v4668
    %v4718 = vpack.c.b16 %v4671, %v4670
    %v4719 = vpack.c.b16 %v4673, %v4672
    %v4720 = vpack.c.b16 %v4675, %v4674
    %v4721 = vpack.c.b16 %v4677, %v4676
    %v4722 = vpack.c.b16 %v4679, %v4678
    %v4723 = vpack.c.b16 %v4681, %v4680
    %v4724 = vpack.c.b16 %v4683, %v4682
    %v4725 = vpack.c.b16 %v4685, %v4684
    %v4726 = vpack.c.b16 %v4687, %v4686
    %v4727 = vpack.c.b16 %v4689, %v4688
    %v4728 = vpack.c.b16 %v4691, %v4690
    %v4729 = vpack.c.b16 %v4693, %v4692
    %v4730 = vpack.c.b16 %v4695, %v4694
    %v4731 = vpack.c.b16 %v4697, %v4696
    %v4732 = vpack.c.b16 %v4699, %v4698
    %v4733 = vpack.c.b16 %v4701, %v4700
    %4766 = vmatprep.subr.bf16.mxu0 0
    %4767 = vmatpush1.bf16.msra.mxu0 %v4709
    %4768 = vmatprep.subr.bf16.mxu0 0
    %4769 = vmatpush1.bf16.msra.mxu0 %v4708
    %4770 = vmatprep.subr.bf16.mxu0 0
    %4771 = vmatpush1.bf16.msra.mxu0 %v4707
    %4772 = vmatprep.subr.bf16.mxu0 0
    %4773 = vmatpush1.bf16.msra.mxu0 %v4706
    %4774 = vmatprep.subr.bf16.mxu0 0
    %4775 = vmatpush1.bf16.msra.mxu0 %v4705
    %4776 = vmatprep.subr.bf16.mxu0 0
    %4777 = vmatpush1.bf16.msra.mxu0 %v4704
    %4778 = vmatprep.subr.bf16.mxu0 0
    %4779 = vmatpush1.bf16.msra.mxu0 %v4703
    %4780 = vmatprep.subr.bf16.mxu0 0
    %4781 = vmatpush1.bf16.msra.mxu0 %v4702
    %4782 = vmatprep.subr.bf16.mxu0 0
    %4783 = vmatpush2.bf16.msra.mxu0 %v4717
    %4784 = vmatprep.subr.bf16.mxu0 0
    %4785 = vmatpush2.bf16.msra.mxu0 %v4716
    %4786 = vmatprep.subr.bf16.mxu0 0
    %4787 = vmatpush2.bf16.msra.mxu0 %v4715
    %4788 = vmatprep.subr.bf16.mxu0 0
    %4789 = vmatpush2.bf16.msra.mxu0 %v4714
    %4790 = vmatprep.subr.bf16.mxu0 0
    %4791 = vmatpush2.bf16.msra.mxu0 %v4713
    %4792 = vmatprep.subr.bf16.mxu0 0
    %4793 = vmatpush2.bf16.msra.mxu0 %v4712
    %4794 = vmatprep.subr.bf16.mxu0 0
    %4795 = vmatpush2.bf16.msra.mxu0 %v4711
    %4796 = vmatprep.subr.bf16.mxu0 0
    %4797 = vmatpush2.bf16.msra.mxu0 %v4710
    %4798 = vmatprep.mubr.bf16.mxu0 %v4503
    %4799 = vmatmul.mubr.bf16.gmra.mxu0 %v4502
    %v4800 = vpop.f32.mrf.mxu0
    %v4801 = vadd.f32 %v4573, %v4800
    %v4802 = vpop.f32.mrf.mxu0
    %v4803 = vpop.f32.mrf.mxu0
    %v4804 = vadd.f32 %v4573, %v4803
    %v4805 = vpop.f32.mrf.mxu0
    %4806 = vdwg.mxu0
    %4807 = vmatprep.subr.bf16.mxu0 0
    %4808 = vmatpush1.bf16.msra.mxu0 %v4725
    %4809 = vmatprep.subr.bf16.mxu0 0
    %4810 = vmatpush1.bf16.msra.mxu0 %v4724
    %4811 = vmatprep.subr.bf16.mxu0 0
    %4812 = vmatpush1.bf16.msra.mxu0 %v4723
    %4813 = vmatprep.subr.bf16.mxu0 0
    %4814 = vmatpush1.bf16.msra.mxu0 %v4722
    %4815 = vmatprep.subr.bf16.mxu0 0
    %4816 = vmatpush1.bf16.msra.mxu0 %v4721
    %4817 = vmatprep.subr.bf16.mxu0 0
    %4818 = vmatpush1.bf16.msra.mxu0 %v4720
    %4819 = vmatprep.subr.bf16.mxu0 0
    %4820 = vmatpush1.bf16.msra.mxu0 %v4719
    %4821 = vmatprep.subr.bf16.mxu0 0
    %4822 = vmatpush1.bf16.msra.mxu0 %v4718
    %4823 = vmatprep.subr.bf16.mxu0 0
    %4824 = vmatpush2.bf16.msra.mxu0 %v4733
    %4825 = vmatprep.subr.bf16.mxu0 0
    %4826 = vmatpush2.bf16.msra.mxu0 %v4732
    %4827 = vmatprep.subr.bf16.mxu0 0
    %4828 = vmatpush2.bf16.msra.mxu0 %v4731
    %4829 = vmatprep.subr.bf16.mxu0 0
    %4830 = vmatpush2.bf16.msra.mxu0 %v4730
    %4831 = vmatprep.subr.bf16.mxu0 0
    %4832 = vmatpush2.bf16.msra.mxu0 %v4729
    %4833 = vmatprep.subr.bf16.mxu0 0
    %4834 = vmatpush2.bf16.msra.mxu0 %v4728
    %4835 = vmatprep.subr.bf16.mxu0 0
    %4836 = vmatpush2.bf16.msra.mxu0 %v4727
    %4837 = vmatprep.subr.bf16.mxu0 0
    %4838 = vmatpush2.bf16.msra.mxu0 %v4726
    %4839 = vmatprep.mubr.bf16.mxu0 %v4505
    %4840 = vmatmul.mubr.bf16.gmra.mxu0 %v4504
    %v4841 = vpop.f32.mrf.mxu0
    %v4842 = vadd.f32 %v4801, %v4841
    %v4843 = vpop.f32.mrf.mxu0
    %v4844 = vpop.f32.mrf.mxu0
    %v4845 = vadd.f32 %v4804, %v4844
    %v4846 = vpop.f32.mrf.mxu0
    %4847 = vdwg.mxu0
    %v4848 = vadd.f32 %v4842, %v4338
    %v4849 = vadd.f32 %v4845, %v4339
    %v4850 = vsel %vm418, %v4848, 0.0
    %4851 = vadd.xlane.f32.xlu0 %v4850
    %v4852 = vpop.xlane.xlu0 %4851
    %v4853 = vsel %vm418, %v4849, 0.0
    %4854 = vadd.xlane.f32.xlu0 %v4853
    %v4855 = vpop.xlane.xlu0 %4854
    %v4856 = vmul.f32 %v4852, %v4293
    %v4857 = vmul.f32 %v4855, %v4293
    %v4858 = vsub.f32 %v4848, %v4856
    %v4859 = vsub.f32 %v4849, %v4857
    %v4860 = vmul.f32 %v4858, %v4858
    %v4861 = vmul.f32 %v4859, %v4859
    %v4862 = vsel %vm418, %v4860, 0.0
    %4863 = vadd.xlane.f32.xlu0 %v4862
    %v4864 = vpop.xlane.xlu0 %4863
    %v4865 = vsel %vm418, %v4861, 0.0
    %4866 = vadd.xlane.f32.xlu0 %v4865
    %v4867 = vpop.xlane.xlu0 %4866
    %v4868 = vmul.f32 %v4864, 0.032258064
    %v4869 = vmul.f32 %v4867, 0.032258064
    %v4870 = vrsqrt.pop %v4868
    %v4871 = vmul.f32 %v4868, %v4870
    %vm4872 = vcmp.eq.f32.partialorder %v4868, inf
    %v4873 = vsel %vm4872, %v4868, %v4871
    %vm4874 = vcmp.eq.f32.partialorder %v4868, 0.0
    %v4875 = vand.u32 %v4868, 2147483648
    %v4876 = vsel %vm4874, %v4875, %v4873
    %v4877 = vrsqrt.pop %v4869
    %v4878 = vmul.f32 %v4869, %v4877
    %vm4879 = vcmp.eq.f32.partialorder %v4869, inf
    %v4880 = vsel %vm4879, %v4869, %v4878
    %vm4881 = vcmp.eq.f32.partialorder %v4869, 0.0
    %v4882 = vand.u32 %v4869, 2147483648
    %v4883 = vsel %vm4881, %v4882, %v4880
    %v4884 = vadd.f32 %v4876, 0.001
    %v4885 = vadd.f32 %v4883, 0.001
    %v4886 = vrcp.pop %v4884
    %v4887 = vrcp.pop %v4885
    %v4888 = vmul.f32 %v4858, %v4886
    %v4889 = vmul.f32 %v4859, %v4887
    %v4890 = vlaneseq
    %v4891 = vshrl.u32 %v4890, 7
    %v4892 = vsub.s32 6, %v4891
    %v4893 = vrot.slane %v28, %v4892
    %v4894 = vmul.f32 %v4888, %v4893
    %v4895 = vmul.f32 %v4889, %v4893
    %v4896 = vlaneseq
    %v4897 = vshrl.u32 %v4896, 7
    %v4898 = vsub.s32 7, %v4897
    %v4899 = vrot.slane %v28, %v4898
    %v4900 = vadd.f32 %v4894, %v4899
    %v4901 = vadd.f32 %v4895, %v4899
    %v4902 = vmax.f32 %v4900, 0.0
    %v4903 = vmax.f32 %v4901, 0.0
    %4904 = vst.msk [vmem:[#allocation2] sm:$0xff] %vm418, %v4902
    %4905 = vst.msk [vmem:[#allocation2 + $0x8] sm:$0xff] %vm418, %v4903
    // Predicated region
    $region30: #{transformer_layer_forward.1} parent=1 // pred_check
      _
    $region31: #{transformer_layer_forward.1} parent=1 // pred_check_branch
      %4907 = sbr.rel (0) target = $region33
    $region32: #{transformer_layer_forward.1} parent=1 // pred_region
      %s4909 = ssub.s32 256, 256
      %4910 = vsyncadd [#allocation3], %s4909
      %s4911 = sshll.u32 [#allocation2], 4
      %s4912 = int_to_ptr.vmem [resolvable:$true] %s4911
      %4917 = dma.vmem_to_hbm [thread:$0]  %s4912, 256, %s7, [#allocation3], 128, 128, 8
    $region33: #{transformer_layer_forward.1} parent=1 // pred_fallthru
      _
    // Predicated region
    $region34: #{transformer_layer_forward.1} parent=1 // pred_check
      _
    $region35: #{transformer_layer_forward.1} parent=1 // pred_check_branch
      %4919 = sbr.rel (0) target = $region37
    $region36: #{transformer_layer_forward.1} parent=1 // pred_region
      %4920 = dma.done [#allocation3], 256
    $region37: #{transformer_layer_forward.1} parent=1 // pred_fallthru
      _
    %4921 = vsyncpa [#allocation3], 1

</llo_original>
